<compile_context>
chip_gen: v5e
topology: v5e:2x2
jax: 0.10.0
libtpu: 0.0.40
codegen_flags: <defaults>
</compile_context>

<pallas_src>
import jax
import jax.numpy as jnp
from jax.experimental import pallas as pl
from jax.experimental.pallas import tpu as pltpu

GP = 128  # gate lane pitch: each gate gets its own full 128-lane vreg group


# ----------------------------------------------------------------------------
# Fused kernel
# ----------------------------------------------------------------------------
def _gru_cell(gx, gh, h_prev, b_hn):
    """One GRU cell update, PyTorch gate order [r | z | n], gate pitch GP lanes.

    gx = x @ W_ih + (b_ih + b_hh for r,z ; b_in for n)   -- bias pre-folded (host)
    gh = h_prev @ W_hh                                    -- NO bias
    b_hn added inside the r * (...) term, exactly like torch.nn.GRU.
    All slices start at lane g*GP -> whole-vreg-group selects (no lane rotates).
    Padded lanes (>= H) stay exactly zero: gx/gh/b_hn are zero there, so
    n = tanh(0) = 0 and h_new = 0.5*0 + z*0 = 0.
    """
    r = jax.nn.sigmoid(gx[:, 0 * GP:1 * GP] + gh[:, 0 * GP:1 * GP])
    z = jax.nn.sigmoid(gx[:, 1 * GP:2 * GP] + gh[:, 1 * GP:2 * GP])
    n = jnp.tanh(gx[:, 2 * GP:3 * GP] + r * (gh[:, 2 * GP:3 * GP] + b_hn))
    return (1.0 - z) * n + z * h_prev


def fused_gru_fc_kernel(x_ref,
                        wih0_ref, whh0_ref, bx0_ref, bhn0_ref,
                        wih1_ref, whh1_ref, bx1_ref, bhn1_ref,
                        wfc_ref, bfc_ref,
                        out_ref):
    B, T, D = x_ref.shape

    # ---- hoisted weight/bias loads (nothing re-broadcast inside the loops) ----
    whh0 = whh0_ref[...]
    wih1 = wih1_ref[...]
    whh1 = whh1_ref[...]
    b_hn0 = bhn0_ref[...]
    b_hn1 = bhn1_ref[...]

    # ---- layer-0 input projection for the whole sequence: ONE batched matmul ----
    # then a one-time transpose to time-major so the per-step access is gx0[t].
    x_flat = x_ref[...].reshape(B * T, D)                              # (B*T, D)
    gx0 = jnp.dot(x_flat, wih0_ref[...],
                  preferred_element_type=jnp.float32) + bx0_ref[...]   # (B*T, 3*GP)
    gx0 = jnp.transpose(gx0.reshape(B, T, 3 * GP), (1, 0, 2))          # (T, B, 3*GP)

    # ---- layer-0 recurrence: exactly ONE serial matmul per step ----
    h0 = jnp.zeros((B, GP), jnp.float32)
    h0_steps = []
    for t in range(T):                                                 # static unroll
        gh0 = jnp.dot(h0, whh0, preferred_element_type=jnp.float32)
        h0 = _gru_cell(gx0[t], gh0, h0, b_hn0)
        h0_steps.append(h0)
    h0_all = jnp.stack(h0_steps, axis=0)                               # (T, B, GP)

    # ---- layer-1 input projection for the whole sequence: ONE batched matmul ----
    gx1 = (jnp.dot(h0_all.reshape(T * B, GP), wih1,
                   preferred_element_type=jnp.float32) + bx1_ref[...]
           ).reshape(T, B, 3 * GP)                                     # (T, B, 3*GP)

    # ---- layer-1 recurrence: exactly ONE serial matmul per step ----
    h1 = jnp.zeros((B, GP), jnp.float32)
    for t in range(T):                                                 # static unroll
        gh1 = jnp.dot(h1, whh1, preferred_element_type=jnp.float32)
        h1 = _gru_cell(gx1[t], gh1, h1, b_hn1)

    # ---- final Linear(H -> 1): VPU multiply + lane reduce (no N=1 MXU push) ----
    out_ref[...] = jnp.sum(h1 * wfc_ref[...], axis=-1, keepdims=True) + bfc_ref[...]


# ----------------------------------------------------------------------------
# Host-side parameter prep (padding + bias folding, done ONCE outside jit)
# ----------------------------------------------------------------------------
def _pad_gate_cols(w, H):
    """(rows, 3H) -> (rows, 3*GP); gate g occupies columns [g*GP, g*GP+H)."""
    rows = w.shape[0]
    out = jnp.zeros((rows, 3 * GP), jnp.float32)
    for g in range(3):
        out = out.at[:, g * GP:g * GP + H].set(w[:, g * H:(g + 1) * H])
    return out


def _pad_rows(w, rows_pad):
    return jnp.zeros((rows_pad, w.shape[1]), jnp.float32).at[:w.shape[0]].set(w)


def prepare_params(params):
    """Pre-fold biases and pad weights to the vreg-aligned gate layout."""
    assert len(params["gru_layers"]) == 2, "fused kernel is specialized to 2 layers"
    l0, l1 = params["gru_layers"]
    H = l0["w_hh"].shape[0]

    def fold_bias(b_ih, b_hh):
        # x-side bias: r/z biases combined (b_ih + b_hh); n gate keeps b_in only.
        b_x = jnp.concatenate(
            [b_ih[:, :2 * H] + b_hh[:, :2 * H], b_ih[:, 2 * H:]], axis=-1)
        b_hn = jnp.zeros((1, GP), jnp.float32).at[:, :H].set(b_hh[:, 2 * H:])
        return _pad_gate_cols(b_x, H), b_hn

    bx0, bhn0 = fold_bias(l0["b_ih"], l0["b_hh"])
    bx1, bhn1 = fold_bias(l1["b_ih"], l1["b_hh"])

    return {
        "wih0": _pad_gate_cols(l0["w_ih"], H),                    # (D,  3*GP)
        "whh0": _pad_rows(_pad_gate_cols(l0["w_hh"], H), GP),     # (GP, 3*GP)
        "bx0": bx0, "bhn0": bhn0,
        "wih1": _pad_rows(_pad_gate_cols(l1["w_ih"], H), GP),     # (GP, 3*GP)
        "whh1": _pad_rows(_pad_gate_cols(l1["w_hh"], H), GP),     # (GP, 3*GP)
        "bx1": bx1, "bhn1": bhn1,
        "wfc": jnp.zeros((1, GP), jnp.float32).at[:, :H].set(params["w_fc"][:, 0]),
        "bfc": params["b_fc"].astype(jnp.float32),                # (1, 1)
    }


# ----------------------------------------------------------------------------
# Wrapper
# ----------------------------------------------------------------------------
def gru_model_forward(x_btd, prepped):
    """Full GRUModel forward.  x_btd: (B, T, input_dim) -> (B,) like out.view(-1)."""
    B = x_btd.shape[0]
    n_inputs = 11
    out = pl.pallas_call(
        fused_gru_fc_kernel,
        out_shape=jax.ShapeDtypeStruct((B, 1), jnp.float32),
        in_specs=[pl.BlockSpec(memory_space=pltpu.MemorySpace.VMEM)] * n_inputs,
        out_specs=pl.BlockSpec(memory_space=pltpu.MemorySpace.VMEM),
    )(
        x_btd.astype(jnp.float32),
        prepped["wih0"], prepped["whh0"], prepped["bx0"], prepped["bhn0"],
        prepped["wih1"], prepped["whh1"], prepped["bx1"], prepped["bhn1"],
        prepped["wfc"], prepped["bfc"],
    )
    return out.reshape(-1)                                        # (B,)


# ----------------------------------------------------------------------------
# Deterministic parameter init + pure-JAX reference (torch.nn.GRU semantics)
# ----------------------------------------------------------------------------
def init_params(key, input_dim, hidden_dim, num_layers):
    layers = []
    k = 1.0 / jnp.sqrt(hidden_dim)
    for l in range(num_layers):
        d_in = input_dim if l == 0 else hidden_dim
        key, k1, k2, k3, k4 = jax.random.split(key, 5)
        layers.append({
            # stored pre-transposed: (D, 3H) / (H, 3H), gate order [r|z|n]
            "w_ih": jax.random.uniform(k1, (d_in, 3 * hidden_dim), jnp.float32, -k, k),
            "w_hh": jax.random.uniform(k2, (hidden_dim, 3 * hidden_dim), jnp.float32, -k, k),
            "b_ih": jax.random.uniform(k3, (1, 3 * hidden_dim), jnp.float32, -k, k),
            "b_hh": jax.random.uniform(k4, (1, 3 * hidden_dim), jnp.float32, -k, k),
        })
    key, k5, k6 = jax.random.split(key, 3)
    w_fc = jax.random.uniform(k5, (hidden_dim, 1), jnp.float32, -k, k)
    b_fc = jax.random.uniform(k6, (1, 1), jnp.float32, -k, k)
    return {"gru_layers": layers, "w_fc": w_fc, "b_fc": b_fc}


def reference_forward(x_btd, params):
    """Pure-JAX reference replicating torch.nn.GRU (gate order r,z,n) + Linear."""
    x = jnp.transpose(x_btd, (1, 0, 2)).astype(jnp.float32)   # (T, B, D)
    for layer in params["gru_layers"]:
        T, B, _ = x.shape
        H = layer["w_hh"].shape[0]
        h = jnp.zeros((B, H), jnp.float32)
        outs = []
        for t in range(T):
            gx = x[t] @ layer["w_ih"] + layer["b_ih"]
            gh = h @ layer["w_hh"] + layer["b_hh"]
            r = jax.nn.sigmoid(gx[:, :H] + gh[:, :H])
            z = jax.nn.sigmoid(gx[:, H:2 * H] + gh[:, H:2 * H])
            n = jnp.tanh(gx[:, 2 * H:] + r * gh[:, 2 * H:])
            h = (1.0 - z) * n + z * h
            outs.append(h)
        x = jnp.stack(outs, axis=0)
    return (x[-1] @ params["w_fc"] + params["b_fc"]).reshape(-1)


# ----------------------------------------------------------------------------
if __name__ == "__main__":
    B, T, INPUT_DIM, HIDDEN_DIM, NUM_LAYERS = 2, 8, 8, 32, 2

    key = jax.random.PRNGKey(0)
    key, kx = jax.random.split(key)
    x = jax.random.normal(kx, (B, T, INPUT_DIM), jnp.float32)   # batch_first input

    params = init_params(key, INPUT_DIM, HIDDEN_DIM, NUM_LAYERS)
    prepped = prepare_params(params)                            # one-time host prep

    fwd = jax.jit(gru_model_forward)
    out = jax.block_until_ready(fwd(x, prepped))

    ref = reference_forward(x, params)
    assert out.shape == (B,)
    assert jnp.allclose(out, ref, rtol=1e-4, atol=1e-4), (out, ref)

    print("KERNEL_OK")
</pallas_src>

<mosaic_0001>
module attributes {stable_mosaic.version = 11 : i64} {
  func.func @fused_gru_fc_kernel(%arg0: memref<2x8x8xf32, #tpu.memory_space<vmem>>, %arg1: memref<8x384xf32, #tpu.memory_space<vmem>>, %arg2: memref<128x384xf32, #tpu.memory_space<vmem>>, %arg3: memref<1x384xf32, #tpu.memory_space<vmem>>, %arg4: memref<1x128xf32, #tpu.memory_space<vmem>>, %arg5: memref<128x384xf32, #tpu.memory_space<vmem>>, %arg6: memref<128x384xf32, #tpu.memory_space<vmem>>, %arg7: memref<1x384xf32, #tpu.memory_space<vmem>>, %arg8: memref<1x128xf32, #tpu.memory_space<vmem>>, %arg9: memref<1x128xf32, #tpu.memory_space<vmem>>, %arg10: memref<1x1xf32, #tpu.memory_space<vmem>>, %arg11: memref<2x1xf32, #tpu.memory_space<vmem>>) attributes {dimension_semantics = [], scalar_prefetch = 0 : i64, scratch_operands = 0 : i64, tpu.core_type = #tpu.core_type<tc>} {
    %c0 = arith.constant 0 : index
    %c0_0 = arith.constant 0 : index
    %0 = vector.load %arg2[%c0, %c0_0] : memref<128x384xf32, #tpu.memory_space<vmem>>, vector<128x384xf32>
    %c0_1 = arith.constant 0 : index
    %c0_2 = arith.constant 0 : index
    %1 = vector.load %arg5[%c0_1, %c0_2] : memref<128x384xf32, #tpu.memory_space<vmem>>, vector<128x384xf32>
    %c0_3 = arith.constant 0 : index
    %c0_4 = arith.constant 0 : index
    %2 = vector.load %arg6[%c0_3, %c0_4] : memref<128x384xf32, #tpu.memory_space<vmem>>, vector<128x384xf32>
    %c0_5 = arith.constant 0 : index
    %c0_6 = arith.constant 0 : index
    %3 = vector.load %arg4[%c0_5, %c0_6] : memref<1x128xf32, #tpu.memory_space<vmem>>, vector<1x128xf32>
    %c0_7 = arith.constant 0 : index
    %c0_8 = arith.constant 0 : index
    %4 = vector.load %arg8[%c0_7, %c0_8] : memref<1x128xf32, #tpu.memory_space<vmem>>, vector<1x128xf32>
    %c0_9 = arith.constant 0 : index
    %c0_10 = arith.constant 0 : index
    %c0_11 = arith.constant 0 : index
    %5 = vector.load %arg0[%c0_9, %c0_10, %c0_11] : memref<2x8x8xf32, #tpu.memory_space<vmem>>, vector<2x8x8xf32>
    %6 = vector.shape_cast %5 : vector<2x8x8xf32> to vector<16x8xf32>
    %c0_12 = arith.constant 0 : index
    %c0_13 = arith.constant 0 : index
    %7 = vector.load %arg1[%c0_12, %c0_13] : memref<8x384xf32, #tpu.memory_space<vmem>>, vector<8x384xf32>
    %cst = arith.constant dense<0.000000e+00> : vector<16x384xf32>
    %8 = tpu.matmul %6, %7, %cst {dimension_numbers = #tpu.dot_dimension_numbers<[1], [0], [0], [1], [0, 0, 1, 1], [], []>} : vector<16x8xf32>, vector<8x384xf32>, vector<16x384xf32> -> vector<16x384xf32>
    %c0_14 = arith.constant 0 : index
    %c0_15 = arith.constant 0 : index
    %9 = vector.load %arg3[%c0_14, %c0_15] : memref<1x384xf32, #tpu.memory_space<vmem>>, vector<1x384xf32>
    %10 = vector.broadcast %9 : vector<1x384xf32> to vector<16x384xf32>
    %11 = arith.addf %8, %10 : vector<16x384xf32>
    %12 = vector.shape_cast %11 : vector<16x384xf32> to vector<2x8x384xf32>
    %13 = tpu.transpose %12, [1, 0, 2] : vector<2x8x384xf32> -> vector<8x2x384xf32>
    %cst_16 = arith.constant 0.000000e+00 : f32
    %14 = vector.broadcast %cst_16 : f32 to vector<2x128xf32>
    %cst_17 = arith.constant dense<0.000000e+00> : vector<2x384xf32>
    %15 = tpu.matmul %14, %0, %cst_17 {dimension_numbers = #tpu.dot_dimension_numbers<[1], [0], [0], [1], [0, 0, 1, 1], [], []>} : vector<2x128xf32>, vector<128x384xf32>, vector<2x384xf32> -> vector<2x384xf32>
    %16 = vector.extract_strided_slice %13 {offsets = [0, 0, 0], sizes = [1, 2, 384], strides = [1, 1, 1]} : vector<8x2x384xf32> to vector<1x2x384xf32>
    %17 = vector.shape_cast %16 : vector<1x2x384xf32> to vector<2x384xf32>
    %18 = vector.extract_strided_slice %17 {offsets = [0, 0], sizes = [2, 128], strides = [1, 1]} : vector<2x384xf32> to vector<2x128xf32>
    %19 = vector.extract_strided_slice %15 {offsets = [0, 0], sizes = [2, 128], strides = [1, 1]} : vector<2x384xf32> to vector<2x128xf32>
    %20 = arith.addf %18, %19 : vector<2x128xf32>
    %21 = arith.negf %20 : vector<2x128xf32>
    %22 = math.exp %21 : vector<2x128xf32>
    %cst_18 = arith.constant 1.000000e+00 : f32
    %23 = vector.broadcast %cst_18 : f32 to vector<2x128xf32>
    %24 = arith.addf %23, %22 : vector<2x128xf32>
    %25 = arith.divf %23, %24 : vector<2x128xf32>
    %26 = vector.extract_strided_slice %17 {offsets = [0, 128], sizes = [2, 128], strides = [1, 1]} : vector<2x384xf32> to vector<2x128xf32>
    %27 = vector.extract_strided_slice %15 {offsets = [0, 128], sizes = [2, 128], strides = [1, 1]} : vector<2x384xf32> to vector<2x128xf32>
    %28 = arith.addf %26, %27 : vector<2x128xf32>
    %29 = arith.negf %28 : vector<2x128xf32>
    %30 = math.exp %29 : vector<2x128xf32>
    %cst_19 = arith.constant 1.000000e+00 : f32
    %31 = vector.broadcast %cst_19 : f32 to vector<2x128xf32>
    %32 = arith.addf %31, %30 : vector<2x128xf32>
    %33 = arith.divf %31, %32 : vector<2x128xf32>
    %34 = vector.extract_strided_slice %17 {offsets = [0, 256], sizes = [2, 128], strides = [1, 1]} : vector<2x384xf32> to vector<2x128xf32>
    %35 = vector.extract_strided_slice %15 {offsets = [0, 256], sizes = [2, 128], strides = [1, 1]} : vector<2x384xf32> to vector<2x128xf32>
    %36 = vector.broadcast %3 : vector<1x128xf32> to vector<2x128xf32>
    %37 = arith.addf %35, %36 : vector<2x128xf32>
    %38 = arith.mulf %25, %37 : vector<2x128xf32>
    %39 = arith.addf %34, %38 : vector<2x128xf32>
    %40 = math.tanh %39 : vector<2x128xf32>
    %cst_20 = arith.constant 1.000000e+00 : f32
    %41 = vector.broadcast %cst_20 : f32 to vector<2x128xf32>
    %42 = arith.subf %41, %33 : vector<2x128xf32>
    %43 = arith.mulf %42, %40 : vector<2x128xf32>
    %44 = arith.mulf %33, %14 : vector<2x128xf32>
    %45 = arith.addf %43, %44 : vector<2x128xf32>
    %cst_21 = arith.constant dense<0.000000e+00> : vector<2x384xf32>
    %46 = tpu.matmul %45, %0, %cst_21 {dimension_numbers = #tpu.dot_dimension_numbers<[1], [0], [0], [1], [0, 0, 1, 1], [], []>} : vector<2x128xf32>, vector<128x384xf32>, vector<2x384xf32> -> vector<2x384xf32>
    %47 = vector.extract_strided_slice %13 {offsets = [1, 0, 0], sizes = [1, 2, 384], strides = [1, 1, 1]} : vector<8x2x384xf32> to vector<1x2x384xf32>
    %48 = vector.shape_cast %47 : vector<1x2x384xf32> to vector<2x384xf32>
    %49 = vector.extract_strided_slice %48 {offsets = [0, 0], sizes = [2, 128], strides = [1, 1]} : vector<2x384xf32> to vector<2x128xf32>
    %50 = vector.extract_strided_slice %46 {offsets = [0, 0], sizes = [2, 128], strides = [1, 1]} : vector<2x384xf32> to vector<2x128xf32>
    %51 = arith.addf %49, %50 : vector<2x128xf32>
    %52 = arith.negf %51 : vector<2x128xf32>
    %53 = math.exp %52 : vector<2x128xf32>
    %cst_22 = arith.constant 1.000000e+00 : f32
    %54 = vector.broadcast %cst_22 : f32 to vector<2x128xf32>
    %55 = arith.addf %54, %53 : vector<2x128xf32>
    %56 = arith.divf %54, %55 : vector<2x128xf32>
    %57 = vector.extract_strided_slice %48 {offsets = [0, 128], sizes = [2, 128], strides = [1, 1]} : vector<2x384xf32> to vector<2x128xf32>
    %58 = vector.extract_strided_slice %46 {offsets = [0, 128], sizes = [2, 128], strides = [1, 1]} : vector<2x384xf32> to vector<2x128xf32>
    %59 = arith.addf %57, %58 : vector<2x128xf32>
    %60 = arith.negf %59 : vector<2x128xf32>
    %61 = math.exp %60 : vector<2x128xf32>
    %cst_23 = arith.constant 1.000000e+00 : f32
    %62 = vector.broadcast %cst_23 : f32 to vector<2x128xf32>
    %63 = arith.addf %62, %61 : vector<2x128xf32>
    %64 = arith.divf %62, %63 : vector<2x128xf32>
    %65 = vector.extract_strided_slice %48 {offsets = [0, 256], sizes = [2, 128], strides = [1, 1]} : vector<2x384xf32> to vector<2x128xf32>
    %66 = vector.extract_strided_slice %46 {offsets = [0, 256], sizes = [2, 128], strides = [1, 1]} : vector<2x384xf32> to vector<2x128xf32>
    %67 = vector.broadcast %3 : vector<1x128xf32> to vector<2x128xf32>
    %68 = arith.addf %66, %67 : vector<2x128xf32>
    %69 = arith.mulf %56, %68 : vector<2x128xf32>
    %70 = arith.addf %65, %69 : vector<2x128xf32>
    %71 = math.tanh %70 : vector<2x128xf32>
    %cst_24 = arith.constant 1.000000e+00 : f32
    %72 = vector.broadcast %cst_24 : f32 to vector<2x128xf32>
    %73 = arith.subf %72, %64 : vector<2x128xf32>
    %74 = arith.mulf %73, %71 : vector<2x128xf32>
    %75 = arith.mulf %64, %45 : vector<2x128xf32>
    %76 = arith.addf %74, %75 : vector<2x128xf32>
    %cst_25 = arith.constant dense<0.000000e+00> : vector<2x384xf32>
    %77 = tpu.matmul %76, %0, %cst_25 {dimension_numbers = #tpu.dot_dimension_numbers<[1], [0], [0], [1], [0, 0, 1, 1], [], []>} : vector<2x128xf32>, vector<128x384xf32>, vector<2x384xf32> -> vector<2x384xf32>
    %78 = vector.extract_strided_slice %13 {offsets = [2, 0, 0], sizes = [1, 2, 384], strides = [1, 1, 1]} : vector<8x2x384xf32> to vector<1x2x384xf32>
    %79 = vector.shape_cast %78 : vector<1x2x384xf32> to vector<2x384xf32>
    %80 = vector.extract_strided_slice %79 {offsets = [0, 0], sizes = [2, 128], strides = [1, 1]} : vector<2x384xf32> to vector<2x128xf32>
    %81 = vector.extract_strided_slice %77 {offsets = [0, 0], sizes = [2, 128], strides = [1, 1]} : vector<2x384xf32> to vector<2x128xf32>
    %82 = arith.addf %80, %81 : vector<2x128xf32>
    %83 = arith.negf %82 : vector<2x128xf32>
    %84 = math.exp %83 : vector<2x128xf32>
    %cst_26 = arith.constant 1.000000e+00 : f32
    %85 = vector.broadcast %cst_26 : f32 to vector<2x128xf32>
    %86 = arith.addf %85, %84 : vector<2x128xf32>
    %87 = arith.divf %85, %86 : vector<2x128xf32>
    %88 = vector.extract_strided_slice %79 {offsets = [0, 128], sizes = [2, 128], strides = [1, 1]} : vector<2x384xf32> to vector<2x128xf32>
    %89 = vector.extract_strided_slice %77 {offsets = [0, 128], sizes = [2, 128], strides = [1, 1]} : vector<2x384xf32> to vector<2x128xf32>
    %90 = arith.addf %88, %89 : vector<2x128xf32>
    %91 = arith.negf %90 : vector<2x128xf32>
    %92 = math.exp %91 : vector<2x128xf32>
    %cst_27 = arith.constant 1.000000e+00 : f32
    %93 = vector.broadcast %cst_27 : f32 to vector<2x128xf32>
    %94 = arith.addf %93, %92 : vector<2x128xf32>
    %95 = arith.divf %93, %94 : vector<2x128xf32>
    %96 = vector.extract_strided_slice %79 {offsets = [0, 256], sizes = [2, 128], strides = [1, 1]} : vector<2x384xf32> to vector<2x128xf32>
    %97 = vector.extract_strided_slice %77 {offsets = [0, 256], sizes = [2, 128], strides = [1, 1]} : vector<2x384xf32> to vector<2x128xf32>
    %98 = vector.broadcast %3 : vector<1x128xf32> to vector<2x128xf32>
    %99 = arith.addf %97, %98 : vector<2x128xf32>
    %100 = arith.mulf %87, %99 : vector<2x128xf32>
    %101 = arith.addf %96, %100 : vector<2x128xf32>
    %102 = math.tanh %101 : vector<2x128xf32>
    %cst_28 = arith.constant 1.000000e+00 : f32
    %103 = vector.broadcast %cst_28 : f32 to vector<2x128xf32>
    %104 = arith.subf %103, %95 : vector<2x128xf32>
    %105 = arith.mulf %104, %102 : vector<2x128xf32>
    %106 = arith.mulf %95, %76 : vector<2x128xf32>
    %107 = arith.addf %105, %106 : vector<2x128xf32>
    %cst_29 = arith.constant dense<0.000000e+00> : vector<2x384xf32>
    %108 = tpu.matmul %107, %0, %cst_29 {dimension_numbers = #tpu.dot_dimension_numbers<[1], [0], [0], [1], [0, 0, 1, 1], [], []>} : vector<2x128xf32>, vector<128x384xf32>, vector<2x384xf32> -> vector<2x384xf32>
    %109 = vector.extract_strided_slice %13 {offsets = [3, 0, 0], sizes = [1, 2, 384], strides = [1, 1, 1]} : vector<8x2x384xf32> to vector<1x2x384xf32>
    %110 = vector.shape_cast %109 : vector<1x2x384xf32> to vector<2x384xf32>
    %111 = vector.extract_strided_slice %110 {offsets = [0, 0], sizes = [2, 128], strides = [1, 1]} : vector<2x384xf32> to vector<2x128xf32>
    %112 = vector.extract_strided_slice %108 {offsets = [0, 0], sizes = [2, 128], strides = [1, 1]} : vector<2x384xf32> to vector<2x128xf32>
    %113 = arith.addf %111, %112 : vector<2x128xf32>
    %114 = arith.negf %113 : vector<2x128xf32>
    %115 = math.exp %114 : vector<2x128xf32>
    %cst_30 = arith.constant 1.000000e+00 : f32
    %116 = vector.broadcast %cst_30 : f32 to vector<2x128xf32>
    %117 = arith.addf %116, %115 : vector<2x128xf32>
    %118 = arith.divf %116, %117 : vector<2x128xf32>
    %119 = vector.extract_strided_slice %110 {offsets = [0, 128], sizes = [2, 128], strides = [1, 1]} : vector<2x384xf32> to vector<2x128xf32>
    %120 = vector.extract_strided_slice %108 {offsets = [0, 128], sizes = [2, 128], strides = [1, 1]} : vector<2x384xf32> to vector<2x128xf32>
    %121 = arith.addf %119, %120 : vector<2x128xf32>
    %122 = arith.negf %121 : vector<2x128xf32>
    %123 = math.exp %122 : vector<2x128xf32>
    %cst_31 = arith.constant 1.000000e+00 : f32
    %124 = vector.broadcast %cst_31 : f32 to vector<2x128xf32>
    %125 = arith.addf %124, %123 : vector<2x128xf32>
    %126 = arith.divf %124, %125 : vector<2x128xf32>
    %127 = vector.extract_strided_slice %110 {offsets = [0, 256], sizes = [2, 128], strides = [1, 1]} : vector<2x384xf32> to vector<2x128xf32>
    %128 = vector.extract_strided_slice %108 {offsets = [0, 256], sizes = [2, 128], strides = [1, 1]} : vector<2x384xf32> to vector<2x128xf32>
    %129 = vector.broadcast %3 : vector<1x128xf32> to vector<2x128xf32>
    %130 = arith.addf %128, %129 : vector<2x128xf32>
    %131 = arith.mulf %118, %130 : vector<2x128xf32>
    %132 = arith.addf %127, %131 : vector<2x128xf32>
    %133 = math.tanh %132 : vector<2x128xf32>
    %cst_32 = arith.constant 1.000000e+00 : f32
    %134 = vector.broadcast %cst_32 : f32 to vector<2x128xf32>
    %135 = arith.subf %134, %126 : vector<2x128xf32>
    %136 = arith.mulf %135, %133 : vector<2x128xf32>
    %137 = arith.mulf %126, %107 : vector<2x128xf32>
    %138 = arith.addf %136, %137 : vector<2x128xf32>
    %cst_33 = arith.constant dense<0.000000e+00> : vector<2x384xf32>
    %139 = tpu.matmul %138, %0, %cst_33 {dimension_numbers = #tpu.dot_dimension_numbers<[1], [0], [0], [1], [0, 0, 1, 1], [], []>} : vector<2x128xf32>, vector<128x384xf32>, vector<2x384xf32> -> vector<2x384xf32>
    %140 = vector.extract_strided_slice %13 {offsets = [4, 0, 0], sizes = [1, 2, 384], strides = [1, 1, 1]} : vector<8x2x384xf32> to vector<1x2x384xf32>
    %141 = vector.shape_cast %140 : vector<1x2x384xf32> to vector<2x384xf32>
    %142 = vector.extract_strided_slice %141 {offsets = [0, 0], sizes = [2, 128], strides = [1, 1]} : vector<2x384xf32> to vector<2x128xf32>
    %143 = vector.extract_strided_slice %139 {offsets = [0, 0], sizes = [2, 128], strides = [1, 1]} : vector<2x384xf32> to vector<2x128xf32>
    %144 = arith.addf %142, %143 : vector<2x128xf32>
    %145 = arith.negf %144 : vector<2x128xf32>
    %146 = math.exp %145 : vector<2x128xf32>
    %cst_34 = arith.constant 1.000000e+00 : f32
    %147 = vector.broadcast %cst_34 : f32 to vector<2x128xf32>
    %148 = arith.addf %147, %146 : vector<2x128xf32>
    %149 = arith.divf %147, %148 : vector<2x128xf32>
    %150 = vector.extract_strided_slice %141 {offsets = [0, 128], sizes = [2, 128], strides = [1, 1]} : vector<2x384xf32> to vector<2x128xf32>
    %151 = vector.extract_strided_slice %139 {offsets = [0, 128], sizes = [2, 128], strides = [1, 1]} : vector<2x384xf32> to vector<2x128xf32>
    %152 = arith.addf %150, %151 : vector<2x128xf32>
    %153 = arith.negf %152 : vector<2x128xf32>
    %154 = math.exp %153 : vector<2x128xf32>
    %cst_35 = arith.constant 1.000000e+00 : f32
    %155 = vector.broadcast %cst_35 : f32 to vector<2x128xf32>
    %156 = arith.addf %155, %154 : vector<2x128xf32>
    %157 = arith.divf %155, %156 : vector<2x128xf32>
    %158 = vector.extract_strided_slice %141 {offsets = [0, 256], sizes = [2, 128], strides = [1, 1]} : vector<2x384xf32> to vector<2x128xf32>
    %159 = vector.extract_strided_slice %139 {offsets = [0, 256], sizes = [2, 128], strides = [1, 1]} : vector<2x384xf32> to vector<2x128xf32>
    %160 = vector.broadcast %3 : vector<1x128xf32> to vector<2x128xf32>
    %161 = arith.addf %159, %160 : vector<2x128xf32>
    %162 = arith.mulf %149, %161 : vector<2x128xf32>
    %163 = arith.addf %158, %162 : vector<2x128xf32>
    %164 = math.tanh %163 : vector<2x128xf32>
    %cst_36 = arith.constant 1.000000e+00 : f32
    %165 = vector.broadcast %cst_36 : f32 to vector<2x128xf32>
    %166 = arith.subf %165, %157 : vector<2x128xf32>
    %167 = arith.mulf %166, %164 : vector<2x128xf32>
    %168 = arith.mulf %157, %138 : vector<2x128xf32>
    %169 = arith.addf %167, %168 : vector<2x128xf32>
    %cst_37 = arith.constant dense<0.000000e+00> : vector<2x384xf32>
    %170 = tpu.matmul %169, %0, %cst_37 {dimension_numbers = #tpu.dot_dimension_numbers<[1], [0], [0], [1], [0, 0, 1, 1], [], []>} : vector<2x128xf32>, vector<128x384xf32>, vector<2x384xf32> -> vector<2x384xf32>
    %171 = vector.extract_strided_slice %13 {offsets = [5, 0, 0], sizes = [1, 2, 384], strides = [1, 1, 1]} : vector<8x2x384xf32> to vector<1x2x384xf32>
    %172 = vector.shape_cast %171 : vector<1x2x384xf32> to vector<2x384xf32>
    %173 = vector.extract_strided_slice %172 {offsets = [0, 0], sizes = [2, 128], strides = [1, 1]} : vector<2x384xf32> to vector<2x128xf32>
    %174 = vector.extract_strided_slice %170 {offsets = [0, 0], sizes = [2, 128], strides = [1, 1]} : vector<2x384xf32> to vector<2x128xf32>
    %175 = arith.addf %173, %174 : vector<2x128xf32>
    %176 = arith.negf %175 : vector<2x128xf32>
    %177 = math.exp %176 : vector<2x128xf32>
    %cst_38 = arith.constant 1.000000e+00 : f32
    %178 = vector.broadcast %cst_38 : f32 to vector<2x128xf32>
    %179 = arith.addf %178, %177 : vector<2x128xf32>
    %180 = arith.divf %178, %179 : vector<2x128xf32>
    %181 = vector.extract_strided_slice %172 {offsets = [0, 128], sizes = [2, 128], strides = [1, 1]} : vector<2x384xf32> to vector<2x128xf32>
    %182 = vector.extract_strided_slice %170 {offsets = [0, 128], sizes = [2, 128], strides = [1, 1]} : vector<2x384xf32> to vector<2x128xf32>
    %183 = arith.addf %181, %182 : vector<2x128xf32>
    %184 = arith.negf %183 : vector<2x128xf32>
    %185 = math.exp %184 : vector<2x128xf32>
    %cst_39 = arith.constant 1.000000e+00 : f32
    %186 = vector.broadcast %cst_39 : f32 to vector<2x128xf32>
    %187 = arith.addf %186, %185 : vector<2x128xf32>
    %188 = arith.divf %186, %187 : vector<2x128xf32>
    %189 = vector.extract_strided_slice %172 {offsets = [0, 256], sizes = [2, 128], strides = [1, 1]} : vector<2x384xf32> to vector<2x128xf32>
    %190 = vector.extract_strided_slice %170 {offsets = [0, 256], sizes = [2, 128], strides = [1, 1]} : vector<2x384xf32> to vector<2x128xf32>
    %191 = vector.broadcast %3 : vector<1x128xf32> to vector<2x128xf32>
    %192 = arith.addf %190, %191 : vector<2x128xf32>
    %193 = arith.mulf %180, %192 : vector<2x128xf32>
    %194 = arith.addf %189, %193 : vector<2x128xf32>
    %195 = math.tanh %194 : vector<2x128xf32>
    %cst_40 = arith.constant 1.000000e+00 : f32
    %196 = vector.broadcast %cst_40 : f32 to vector<2x128xf32>
    %197 = arith.subf %196, %188 : vector<2x128xf32>
    %198 = arith.mulf %197, %195 : vector<2x128xf32>
    %199 = arith.mulf %188, %169 : vector<2x128xf32>
    %200 = arith.addf %198, %199 : vector<2x128xf32>
    %cst_41 = arith.constant dense<0.000000e+00> : vector<2x384xf32>
    %201 = tpu.matmul %200, %0, %cst_41 {dimension_numbers = #tpu.dot_dimension_numbers<[1], [0], [0], [1], [0, 0, 1, 1], [], []>} : vector<2x128xf32>, vector<128x384xf32>, vector<2x384xf32> -> vector<2x384xf32>
    %202 = vector.extract_strided_slice %13 {offsets = [6, 0, 0], sizes = [1, 2, 384], strides = [1, 1, 1]} : vector<8x2x384xf32> to vector<1x2x384xf32>
    %203 = vector.shape_cast %202 : vector<1x2x384xf32> to vector<2x384xf32>
    %204 = vector.extract_strided_slice %203 {offsets = [0, 0], sizes = [2, 128], strides = [1, 1]} : vector<2x384xf32> to vector<2x128xf32>
    %205 = vector.extract_strided_slice %201 {offsets = [0, 0], sizes = [2, 128], strides = [1, 1]} : vector<2x384xf32> to vector<2x128xf32>
    %206 = arith.addf %204, %205 : vector<2x128xf32>
    %207 = arith.negf %206 : vector<2x128xf32>
    %208 = math.exp %207 : vector<2x128xf32>
    %cst_42 = arith.constant 1.000000e+00 : f32
    %209 = vector.broadcast %cst_42 : f32 to vector<2x128xf32>
    %210 = arith.addf %209, %208 : vector<2x128xf32>
    %211 = arith.divf %209, %210 : vector<2x128xf32>
    %212 = vector.extract_strided_slice %203 {offsets = [0, 128], sizes = [2, 128], strides = [1, 1]} : vector<2x384xf32> to vector<2x128xf32>
    %213 = vector.extract_strided_slice %201 {offsets = [0, 128], sizes = [2, 128], strides = [1, 1]} : vector<2x384xf32> to vector<2x128xf32>
    %214 = arith.addf %212, %213 : vector<2x128xf32>
    %215 = arith.negf %214 : vector<2x128xf32>
    %216 = math.exp %215 : vector<2x128xf32>
    %cst_43 = arith.constant 1.000000e+00 : f32
    %217 = vector.broadcast %cst_43 : f32 to vector<2x128xf32>
    %218 = arith.addf %217, %216 : vector<2x128xf32>
    %219 = arith.divf %217, %218 : vector<2x128xf32>
    %220 = vector.extract_strided_slice %203 {offsets = [0, 256], sizes = [2, 128], strides = [1, 1]} : vector<2x384xf32> to vector<2x128xf32>
    %221 = vector.extract_strided_slice %201 {offsets = [0, 256], sizes = [2, 128], strides = [1, 1]} : vector<2x384xf32> to vector<2x128xf32>
    %222 = vector.broadcast %3 : vector<1x128xf32> to vector<2x128xf32>
    %223 = arith.addf %221, %222 : vector<2x128xf32>
    %224 = arith.mulf %211, %223 : vector<2x128xf32>
    %225 = arith.addf %220, %224 : vector<2x128xf32>
    %226 = math.tanh %225 : vector<2x128xf32>
    %cst_44 = arith.constant 1.000000e+00 : f32
    %227 = vector.broadcast %cst_44 : f32 to vector<2x128xf32>
    %228 = arith.subf %227, %219 : vector<2x128xf32>
    %229 = arith.mulf %228, %226 : vector<2x128xf32>
    %230 = arith.mulf %219, %200 : vector<2x128xf32>
    %231 = arith.addf %229, %230 : vector<2x128xf32>
    %cst_45 = arith.constant dense<0.000000e+00> : vector<2x384xf32>
    %232 = tpu.matmul %231, %0, %cst_45 {dimension_numbers = #tpu.dot_dimension_numbers<[1], [0], [0], [1], [0, 0, 1, 1], [], []>} : vector<2x128xf32>, vector<128x384xf32>, vector<2x384xf32> -> vector<2x384xf32>
    %233 = vector.extract_strided_slice %13 {offsets = [7, 0, 0], sizes = [1, 2, 384], strides = [1, 1, 1]} : vector<8x2x384xf32> to vector<1x2x384xf32>
    %234 = vector.shape_cast %233 : vector<1x2x384xf32> to vector<2x384xf32>
    %235 = vector.extract_strided_slice %234 {offsets = [0, 0], sizes = [2, 128], strides = [1, 1]} : vector<2x384xf32> to vector<2x128xf32>
    %236 = vector.extract_strided_slice %232 {offsets = [0, 0], sizes = [2, 128], strides = [1, 1]} : vector<2x384xf32> to vector<2x128xf32>
    %237 = arith.addf %235, %236 : vector<2x128xf32>
    %238 = arith.negf %237 : vector<2x128xf32>
    %239 = math.exp %238 : vector<2x128xf32>
    %cst_46 = arith.constant 1.000000e+00 : f32
    %240 = vector.broadcast %cst_46 : f32 to vector<2x128xf32>
    %241 = arith.addf %240, %239 : vector<2x128xf32>
    %242 = arith.divf %240, %241 : vector<2x128xf32>
    %243 = vector.extract_strided_slice %234 {offsets = [0, 128], sizes = [2, 128], strides = [1, 1]} : vector<2x384xf32> to vector<2x128xf32>
    %244 = vector.extract_strided_slice %232 {offsets = [0, 128], sizes = [2, 128], strides = [1, 1]} : vector<2x384xf32> to vector<2x128xf32>
    %245 = arith.addf %243, %244 : vector<2x128xf32>
    %246 = arith.negf %245 : vector<2x128xf32>
    %247 = math.exp %246 : vector<2x128xf32>
    %cst_47 = arith.constant 1.000000e+00 : f32
    %248 = vector.broadcast %cst_47 : f32 to vector<2x128xf32>
    %249 = arith.addf %248, %247 : vector<2x128xf32>
    %250 = arith.divf %248, %249 : vector<2x128xf32>
    %251 = vector.extract_strided_slice %234 {offsets = [0, 256], sizes = [2, 128], strides = [1, 1]} : vector<2x384xf32> to vector<2x128xf32>
    %252 = vector.extract_strided_slice %232 {offsets = [0, 256], sizes = [2, 128], strides = [1, 1]} : vector<2x384xf32> to vector<2x128xf32>
    %253 = vector.broadcast %3 : vector<1x128xf32> to vector<2x128xf32>
    %254 = arith.addf %252, %253 : vector<2x128xf32>
    %255 = arith.mulf %242, %254 : vector<2x128xf32>
    %256 = arith.addf %251, %255 : vector<2x128xf32>
    %257 = math.tanh %256 : vector<2x128xf32>
    %cst_48 = arith.constant 1.000000e+00 : f32
    %258 = vector.broadcast %cst_48 : f32 to vector<2x128xf32>
    %259 = arith.subf %258, %250 : vector<2x128xf32>
    %260 = arith.mulf %259, %257 : vector<2x128xf32>
    %261 = arith.mulf %250, %231 : vector<2x128xf32>
    %262 = arith.addf %260, %261 : vector<2x128xf32>
    %263 = vector.shape_cast %45 : vector<2x128xf32> to vector<1x2x128xf32>
    %264 = vector.shape_cast %76 : vector<2x128xf32> to vector<1x2x128xf32>
    %265 = vector.shape_cast %107 : vector<2x128xf32> to vector<1x2x128xf32>
    %266 = vector.shape_cast %138 : vector<2x128xf32> to vector<1x2x128xf32>
    %267 = vector.shape_cast %169 : vector<2x128xf32> to vector<1x2x128xf32>
    %268 = vector.shape_cast %200 : vector<2x128xf32> to vector<1x2x128xf32>
    %269 = vector.shape_cast %231 : vector<2x128xf32> to vector<1x2x128xf32>
    %270 = vector.shape_cast %262 : vector<2x128xf32> to vector<1x2x128xf32>
    %271 = tpu.concatenate %263, %264, %265, %266, %267, %268, %269, %270 in 0 : vector<1x2x128xf32>, vector<1x2x128xf32>, vector<1x2x128xf32>, vector<1x2x128xf32>, vector<1x2x128xf32>, vector<1x2x128xf32>, vector<1x2x128xf32>, vector<1x2x128xf32> -> vector<8x2x128xf32>
    %272 = vector.shape_cast %271 : vector<8x2x128xf32> to vector<16x128xf32>
    %cst_49 = arith.constant dense<0.000000e+00> : vector<16x384xf32>
    %273 = tpu.matmul %272, %1, %cst_49 {dimension_numbers = #tpu.dot_dimension_numbers<[1], [0], [0], [1], [0, 0, 1, 1], [], []>} : vector<16x128xf32>, vector<128x384xf32>, vector<16x384xf32> -> vector<16x384xf32>
    %c0_50 = arith.constant 0 : index
    %c0_51 = arith.constant 0 : index
    %274 = vector.load %arg7[%c0_50, %c0_51] : memref<1x384xf32, #tpu.memory_space<vmem>>, vector<1x384xf32>
    %275 = vector.broadcast %274 : vector<1x384xf32> to vector<16x384xf32>
    %276 = arith.addf %273, %275 : vector<16x384xf32>
    %277 = vector.shape_cast %276 : vector<16x384xf32> to vector<8x2x384xf32>
    %cst_52 = arith.constant 0.000000e+00 : f32
    %278 = vector.broadcast %cst_52 : f32 to vector<2x128xf32>
    %cst_53 = arith.constant dense<0.000000e+00> : vector<2x384xf32>
    %279 = tpu.matmul %278, %2, %cst_53 {dimension_numbers = #tpu.dot_dimension_numbers<[1], [0], [0], [1], [0, 0, 1, 1], [], []>} : vector<2x128xf32>, vector<128x384xf32>, vector<2x384xf32> -> vector<2x384xf32>
    %280 = vector.extract_strided_slice %277 {offsets = [0, 0, 0], sizes = [1, 2, 384], strides = [1, 1, 1]} : vector<8x2x384xf32> to vector<1x2x384xf32>
    %281 = vector.shape_cast %280 : vector<1x2x384xf32> to vector<2x384xf32>
    %282 = vector.extract_strided_slice %281 {offsets = [0, 0], sizes = [2, 128], strides = [1, 1]} : vector<2x384xf32> to vector<2x128xf32>
    %283 = vector.extract_strided_slice %279 {offsets = [0, 0], sizes = [2, 128], strides = [1, 1]} : vector<2x384xf32> to vector<2x128xf32>
    %284 = arith.addf %282, %283 : vector<2x128xf32>
    %285 = arith.negf %284 : vector<2x128xf32>
    %286 = math.exp %285 : vector<2x128xf32>
    %cst_54 = arith.constant 1.000000e+00 : f32
    %287 = vector.broadcast %cst_54 : f32 to vector<2x128xf32>
    %288 = arith.addf %287, %286 : vector<2x128xf32>
    %289 = arith.divf %287, %288 : vector<2x128xf32>
    %290 = vector.extract_strided_slice %281 {offsets = [0, 128], sizes = [2, 128], strides = [1, 1]} : vector<2x384xf32> to vector<2x128xf32>
    %291 = vector.extract_strided_slice %279 {offsets = [0, 128], sizes = [2, 128], strides = [1, 1]} : vector<2x384xf32> to vector<2x128xf32>
    %292 = arith.addf %290, %291 : vector<2x128xf32>
    %293 = arith.negf %292 : vector<2x128xf32>
    %294 = math.exp %293 : vector<2x128xf32>
    %cst_55 = arith.constant 1.000000e+00 : f32
    %295 = vector.broadcast %cst_55 : f32 to vector<2x128xf32>
    %296 = arith.addf %295, %294 : vector<2x128xf32>
    %297 = arith.divf %295, %296 : vector<2x128xf32>
    %298 = vector.extract_strided_slice %281 {offsets = [0, 256], sizes = [2, 128], strides = [1, 1]} : vector<2x384xf32> to vector<2x128xf32>
    %299 = vector.extract_strided_slice %279 {offsets = [0, 256], sizes = [2, 128], strides = [1, 1]} : vector<2x384xf32> to vector<2x128xf32>
    %300 = vector.broadcast %4 : vector<1x128xf32> to vector<2x128xf32>
    %301 = arith.addf %299, %300 : vector<2x128xf32>
    %302 = arith.mulf %289, %301 : vector<2x128xf32>
    %303 = arith.addf %298, %302 : vector<2x128xf32>
    %304 = math.tanh %303 : vector<2x128xf32>
    %cst_56 = arith.constant 1.000000e+00 : f32
    %305 = vector.broadcast %cst_56 : f32 to vector<2x128xf32>
    %306 = arith.subf %305, %297 : vector<2x128xf32>
    %307 = arith.mulf %306, %304 : vector<2x128xf32>
    %308 = arith.mulf %297, %278 : vector<2x128xf32>
    %309 = arith.addf %307, %308 : vector<2x128xf32>
    %cst_57 = arith.constant dense<0.000000e+00> : vector<2x384xf32>
    %310 = tpu.matmul %309, %2, %cst_57 {dimension_numbers = #tpu.dot_dimension_numbers<[1], [0], [0], [1], [0, 0, 1, 1], [], []>} : vector<2x128xf32>, vector<128x384xf32>, vector<2x384xf32> -> vector<2x384xf32>
    %311 = vector.extract_strided_slice %277 {offsets = [1, 0, 0], sizes = [1, 2, 384], strides = [1, 1, 1]} : vector<8x2x384xf32> to vector<1x2x384xf32>
    %312 = vector.shape_cast %311 : vector<1x2x384xf32> to vector<2x384xf32>
    %313 = vector.extract_strided_slice %312 {offsets = [0, 0], sizes = [2, 128], strides = [1, 1]} : vector<2x384xf32> to vector<2x128xf32>
    %314 = vector.extract_strided_slice %310 {offsets = [0, 0], sizes = [2, 128], strides = [1, 1]} : vector<2x384xf32> to vector<2x128xf32>
    %315 = arith.addf %313, %314 : vector<2x128xf32>
    %316 = arith.negf %315 : vector<2x128xf32>
    %317 = math.exp %316 : vector<2x128xf32>
    %cst_58 = arith.constant 1.000000e+00 : f32
    %318 = vector.broadcast %cst_58 : f32 to vector<2x128xf32>
    %319 = arith.addf %318, %317 : vector<2x128xf32>
    %320 = arith.divf %318, %319 : vector<2x128xf32>
    %321 = vector.extract_strided_slice %312 {offsets = [0, 128], sizes = [2, 128], strides = [1, 1]} : vector<2x384xf32> to vector<2x128xf32>
    %322 = vector.extract_strided_slice %310 {offsets = [0, 128], sizes = [2, 128], strides = [1, 1]} : vector<2x384xf32> to vector<2x128xf32>
    %323 = arith.addf %321, %322 : vector<2x128xf32>
    %324 = arith.negf %323 : vector<2x128xf32>
    %325 = math.exp %324 : vector<2x128xf32>
    %cst_59 = arith.constant 1.000000e+00 : f32
    %326 = vector.broadcast %cst_59 : f32 to vector<2x128xf32>
    %327 = arith.addf %326, %325 : vector<2x128xf32>
    %328 = arith.divf %326, %327 : vector<2x128xf32>
    %329 = vector.extract_strided_slice %312 {offsets = [0, 256], sizes = [2, 128], strides = [1, 1]} : vector<2x384xf32> to vector<2x128xf32>
    %330 = vector.extract_strided_slice %310 {offsets = [0, 256], sizes = [2, 128], strides = [1, 1]} : vector<2x384xf32> to vector<2x128xf32>
    %331 = vector.broadcast %4 : vector<1x128xf32> to vector<2x128xf32>
    %332 = arith.addf %330, %331 : vector<2x128xf32>
    %333 = arith.mulf %320, %332 : vector<2x128xf32>
    %334 = arith.addf %329, %333 : vector<2x128xf32>
    %335 = math.tanh %334 : vector<2x128xf32>
    %cst_60 = arith.constant 1.000000e+00 : f32
    %336 = vector.broadcast %cst_60 : f32 to vector<2x128xf32>
    %337 = arith.subf %336, %328 : vector<2x128xf32>
    %338 = arith.mulf %337, %335 : vector<2x128xf32>
    %339 = arith.mulf %328, %309 : vector<2x128xf32>
    %340 = arith.addf %338, %339 : vector<2x128xf32>
    %cst_61 = arith.constant dense<0.000000e+00> : vector<2x384xf32>
    %341 = tpu.matmul %340, %2, %cst_61 {dimension_numbers = #tpu.dot_dimension_numbers<[1], [0], [0], [1], [0, 0, 1, 1], [], []>} : vector<2x128xf32>, vector<128x384xf32>, vector<2x384xf32> -> vector<2x384xf32>
    %342 = vector.extract_strided_slice %277 {offsets = [2, 0, 0], sizes = [1, 2, 384], strides = [1, 1, 1]} : vector<8x2x384xf32> to vector<1x2x384xf32>
    %343 = vector.shape_cast %342 : vector<1x2x384xf32> to vector<2x384xf32>
    %344 = vector.extract_strided_slice %343 {offsets = [0, 0], sizes = [2, 128], strides = [1, 1]} : vector<2x384xf32> to vector<2x128xf32>
    %345 = vector.extract_strided_slice %341 {offsets = [0, 0], sizes = [2, 128], strides = [1, 1]} : vector<2x384xf32> to vector<2x128xf32>
    %346 = arith.addf %344, %345 : vector<2x128xf32>
    %347 = arith.negf %346 : vector<2x128xf32>
    %348 = math.exp %347 : vector<2x128xf32>
    %cst_62 = arith.constant 1.000000e+00 : f32
    %349 = vector.broadcast %cst_62 : f32 to vector<2x128xf32>
    %350 = arith.addf %349, %348 : vector<2x128xf32>
    %351 = arith.divf %349, %350 : vector<2x128xf32>
    %352 = vector.extract_strided_slice %343 {offsets = [0, 128], sizes = [2, 128], strides = [1, 1]} : vector<2x384xf32> to vector<2x128xf32>
    %353 = vector.extract_strided_slice %341 {offsets = [0, 128], sizes = [2, 128], strides = [1, 1]} : vector<2x384xf32> to vector<2x128xf32>
    %354 = arith.addf %352, %353 : vector<2x128xf32>
    %355 = arith.negf %354 : vector<2x128xf32>
    %356 = math.exp %355 : vector<2x128xf32>
    %cst_63 = arith.constant 1.000000e+00 : f32
    %357 = vector.broadcast %cst_63 : f32 to vector<2x128xf32>
    %358 = arith.addf %357, %356 : vector<2x128xf32>
    %359 = arith.divf %357, %358 : vector<2x128xf32>
    %360 = vector.extract_strided_slice %343 {offsets = [0, 256], sizes = [2, 128], strides = [1, 1]} : vector<2x384xf32> to vector<2x128xf32>
    %361 = vector.extract_strided_slice %341 {offsets = [0, 256], sizes = [2, 128], strides = [1, 1]} : vector<2x384xf32> to vector<2x128xf32>
    %362 = vector.broadcast %4 : vector<1x128xf32> to vector<2x128xf32>
    %363 = arith.addf %361, %362 : vector<2x128xf32>
    %364 = arith.mulf %351, %363 : vector<2x128xf32>
    %365 = arith.addf %360, %364 : vector<2x128xf32>
    %366 = math.tanh %365 : vector<2x128xf32>
    %cst_64 = arith.constant 1.000000e+00 : f32
    %367 = vector.broadcast %cst_64 : f32 to vector<2x128xf32>
    %368 = arith.subf %367, %359 : vector<2x128xf32>
    %369 = arith.mulf %368, %366 : vector<2x128xf32>
    %370 = arith.mulf %359, %340 : vector<2x128xf32>
    %371 = arith.addf %369, %370 : vector<2x128xf32>
    %cst_65 = arith.constant dense<0.000000e+00> : vector<2x384xf32>
    %372 = tpu.matmul %371, %2, %cst_65 {dimension_numbers = #tpu.dot_dimension_numbers<[1], [0], [0], [1], [0, 0, 1, 1], [], []>} : vector<2x128xf32>, vector<128x384xf32>, vector<2x384xf32> -> vector<2x384xf32>
    %373 = vector.extract_strided_slice %277 {offsets = [3, 0, 0], sizes = [1, 2, 384], strides = [1, 1, 1]} : vector<8x2x384xf32> to vector<1x2x384xf32>
    %374 = vector.shape_cast %373 : vector<1x2x384xf32> to vector<2x384xf32>
    %375 = vector.extract_strided_slice %374 {offsets = [0, 0], sizes = [2, 128], strides = [1, 1]} : vector<2x384xf32> to vector<2x128xf32>
    %376 = vector.extract_strided_slice %372 {offsets = [0, 0], sizes = [2, 128], strides = [1, 1]} : vector<2x384xf32> to vector<2x128xf32>
    %377 = arith.addf %375, %376 : vector<2x128xf32>
    %378 = arith.negf %377 : vector<2x128xf32>
    %379 = math.exp %378 : vector<2x128xf32>
    %cst_66 = arith.constant 1.000000e+00 : f32
    %380 = vector.broadcast %cst_66 : f32 to vector<2x128xf32>
    %381 = arith.addf %380, %379 : vector<2x128xf32>
    %382 = arith.divf %380, %381 : vector<2x128xf32>
    %383 = vector.extract_strided_slice %374 {offsets = [0, 128], sizes = [2, 128], strides = [1, 1]} : vector<2x384xf32> to vector<2x128xf32>
    %384 = vector.extract_strided_slice %372 {offsets = [0, 128], sizes = [2, 128], strides = [1, 1]} : vector<2x384xf32> to vector<2x128xf32>
    %385 = arith.addf %383, %384 : vector<2x128xf32>
    %386 = arith.negf %385 : vector<2x128xf32>
    %387 = math.exp %386 : vector<2x128xf32>
    %cst_67 = arith.constant 1.000000e+00 : f32
    %388 = vector.broadcast %cst_67 : f32 to vector<2x128xf32>
    %389 = arith.addf %388, %387 : vector<2x128xf32>
    %390 = arith.divf %388, %389 : vector<2x128xf32>
    %391 = vector.extract_strided_slice %374 {offsets = [0, 256], sizes = [2, 128], strides = [1, 1]} : vector<2x384xf32> to vector<2x128xf32>
    %392 = vector.extract_strided_slice %372 {offsets = [0, 256], sizes = [2, 128], strides = [1, 1]} : vector<2x384xf32> to vector<2x128xf32>
    %393 = vector.broadcast %4 : vector<1x128xf32> to vector<2x128xf32>
    %394 = arith.addf %392, %393 : vector<2x128xf32>
    %395 = arith.mulf %382, %394 : vector<2x128xf32>
    %396 = arith.addf %391, %395 : vector<2x128xf32>
    %397 = math.tanh %396 : vector<2x128xf32>
    %cst_68 = arith.constant 1.000000e+00 : f32
    %398 = vector.broadcast %cst_68 : f32 to vector<2x128xf32>
    %399 = arith.subf %398, %390 : vector<2x128xf32>
    %400 = arith.mulf %399, %397 : vector<2x128xf32>
    %401 = arith.mulf %390, %371 : vector<2x128xf32>
    %402 = arith.addf %400, %401 : vector<2x128xf32>
    %cst_69 = arith.constant dense<0.000000e+00> : vector<2x384xf32>
    %403 = tpu.matmul %402, %2, %cst_69 {dimension_numbers = #tpu.dot_dimension_numbers<[1], [0], [0], [1], [0, 0, 1, 1], [], []>} : vector<2x128xf32>, vector<128x384xf32>, vector<2x384xf32> -> vector<2x384xf32>
    %404 = vector.extract_strided_slice %277 {offsets = [4, 0, 0], sizes = [1, 2, 384], strides = [1, 1, 1]} : vector<8x2x384xf32> to vector<1x2x384xf32>
    %405 = vector.shape_cast %404 : vector<1x2x384xf32> to vector<2x384xf32>
    %406 = vector.extract_strided_slice %405 {offsets = [0, 0], sizes = [2, 128], strides = [1, 1]} : vector<2x384xf32> to vector<2x128xf32>
    %407 = vector.extract_strided_slice %403 {offsets = [0, 0], sizes = [2, 128], strides = [1, 1]} : vector<2x384xf32> to vector<2x128xf32>
    %408 = arith.addf %406, %407 : vector<2x128xf32>
    %409 = arith.negf %408 : vector<2x128xf32>
    %410 = math.exp %409 : vector<2x128xf32>
    %cst_70 = arith.constant 1.000000e+00 : f32
    %411 = vector.broadcast %cst_70 : f32 to vector<2x128xf32>
    %412 = arith.addf %411, %410 : vector<2x128xf32>
    %413 = arith.divf %411, %412 : vector<2x128xf32>
    %414 = vector.extract_strided_slice %405 {offsets = [0, 128], sizes = [2, 128], strides = [1, 1]} : vector<2x384xf32> to vector<2x128xf32>
    %415 = vector.extract_strided_slice %403 {offsets = [0, 128], sizes = [2, 128], strides = [1, 1]} : vector<2x384xf32> to vector<2x128xf32>
    %416 = arith.addf %414, %415 : vector<2x128xf32>
    %417 = arith.negf %416 : vector<2x128xf32>
    %418 = math.exp %417 : vector<2x128xf32>
    %cst_71 = arith.constant 1.000000e+00 : f32
    %419 = vector.broadcast %cst_71 : f32 to vector<2x128xf32>
    %420 = arith.addf %419, %418 : vector<2x128xf32>
    %421 = arith.divf %419, %420 : vector<2x128xf32>
    %422 = vector.extract_strided_slice %405 {offsets = [0, 256], sizes = [2, 128], strides = [1, 1]} : vector<2x384xf32> to vector<2x128xf32>
    %423 = vector.extract_strided_slice %403 {offsets = [0, 256], sizes = [2, 128], strides = [1, 1]} : vector<2x384xf32> to vector<2x128xf32>
    %424 = vector.broadcast %4 : vector<1x128xf32> to vector<2x128xf32>
    %425 = arith.addf %423, %424 : vector<2x128xf32>
    %426 = arith.mulf %413, %425 : vector<2x128xf32>
    %427 = arith.addf %422, %426 : vector<2x128xf32>
    %428 = math.tanh %427 : vector<2x128xf32>
    %cst_72 = arith.constant 1.000000e+00 : f32
    %429 = vector.broadcast %cst_72 : f32 to vector<2x128xf32>
    %430 = arith.subf %429, %421 : vector<2x128xf32>
    %431 = arith.mulf %430, %428 : vector<2x128xf32>
    %432 = arith.mulf %421, %402 : vector<2x128xf32>
    %433 = arith.addf %431, %432 : vector<2x128xf32>
    %cst_73 = arith.constant dense<0.000000e+00> : vector<2x384xf32>
    %434 = tpu.matmul %433, %2, %cst_73 {dimension_numbers = #tpu.dot_dimension_numbers<[1], [0], [0], [1], [0, 0, 1, 1], [], []>} : vector<2x128xf32>, vector<128x384xf32>, vector<2x384xf32> -> vector<2x384xf32>
    %435 = vector.extract_strided_slice %277 {offsets = [5, 0, 0], sizes = [1, 2, 384], strides = [1, 1, 1]} : vector<8x2x384xf32> to vector<1x2x384xf32>
    %436 = vector.shape_cast %435 : vector<1x2x384xf32> to vector<2x384xf32>
    %437 = vector.extract_strided_slice %436 {offsets = [0, 0], sizes = [2, 128], strides = [1, 1]} : vector<2x384xf32> to vector<2x128xf32>
    %438 = vector.extract_strided_slice %434 {offsets = [0, 0], sizes = [2, 128], strides = [1, 1]} : vector<2x384xf32> to vector<2x128xf32>
    %439 = arith.addf %437, %438 : vector<2x128xf32>
    %440 = arith.negf %439 : vector<2x128xf32>
    %441 = math.exp %440 : vector<2x128xf32>
    %cst_74 = arith.constant 1.000000e+00 : f32
    %442 = vector.broadcast %cst_74 : f32 to vector<2x128xf32>
    %443 = arith.addf %442, %441 : vector<2x128xf32>
    %444 = arith.divf %442, %443 : vector<2x128xf32>
    %445 = vector.extract_strided_slice %436 {offsets = [0, 128], sizes = [2, 128], strides = [1, 1]} : vector<2x384xf32> to vector<2x128xf32>
    %446 = vector.extract_strided_slice %434 {offsets = [0, 128], sizes = [2, 128], strides = [1, 1]} : vector<2x384xf32> to vector<2x128xf32>
    %447 = arith.addf %445, %446 : vector<2x128xf32>
    %448 = arith.negf %447 : vector<2x128xf32>
    %449 = math.exp %448 : vector<2x128xf32>
    %cst_75 = arith.constant 1.000000e+00 : f32
    %450 = vector.broadcast %cst_75 : f32 to vector<2x128xf32>
    %451 = arith.addf %450, %449 : vector<2x128xf32>
    %452 = arith.divf %450, %451 : vector<2x128xf32>
    %453 = vector.extract_strided_slice %436 {offsets = [0, 256], sizes = [2, 128], strides = [1, 1]} : vector<2x384xf32> to vector<2x128xf32>
    %454 = vector.extract_strided_slice %434 {offsets = [0, 256], sizes = [2, 128], strides = [1, 1]} : vector<2x384xf32> to vector<2x128xf32>
    %455 = vector.broadcast %4 : vector<1x128xf32> to vector<2x128xf32>
    %456 = arith.addf %454, %455 : vector<2x128xf32>
    %457 = arith.mulf %444, %456 : vector<2x128xf32>
    %458 = arith.addf %453, %457 : vector<2x128xf32>
    %459 = math.tanh %458 : vector<2x128xf32>
    %cst_76 = arith.constant 1.000000e+00 : f32
    %460 = vector.broadcast %cst_76 : f32 to vector<2x128xf32>
    %461 = arith.subf %460, %452 : vector<2x128xf32>
    %462 = arith.mulf %461, %459 : vector<2x128xf32>
    %463 = arith.mulf %452, %433 : vector<2x128xf32>
    %464 = arith.addf %462, %463 : vector<2x128xf32>
    %cst_77 = arith.constant dense<0.000000e+00> : vector<2x384xf32>
    %465 = tpu.matmul %464, %2, %cst_77 {dimension_numbers = #tpu.dot_dimension_numbers<[1], [0], [0], [1], [0, 0, 1, 1], [], []>} : vector<2x128xf32>, vector<128x384xf32>, vector<2x384xf32> -> vector<2x384xf32>
    %466 = vector.extract_strided_slice %277 {offsets = [6, 0, 0], sizes = [1, 2, 384], strides = [1, 1, 1]} : vector<8x2x384xf32> to vector<1x2x384xf32>
    %467 = vector.shape_cast %466 : vector<1x2x384xf32> to vector<2x384xf32>
    %468 = vector.extract_strided_slice %467 {offsets = [0, 0], sizes = [2, 128], strides = [1, 1]} : vector<2x384xf32> to vector<2x128xf32>
    %469 = vector.extract_strided_slice %465 {offsets = [0, 0], sizes = [2, 128], strides = [1, 1]} : vector<2x384xf32> to vector<2x128xf32>
    %470 = arith.addf %468, %469 : vector<2x128xf32>
    %471 = arith.negf %470 : vector<2x128xf32>
    %472 = math.exp %471 : vector<2x128xf32>
    %cst_78 = arith.constant 1.000000e+00 : f32
    %473 = vector.broadcast %cst_78 : f32 to vector<2x128xf32>
    %474 = arith.addf %473, %472 : vector<2x128xf32>
    %475 = arith.divf %473, %474 : vector<2x128xf32>
    %476 = vector.extract_strided_slice %467 {offsets = [0, 128], sizes = [2, 128], strides = [1, 1]} : vector<2x384xf32> to vector<2x128xf32>
    %477 = vector.extract_strided_slice %465 {offsets = [0, 128], sizes = [2, 128], strides = [1, 1]} : vector<2x384xf32> to vector<2x128xf32>
    %478 = arith.addf %476, %477 : vector<2x128xf32>
    %479 = arith.negf %478 : vector<2x128xf32>
    %480 = math.exp %479 : vector<2x128xf32>
    %cst_79 = arith.constant 1.000000e+00 : f32
    %481 = vector.broadcast %cst_79 : f32 to vector<2x128xf32>
    %482 = arith.addf %481, %480 : vector<2x128xf32>
    %483 = arith.divf %481, %482 : vector<2x128xf32>
    %484 = vector.extract_strided_slice %467 {offsets = [0, 256], sizes = [2, 128], strides = [1, 1]} : vector<2x384xf32> to vector<2x128xf32>
    %485 = vector.extract_strided_slice %465 {offsets = [0, 256], sizes = [2, 128], strides = [1, 1]} : vector<2x384xf32> to vector<2x128xf32>
    %486 = vector.broadcast %4 : vector<1x128xf32> to vector<2x128xf32>
    %487 = arith.addf %485, %486 : vector<2x128xf32>
    %488 = arith.mulf %475, %487 : vector<2x128xf32>
    %489 = arith.addf %484, %488 : vector<2x128xf32>
    %490 = math.tanh %489 : vector<2x128xf32>
    %cst_80 = arith.constant 1.000000e+00 : f32
    %491 = vector.broadcast %cst_80 : f32 to vector<2x128xf32>
    %492 = arith.subf %491, %483 : vector<2x128xf32>
    %493 = arith.mulf %492, %490 : vector<2x128xf32>
    %494 = arith.mulf %483, %464 : vector<2x128xf32>
    %495 = arith.addf %493, %494 : vector<2x128xf32>
    %cst_81 = arith.constant dense<0.000000e+00> : vector<2x384xf32>
    %496 = tpu.matmul %495, %2, %cst_81 {dimension_numbers = #tpu.dot_dimension_numbers<[1], [0], [0], [1], [0, 0, 1, 1], [], []>} : vector<2x128xf32>, vector<128x384xf32>, vector<2x384xf32> -> vector<2x384xf32>
    %497 = vector.extract_strided_slice %277 {offsets = [7, 0, 0], sizes = [1, 2, 384], strides = [1, 1, 1]} : vector<8x2x384xf32> to vector<1x2x384xf32>
    %498 = vector.shape_cast %497 : vector<1x2x384xf32> to vector<2x384xf32>
    %499 = vector.extract_strided_slice %498 {offsets = [0, 0], sizes = [2, 128], strides = [1, 1]} : vector<2x384xf32> to vector<2x128xf32>
    %500 = vector.extract_strided_slice %496 {offsets = [0, 0], sizes = [2, 128], strides = [1, 1]} : vector<2x384xf32> to vector<2x128xf32>
    %501 = arith.addf %499, %500 : vector<2x128xf32>
    %502 = arith.negf %501 : vector<2x128xf32>
    %503 = math.exp %502 : vector<2x128xf32>
    %cst_82 = arith.constant 1.000000e+00 : f32
    %504 = vector.broadcast %cst_82 : f32 to vector<2x128xf32>
    %505 = arith.addf %504, %503 : vector<2x128xf32>
    %506 = arith.divf %504, %505 : vector<2x128xf32>
    %507 = vector.extract_strided_slice %498 {offsets = [0, 128], sizes = [2, 128], strides = [1, 1]} : vector<2x384xf32> to vector<2x128xf32>
    %508 = vector.extract_strided_slice %496 {offsets = [0, 128], sizes = [2, 128], strides = [1, 1]} : vector<2x384xf32> to vector<2x128xf32>
    %509 = arith.addf %507, %508 : vector<2x128xf32>
    %510 = arith.negf %509 : vector<2x128xf32>
    %511 = math.exp %510 : vector<2x128xf32>
    %cst_83 = arith.constant 1.000000e+00 : f32
    %512 = vector.broadcast %cst_83 : f32 to vector<2x128xf32>
    %513 = arith.addf %512, %511 : vector<2x128xf32>
    %514 = arith.divf %512, %513 : vector<2x128xf32>
    %515 = vector.extract_strided_slice %498 {offsets = [0, 256], sizes = [2, 128], strides = [1, 1]} : vector<2x384xf32> to vector<2x128xf32>
    %516 = vector.extract_strided_slice %496 {offsets = [0, 256], sizes = [2, 128], strides = [1, 1]} : vector<2x384xf32> to vector<2x128xf32>
    %517 = vector.broadcast %4 : vector<1x128xf32> to vector<2x128xf32>
    %518 = arith.addf %516, %517 : vector<2x128xf32>
    %519 = arith.mulf %506, %518 : vector<2x128xf32>
    %520 = arith.addf %515, %519 : vector<2x128xf32>
    %521 = math.tanh %520 : vector<2x128xf32>
    %cst_84 = arith.constant 1.000000e+00 : f32
    %522 = vector.broadcast %cst_84 : f32 to vector<2x128xf32>
    %523 = arith.subf %522, %514 : vector<2x128xf32>
    %524 = arith.mulf %523, %521 : vector<2x128xf32>
    %525 = arith.mulf %514, %495 : vector<2x128xf32>
    %526 = arith.addf %524, %525 : vector<2x128xf32>
    %c0_85 = arith.constant 0 : index
    %c0_86 = arith.constant 0 : index
    %527 = vector.load %arg9[%c0_85, %c0_86] : memref<1x128xf32, #tpu.memory_space<vmem>>, vector<1x128xf32>
    %528 = vector.broadcast %527 : vector<1x128xf32> to vector<2x128xf32>
    %529 = arith.mulf %526, %528 : vector<2x128xf32>
    %cst_87 = arith.constant dense<0.000000e+00> : vector<2xf32>
    %530 = vector.multi_reduction <add>, %529, %cst_87 [1] : vector<2x128xf32> to vector<2xf32>
    %531 = vector.shape_cast %530 : vector<2xf32> to vector<2x1xf32>
    %c0_88 = arith.constant 0 : index
    %c0_89 = arith.constant 0 : index
    %532 = vector.load %arg10[%c0_88, %c0_89] : memref<1x1xf32, #tpu.memory_space<vmem>>, vector<1x1xf32>
    %533 = vector.broadcast %532 : vector<1x1xf32> to vector<2x1xf32>
    %534 = arith.addf %531, %533 : vector<2x1xf32>
    %c0_90 = arith.constant 0 : index
    %c0_91 = arith.constant 0 : index
    %535 = vector.load %arg11[%c0_90, %c0_91] : memref<2x1xf32, #tpu.memory_space<vmem>>, vector<2x1xf32>
    tpu.vector_store %arg11[%c0_90, %c0_91], %534 {strides = array<i32>} : memref<2x1xf32, #tpu.memory_space<vmem>>, vector<2x1xf32>,
    return
  }
}

</mosaic_0001>

<llo_original>
// kernel: gru_model_forward.1
$region0: #{gru_model_forward.1}
  #allocation0 [shape = 'u32[]', space=smem, size = 0x4, offset = 0x4, fixed_abs, tag = 'smem constant byte address 0x4 - core index']
  #allocation1 [shape = 'u32[72,128]{1,0:T(1,128)}', space=vmem, size = 0x9000, scoped, tag = 'internal scratch']
  #allocation2 [shape = 'f32[1,1]{1,0:T(1,128)S(1)}', space=vmem, size = 0x200, scoped, tag = 'scoped memory for gru_model_forward.1']
  %s0 = inlined_call_operand.hbm [shape: f32[2,8,8], index: 0, kind: input, shape index: {}]
  %s1 = inlined_call_operand.hbm [shape: f32[8,384], index: 1, kind: input, shape index: {}]
  %s2 = inlined_call_operand.hbm [shape: f32[128,384], index: 2, kind: input, shape index: {}]
  %s3 = inlined_call_operand.vmem [shape: f32[1,384], index: 3, kind: input, shape index: {}]
  %s4 = inlined_call_operand.vmem [shape: f32[1,128], index: 4, kind: input, shape index: {}]
  %s5 = inlined_call_operand.hbm [shape: f32[128,384], index: 5, kind: input, shape index: {}]
  %s6 = inlined_call_operand.hbm [shape: f32[128,384], index: 6, kind: input, shape index: {}]
  %s7 = inlined_call_operand.hbm [shape: f32[1,384], index: 7, kind: input, shape index: {}]
  %s8 = inlined_call_operand.hbm [shape: f32[1,128], index: 8, kind: input, shape index: {}]
  %s9 = inlined_call_operand.vmem [shape: f32[1,128], index: 9, kind: input, shape index: {}]
  %s10 = inlined_call_operand.<no memory space> [shape: f32[1,1], index: 10, kind: input, shape index: {}]
  %s11 = inlined_call_operand.vmem [shape: f32[2,1], index: 11, kind: output, shape index: {}]
  %s12 = sld [smem:[#allocation0]]
  $region82: #{gru_model_forward.1} parent=0
    _
  %s14 = ssub.s32 1, %s12
  %s15 = scalar_select 0, %s14, %s12
  %v16 = vstv %s10
  %17 = vst [vmem:[#allocation2] sm:$0x1] %v16
  $region1: #{gru_model_forward.1} parent=0
    #allocation3 [shape = 'u8[8192]{0}', space=vmem, size = 0x2000, scoped, tag = 'input window, operand 0, single buffered']
    #allocation4 [shape = 's32[1]{0}', space=sflag, size = 0x4, scoped, tag = 'scoped memory for gru_model_forward.1']
    #allocation5 [shape = 'u8[12288]{0}', space=vmem, size = 0x3000, scoped, tag = 'input window, operand 1, single buffered']
    #allocation6 [shape = 's32[1]{0}', space=sflag, size = 0x4, scoped, tag = 'scoped memory for gru_model_forward.1']
    #allocation7 [shape = 'u8[196608]{0}', space=vmem, size = 0x30000, scoped, tag = 'input window, operand 2, single buffered']
    #allocation8 [shape = 'u8[196608]{0}', space=vmem, size = 0x30000, scoped, tag = 'input window, operand 5, single buffered']
    #allocation9 [shape = 's32[1]{0}', space=sflag, size = 0x4, scoped, tag = 'scoped memory for gru_model_forward.1']
    #allocation10 [shape = 'u8[196608]{0}', space=vmem, size = 0x30000, scoped, tag = 'input window, operand 6, single buffered']
    #allocation11 [shape = 'u8[1536]{0}', space=vmem, size = 0x800, scoped, tag = 'input window, operand 7, single buffered']
    #allocation12 [shape = 's32[1]{0}', space=sflag, size = 0x4, scoped, tag = 'scoped memory for gru_model_forward.1']
    #allocation13 [shape = 'u8[512]{0}', space=vmem, size = 0x400, scoped, tag = 'input window, operand 8, single buffered']
    %18 = vsyncpa [#allocation4], 0
    %19 = vsyncpa [#allocation6], 0
    %20 = vsyncpa [#allocation9], 0
    %21 = vsyncpa [#allocation12], 0
    // Predicated region
    $region2: #{gru_model_forward.1} parent=1 // pred_check
      _
    $region3: #{gru_model_forward.1} parent=1 // pred_check_branch
      %23 = sbr.rel (0) target = $region5
    $region4: #{gru_model_forward.1} parent=1 // pred_region
      %25 = vsyncadd [#allocation4], 0
      %s26 = sshll.u32 %s0, 4
      %s27 = int_to_ptr.hbm [resolvable:$true] %s26
      %s28 = sshll.u32 [#allocation3], 4
      %s29 = int_to_ptr.vmem [resolvable:$true] %s28
      %34 = dma.hbm_to_vmem [thread:$0]  %s27, 256, %s29, [#allocation4], 128, 128, 8
    $region5: #{gru_model_forward.1} parent=1 // pred_fallthru
      _
    // Predicated region
    $region6: #{gru_model_forward.1} parent=1 // pred_check
      _
    $region7: #{gru_model_forward.1} parent=1 // pred_check_branch
      %36 = sbr.rel (0) target = $region9
    $region8: #{gru_model_forward.1} parent=1 // pred_region
      %38 = vsyncadd [#allocation6], 0
      %s40 = sshll.u32 %s1, 4
      %s41 = int_to_ptr.hbm [resolvable:$true] %s40
      %s42 = sshll.u32 [#allocation5], 4
      %s43 = int_to_ptr.vmem [resolvable:$true] %s42
      %45 = dma.hbm_to_vmem [thread:$0]  %s41, 384, %s43, [#allocation6]
    $region9: #{gru_model_forward.1} parent=1 // pred_fallthru
      _
    // Predicated region
    $region10: #{gru_model_forward.1} parent=1 // pred_check
      _
    $region11: #{gru_model_forward.1} parent=1 // pred_check_branch
      %47 = sbr.rel (0) target = $region13
    $region12: #{gru_model_forward.1} parent=1 // pred_region
      %49 = vsyncadd [#allocation6], 0
      %s50 = sshll.u32 %s2, 4
      %s51 = int_to_ptr.hbm [resolvable:$true] %s50
      %s52 = sshll.u32 [#allocation7], 4
      %s53 = int_to_ptr.vmem [resolvable:$true] %s52
      %58 = dma.hbm_to_vmem [thread:$0]  %s51, 6144, %s53, [#allocation6], 384, 384, 24
    $region13: #{gru_model_forward.1} parent=1 // pred_fallthru
      _
    // Predicated region
    $region14: #{gru_model_forward.1} parent=1 // pred_check
      _
    $region15: #{gru_model_forward.1} parent=1 // pred_check_branch
      %60 = sbr.rel (0) target = $region17
    $region16: #{gru_model_forward.1} parent=1 // pred_region
      _
    $region17: #{gru_model_forward.1} parent=1 // pred_fallthru
      _
    // Predicated region
    $region18: #{gru_model_forward.1} parent=1 // pred_check
      _
    $region19: #{gru_model_forward.1} parent=1 // pred_check_branch
      %62 = sbr.rel (0) target = $region21
    $region20: #{gru_model_forward.1} parent=1 // pred_region
      _
    $region21: #{gru_model_forward.1} parent=1 // pred_fallthru
      _
    // Predicated region
    $region22: #{gru_model_forward.1} parent=1 // pred_check
      _
    $region23: #{gru_model_forward.1} parent=1 // pred_check_branch
      %64 = sbr.rel (0) target = $region25
    $region24: #{gru_model_forward.1} parent=1 // pred_region
      %66 = vsyncadd [#allocation9], 0
      %s67 = sshll.u32 %s5, 4
      %s68 = int_to_ptr.hbm [resolvable:$true] %s67
      %s69 = sshll.u32 [#allocation8], 4
      %s70 = int_to_ptr.vmem [resolvable:$true] %s69
      %75 = dma.hbm_to_vmem [thread:$0]  %s68, 6144, %s70, [#allocation9], 384, 384, 24
    $region25: #{gru_model_forward.1} parent=1 // pred_fallthru
      _
    // Predicated region
    $region26: #{gru_model_forward.1} parent=1 // pred_check
      _
    $region27: #{gru_model_forward.1} parent=1 // pred_check_branch
      %77 = sbr.rel (0) target = $region29
    $region28: #{gru_model_forward.1} parent=1 // pred_region
      %79 = vsyncadd [#allocation9], 0
      %s80 = sshll.u32 %s6, 4
      %s81 = int_to_ptr.hbm [resolvable:$true] %s80
      %s82 = sshll.u32 [#allocation10], 4
      %s83 = int_to_ptr.vmem [resolvable:$true] %s82
      %88 = dma.hbm_to_vmem [thread:$0]  %s81, 6144, %s83, [#allocation9], 384, 384, 24
    $region29: #{gru_model_forward.1} parent=1 // pred_fallthru
      _
    // Predicated region
    $region30: #{gru_model_forward.1} parent=1 // pred_check
      _
    $region31: #{gru_model_forward.1} parent=1 // pred_check_branch
      %90 = sbr.rel (0) target = $region33
    $region32: #{gru_model_forward.1} parent=1 // pred_region
      %92 = vsyncadd [#allocation12], 0
      %s94 = sshll.u32 %s7, 4
      %s95 = int_to_ptr.hbm [resolvable:$true] %s94
      %s96 = sshll.u32 [#allocation11], 4
      %s97 = int_to_ptr.vmem [resolvable:$true] %s96
      %99 = dma.hbm_to_vmem [thread:$0]  %s95, 48, %s97, [#allocation12]
    $region33: #{gru_model_forward.1} parent=1 // pred_fallthru
      _
    // Predicated region
    $region34: #{gru_model_forward.1} parent=1 // pred_check
      _
    $region35: #{gru_model_forward.1} parent=1 // pred_check_branch
      %101 = sbr.rel (0) target = $region37
    $region36: #{gru_model_forward.1} parent=1 // pred_region
      %103 = vsyncadd [#allocation12], 0
      %s105 = sshll.u32 %s8, 4
      %s106 = int_to_ptr.hbm [resolvable:$true] %s105
      %s107 = sshll.u32 [#allocation13], 4
      %s108 = int_to_ptr.vmem [resolvable:$true] %s107
      %110 = dma.hbm_to_vmem [thread:$0]  %s106, 16, %s108, [#allocation12]
    $region37: #{gru_model_forward.1} parent=1 // pred_fallthru
      _
    // Predicated region
    $region38: #{gru_model_forward.1} parent=1 // pred_check
      _
    $region39: #{gru_model_forward.1} parent=1 // pred_check_branch
      %112 = sbr.rel (0) target = $region41
    $region40: #{gru_model_forward.1} parent=1 // pred_region
      _
    $region41: #{gru_model_forward.1} parent=1 // pred_fallthru
      _
    // Predicated region
    $region42: #{gru_model_forward.1} parent=1 // pred_check
      _
    $region43: #{gru_model_forward.1} parent=1 // pred_check_branch
      %114 = sbr.rel (0) target = $region45
    $region44: #{gru_model_forward.1} parent=1 // pred_region
      _
    $region45: #{gru_model_forward.1} parent=1 // pred_fallthru
      _
    // Predicated region
    $region46: #{gru_model_forward.1} parent=1 // pred_check
      _
    $region47: #{gru_model_forward.1} parent=1 // pred_check_branch
      %116 = sbr.rel (0) target = $region49
    $region48: #{gru_model_forward.1} parent=1 // pred_region
      %118 = dma.done [#allocation4], 256
    $region49: #{gru_model_forward.1} parent=1 // pred_fallthru
      _
    // Predicated region
    $region50: #{gru_model_forward.1} parent=1 // pred_check
      _
    $region51: #{gru_model_forward.1} parent=1 // pred_check_branch
      %120 = sbr.rel (0) target = $region53
    $region52: #{gru_model_forward.1} parent=1 // pred_region
      %122 = dma.done [#allocation6], 384
    $region53: #{gru_model_forward.1} parent=1 // pred_fallthru
      _
    // Predicated region
    $region54: #{gru_model_forward.1} parent=1 // pred_check
      _
    $region55: #{gru_model_forward.1} parent=1 // pred_check_branch
      %124 = sbr.rel (0) target = $region57
    $region56: #{gru_model_forward.1} parent=1 // pred_region
      %126 = dma.done [#allocation6], 6144
    $region57: #{gru_model_forward.1} parent=1 // pred_fallthru
      _
    // Predicated region
    $region58: #{gru_model_forward.1} parent=1 // pred_check
      _
    $region59: #{gru_model_forward.1} parent=1 // pred_check_branch
      %128 = sbr.rel (0) target = $region61
    $region60: #{gru_model_forward.1} parent=1 // pred_region
      %130 = dma.done [#allocation9], 6144
    $region61: #{gru_model_forward.1} parent=1 // pred_fallthru
      _
    // Predicated region
    $region62: #{gru_model_forward.1} parent=1 // pred_check
      _
    $region63: #{gru_model_forward.1} parent=1 // pred_check_branch
      %132 = sbr.rel (0) target = $region65
    $region64: #{gru_model_forward.1} parent=1 // pred_region
      %134 = dma.done [#allocation9], 6144
    $region65: #{gru_model_forward.1} parent=1 // pred_fallthru
      _
    // Predicated region
    $region66: #{gru_model_forward.1} parent=1 // pred_check
      _
    $region67: #{gru_model_forward.1} parent=1 // pred_check_branch
      %136 = sbr.rel (0) target = $region69
    $region68: #{gru_model_forward.1} parent=1 // pred_region
      %138 = dma.done [#allocation12], 48
    $region69: #{gru_model_forward.1} parent=1 // pred_fallthru
      _
    // Predicated region
    $region70: #{gru_model_forward.1} parent=1 // pred_check
      _
    $region71: #{gru_model_forward.1} parent=1 // pred_check_branch
      %140 = sbr.rel (0) target = $region73
    $region72: #{gru_model_forward.1} parent=1 // pred_region
      %142 = dma.done [#allocation12], 16
    $region73: #{gru_model_forward.1} parent=1 // pred_fallthru
      _
    %v143 = vld [vmem:[#allocation7] sm:$0xff]
    %v144 = vld [vmem:[#allocation7 + $0x8] sm:$0xff]
    %v145 = vld [vmem:[#allocation7 + $0x10] sm:$0xff]
    %v146 = vld [vmem:[#allocation7 + $0x18] sm:$0xff]
    %v147 = vld [vmem:[#allocation7 + $0x20] sm:$0xff]
    %v148 = vld [vmem:[#allocation7 + $0x28] sm:$0xff]
    %v149 = vld [vmem:[#allocation7 + $0x30] sm:$0xff]
    %v150 = vld [vmem:[#allocation7 + $0x38] sm:$0xff]
    %v151 = vld [vmem:[#allocation7 + $0x40] sm:$0xff]
    %v152 = vld [vmem:[#allocation7 + $0x48] sm:$0xff]
    %v153 = vld [vmem:[#allocation7 + $0x50] sm:$0xff]
    %v154 = vld [vmem:[#allocation7 + $0x58] sm:$0xff]
    %v155 = vld [vmem:[#allocation7 + $0x60] sm:$0xff]
    %v156 = vld [vmem:[#allocation7 + $0x68] sm:$0xff]
    %v157 = vld [vmem:[#allocation7 + $0x70] sm:$0xff]
    %v158 = vld [vmem:[#allocation7 + $0x78] sm:$0xff]
    %v159 = vld [vmem:[#allocation7 + $0x80] sm:$0xff]
    %v160 = vld [vmem:[#allocation7 + $0x88] sm:$0xff]
    %v161 = vld [vmem:[#allocation7 + $0x90] sm:$0xff]
    %v162 = vld [vmem:[#allocation7 + $0x98] sm:$0xff]
    %v163 = vld [vmem:[#allocation7 + $0xa0] sm:$0xff]
    %v164 = vld [vmem:[#allocation7 + $0xa8] sm:$0xff]
    %v165 = vld [vmem:[#allocation7 + $0xb0] sm:$0xff]
    %v166 = vld [vmem:[#allocation7 + $0xb8] sm:$0xff]
    %v167 = vld [vmem:[#allocation7 + $0xc0] sm:$0xff]
    %v168 = vld [vmem:[#allocation7 + $0xc8] sm:$0xff]
    %v169 = vld [vmem:[#allocation7 + $0xd0] sm:$0xff]
    %v170 = vld [vmem:[#allocation7 + $0xd8] sm:$0xff]
    %v171 = vld [vmem:[#allocation7 + $0xe0] sm:$0xff]
    %v172 = vld [vmem:[#allocation7 + $0xe8] sm:$0xff]
    %v173 = vld [vmem:[#allocation7 + $0xf0] sm:$0xff]
    %v174 = vld [vmem:[#allocation7 + $0xf8] sm:$0xff]
    %v175 = vld [vmem:[#allocation7 + $0x100] sm:$0xff]
    %v176 = vld [vmem:[#allocation7 + $0x108] sm:$0xff]
    %v177 = vld [vmem:[#allocation7 + $0x110] sm:$0xff]
    %v178 = vld [vmem:[#allocation7 + $0x118] sm:$0xff]
    %v179 = vld [vmem:[#allocation7 + $0x120] sm:$0xff]
    %v180 = vld [vmem:[#allocation7 + $0x128] sm:$0xff]
    %v181 = vld [vmem:[#allocation7 + $0x130] sm:$0xff]
    %v182 = vld [vmem:[#allocation7 + $0x138] sm:$0xff]
    %v183 = vld [vmem:[#allocation7 + $0x140] sm:$0xff]
    %v184 = vld [vmem:[#allocation7 + $0x148] sm:$0xff]
    %v185 = vld [vmem:[#allocation7 + $0x150] sm:$0xff]
    %v186 = vld [vmem:[#allocation7 + $0x158] sm:$0xff]
    %v187 = vld [vmem:[#allocation7 + $0x160] sm:$0xff]
    %v188 = vld [vmem:[#allocation7 + $0x168] sm:$0xff]
    %v189 = vld [vmem:[#allocation7 + $0x170] sm:$0xff]
    %v190 = vld [vmem:[#allocation7 + $0x178] sm:$0xff]
    %v191 = vld [vmem:[#allocation8] sm:$0xff]
    %v192 = vld [vmem:[#allocation8 + $0x8] sm:$0xff]
    %v193 = vld [vmem:[#allocation8 + $0x10] sm:$0xff]
    %v194 = vld [vmem:[#allocation8 + $0x18] sm:$0xff]
    %v195 = vld [vmem:[#allocation8 + $0x20] sm:$0xff]
    %v196 = vld [vmem:[#allocation8 + $0x28] sm:$0xff]
    %v197 = vld [vmem:[#allocation8 + $0x30] sm:$0xff]
    %v198 = vld [vmem:[#allocation8 + $0x38] sm:$0xff]
    %v199 = vld [vmem:[#allocation8 + $0x40] sm:$0xff]
    %v200 = vld [vmem:[#allocation8 + $0x48] sm:$0xff]
    %v201 = vld [vmem:[#allocation8 + $0x50] sm:$0xff]
    %v202 = vld [vmem:[#allocation8 + $0x58] sm:$0xff]
    %v203 = vld [vmem:[#allocation8 + $0x60] sm:$0xff]
    %v204 = vld [vmem:[#allocation8 + $0x68] sm:$0xff]
    %v205 = vld [vmem:[#allocation8 + $0x70] sm:$0xff]
    %v206 = vld [vmem:[#allocation8 + $0x78] sm:$0xff]
    %v207 = vld [vmem:[#allocation8 + $0x80] sm:$0xff]
    %v208 = vld [vmem:[#allocation8 + $0x88] sm:$0xff]
    %v209 = vld [vmem:[#allocation8 + $0x90] sm:$0xff]
    %v210 = vld [vmem:[#allocation8 + $0x98] sm:$0xff]
    %v211 = vld [vmem:[#allocation8 + $0xa0] sm:$0xff]
    %v212 = vld [vmem:[#allocation8 + $0xa8] sm:$0xff]
    %v213 = vld [vmem:[#allocation8 + $0xb0] sm:$0xff]
    %v214 = vld [vmem:[#allocation8 + $0xb8] sm:$0xff]
    %v215 = vld [vmem:[#allocation8 + $0xc0] sm:$0xff]
    %v216 = vld [vmem:[#allocation8 + $0xc8] sm:$0xff]
    %v217 = vld [vmem:[#allocation8 + $0xd0] sm:$0xff]
    %v218 = vld [vmem:[#allocation8 + $0xd8] sm:$0xff]
    %v219 = vld [vmem:[#allocation8 + $0xe0] sm:$0xff]
    %v220 = vld [vmem:[#allocation8 + $0xe8] sm:$0xff]
    %v221 = vld [vmem:[#allocation8 + $0xf0] sm:$0xff]
    %v222 = vld [vmem:[#allocation8 + $0xf8] sm:$0xff]
    %v223 = vld [vmem:[#allocation8 + $0x100] sm:$0xff]
    %v224 = vld [vmem:[#allocation8 + $0x108] sm:$0xff]
    %v225 = vld [vmem:[#allocation8 + $0x110] sm:$0xff]
    %v226 = vld [vmem:[#allocation8 + $0x118] sm:$0xff]
    %v227 = vld [vmem:[#allocation8 + $0x120] sm:$0xff]
    %v228 = vld [vmem:[#allocation8 + $0x128] sm:$0xff]
    %v229 = vld [vmem:[#allocation8 + $0x130] sm:$0xff]
    %v230 = vld [vmem:[#allocation8 + $0x138] sm:$0xff]
    %v231 = vld [vmem:[#allocation8 + $0x140] sm:$0xff]
    %v232 = vld [vmem:[#allocation8 + $0x148] sm:$0xff]
    %v233 = vld [vmem:[#allocation8 + $0x150] sm:$0xff]
    %v234 = vld [vmem:[#allocation8 + $0x158] sm:$0xff]
    %v235 = vld [vmem:[#allocation8 + $0x160] sm:$0xff]
    %v236 = vld [vmem:[#allocation8 + $0x168] sm:$0xff]
    %v237 = vld [vmem:[#allocation8 + $0x170] sm:$0xff]
    %v238 = vld [vmem:[#allocation8 + $0x178] sm:$0xff]
    %v239 = vld [vmem:[#allocation10] sm:$0xff]
    %v240 = vld [vmem:[#allocation10 + $0x8] sm:$0xff]
    %v241 = vld [vmem:[#allocation10 + $0x10] sm:$0xff]
    %v242 = vld [vmem:[#allocation10 + $0x18] sm:$0xff]
    %v243 = vld [vmem:[#allocation10 + $0x20] sm:$0xff]
    %v244 = vld [vmem:[#allocation10 + $0x28] sm:$0xff]
    %v245 = vld [vmem:[#allocation10 + $0x30] sm:$0xff]
    %v246 = vld [vmem:[#allocation10 + $0x38] sm:$0xff]
    %v247 = vld [vmem:[#allocation10 + $0x40] sm:$0xff]
    %v248 = vld [vmem:[#allocation10 + $0x48] sm:$0xff]
    %v249 = vld [vmem:[#allocation10 + $0x50] sm:$0xff]
    %v250 = vld [vmem:[#allocation10 + $0x58] sm:$0xff]
    %v251 = vld [vmem:[#allocation10 + $0x60] sm:$0xff]
    %v252 = vld [vmem:[#allocation10 + $0x68] sm:$0xff]
    %v253 = vld [vmem:[#allocation10 + $0x70] sm:$0xff]
    %v254 = vld [vmem:[#allocation10 + $0x78] sm:$0xff]
    %v255 = vld [vmem:[#allocation10 + $0x80] sm:$0xff]
    %v256 = vld [vmem:[#allocation10 + $0x88] sm:$0xff]
    %v257 = vld [vmem:[#allocation10 + $0x90] sm:$0xff]
    %v258 = vld [vmem:[#allocation10 + $0x98] sm:$0xff]
    %v259 = vld [vmem:[#allocation10 + $0xa0] sm:$0xff]
    %v260 = vld [vmem:[#allocation10 + $0xa8] sm:$0xff]
    %v261 = vld [vmem:[#allocation10 + $0xb0] sm:$0xff]
    %v262 = vld [vmem:[#allocation10 + $0xb8] sm:$0xff]
    %v263 = vld [vmem:[#allocation10 + $0xc0] sm:$0xff]
    %v264 = vld [vmem:[#allocation10 + $0xc8] sm:$0xff]
    %v265 = vld [vmem:[#allocation10 + $0xd0] sm:$0xff]
    %v266 = vld [vmem:[#allocation10 + $0xd8] sm:$0xff]
    %v267 = vld [vmem:[#allocation10 + $0xe0] sm:$0xff]
    %v268 = vld [vmem:[#allocation10 + $0xe8] sm:$0xff]
    %v269 = vld [vmem:[#allocation10 + $0xf0] sm:$0xff]
    %v270 = vld [vmem:[#allocation10 + $0xf8] sm:$0xff]
    %v271 = vld [vmem:[#allocation10 + $0x100] sm:$0xff]
    %v272 = vld [vmem:[#allocation10 + $0x108] sm:$0xff]
    %v273 = vld [vmem:[#allocation10 + $0x110] sm:$0xff]
    %v274 = vld [vmem:[#allocation10 + $0x118] sm:$0xff]
    %v275 = vld [vmem:[#allocation10 + $0x120] sm:$0xff]
    %v276 = vld [vmem:[#allocation10 + $0x128] sm:$0xff]
    %v277 = vld [vmem:[#allocation10 + $0x130] sm:$0xff]
    %v278 = vld [vmem:[#allocation10 + $0x138] sm:$0xff]
    %v279 = vld [vmem:[#allocation10 + $0x140] sm:$0xff]
    %v280 = vld [vmem:[#allocation10 + $0x148] sm:$0xff]
    %v281 = vld [vmem:[#allocation10 + $0x150] sm:$0xff]
    %v282 = vld [vmem:[#allocation10 + $0x158] sm:$0xff]
    %v283 = vld [vmem:[#allocation10 + $0x160] sm:$0xff]
    %v284 = vld [vmem:[#allocation10 + $0x168] sm:$0xff]
    %v285 = vld [vmem:[#allocation10 + $0x170] sm:$0xff]
    %v286 = vld [vmem:[#allocation10 + $0x178] sm:$0xff]
    %v287 = vld [vmem:[%s4] sm:$0x1]
    %v288 = vld [vmem:[#allocation13] sm:$0x1]
    %v289 = vld [vmem:[#allocation3] sm:$0xff]
    %v290 = vld [vmem:[#allocation3 + $0x8] sm:$0xff]
    %v291 = vld [vmem:[#allocation5] sm:$0xff]
    %v292 = vld [vmem:[#allocation5 + $0x8] sm:$0xff]
    %v293 = vld [vmem:[#allocation5 + $0x10] sm:$0xff]
    %v294 = vld [vmem:[%s3] sm:$0x7]
    %v296 = vperm.slane %v294, 0
    %v297 = vperm.slane %v294, 1
    %v298 = vperm.slane %v294, 2
    %vm302 = vcmask 64512
    %v304 = vsel %vm302, %v289, 0
    %v307 = vsel %vm302, %v290, 0
    %309 = vmatpush.msra.mxu0 0.0
    %310 = vmatpush.msra.mxu0 0.0
    %311 = vmatpush.msra.mxu0 0.0
    %312 = vmatpush.msra.mxu0 0.0
    %313 = vmatpush.msra.mxu0 0.0
    %314 = vmatpush.msra.mxu0 0.0
    %315 = vmatpush.msra.mxu0 0.0
    %316 = vmatpush.msra.mxu0 0.0
    %317 = vmatpush.msra.mxu0 0.0
    %318 = vmatpush.msra.mxu0 0.0
    %319 = vmatpush.msra.mxu0 0.0
    %320 = vmatpush.msra.mxu0 0.0
    %321 = vmatpush.msra.mxu0 0.0
    %322 = vmatpush.msra.mxu0 0.0
    %323 = vmatpush.msra.mxu0 0.0
    %324 = vmatpush.msra.mxu0 %v291
    %325 = vmatmul.f32.gmra.mxu0 %v304
    %v326 = vpop.f32.mrf.mxu0
    %v327 = vadd.f32 %v296, %v326
    %328 = vmatmul.f32.gmra.mxu0 %v307
    %v329 = vpop.f32.mrf.mxu0
    %v330 = vadd.f32 %v296, %v329
    %331 = vdwg.mxu0
    %332 = vmatpush.msra.mxu0 0.0
    %333 = vmatpush.msra.mxu0 0.0
    %334 = vmatpush.msra.mxu0 0.0
    %335 = vmatpush.msra.mxu0 0.0
    %336 = vmatpush.msra.mxu0 0.0
    %337 = vmatpush.msra.mxu0 0.0
    %338 = vmatpush.msra.mxu0 0.0
    %339 = vmatpush.msra.mxu0 0.0
    %340 = vmatpush.msra.mxu0 0.0
    %341 = vmatpush.msra.mxu0 0.0
    %342 = vmatpush.msra.mxu0 0.0
    %343 = vmatpush.msra.mxu0 0.0
    %344 = vmatpush.msra.mxu0 0.0
    %345 = vmatpush.msra.mxu0 0.0
    %346 = vmatpush.msra.mxu0 0.0
    %347 = vmatpush.msra.mxu0 %v292
    %348 = vmatmul.f32.gmra.mxu0 %v304
    %v349 = vpop.f32.mrf.mxu0
    %v350 = vadd.f32 %v297, %v349
    %351 = vmatmul.f32.gmra.mxu0 %v307
    %v352 = vpop.f32.mrf.mxu0
    %v353 = vadd.f32 %v297, %v352
    %354 = vdwg.mxu0
    %355 = vmatpush.msra.mxu0 0.0
    %356 = vmatpush.msra.mxu0 0.0
    %357 = vmatpush.msra.mxu0 0.0
    %358 = vmatpush.msra.mxu0 0.0
    %359 = vmatpush.msra.mxu0 0.0
    %360 = vmatpush.msra.mxu0 0.0
    %361 = vmatpush.msra.mxu0 0.0
    %362 = vmatpush.msra.mxu0 0.0
    %363 = vmatpush.msra.mxu0 0.0
    %364 = vmatpush.msra.mxu0 0.0
    %365 = vmatpush.msra.mxu0 0.0
    %366 = vmatpush.msra.mxu0 0.0
    %367 = vmatpush.msra.mxu0 0.0
    %368 = vmatpush.msra.mxu0 0.0
    %369 = vmatpush.msra.mxu0 0.0
    %370 = vmatpush.msra.mxu0 %v293
    %371 = vmatmul.f32.gmra.mxu0 %v304
    %v372 = vpop.f32.mrf.mxu0
    %v373 = vadd.f32 %v298, %v372
    %374 = vmatmul.f32.gmra.mxu0 %v307
    %v375 = vpop.f32.mrf.mxu0
    %v376 = vadd.f32 %v298, %v375
    %377 = vdwg.mxu0
    %v378 = vrot.slane %v327, 4
    %vm379 = vcmask 1047556
    %v380 = vsel %vm379, 0.0, %v378
    %v382 = vunpack.c.l.s4 1983009808
    %v383 = vunpack.c.0.s8 %v382
    %v384 = vperm.slane %v327, %v383
    %v386 = vunpack.c.l.s4 1983009808
    %v387 = vunpack.c.0.s8 %v386
    %v388 = vperm.slane %v380, %v387
    %v389 = vrot.slane %v330, 4
    %v390 = vsel %vm379, 0.0, %v389
    %v392 = vunpack.c.l.s4 1983009808
    %v393 = vunpack.c.0.s8 %v392
    %v394 = vperm.slane %v330, %v393
    %v396 = vunpack.c.l.s4 1983009808
    %v397 = vunpack.c.0.s8 %v396
    %v398 = vperm.slane %v390, %v397
    %v399 = vrot.slane %v394, 4
    %v400 = vsel %vm379, %v399, %v384
    %v401 = vrot.slane %v384, 4
    %v402 = vsel %vm379, %v394, %v401
    %v404 = vunpack.c.l.s4 1934713408
    %v405 = vunpack.c.0.s8 %v404
    %v406 = vperm.slane %v400, %v405
    %v408 = vunpack.c.l.s4 1934713408
    %v409 = vunpack.c.0.s8 %v408
    %v410 = vperm.slane %v402, %v409
    %v411 = vrot.slane %v398, 4
    %v412 = vsel %vm379, %v411, %v388
    %v413 = vrot.slane %v388, 4
    %v414 = vsel %vm379, %v398, %v413
    %v416 = vunpack.c.l.s4 1934713408
    %v417 = vunpack.c.0.s8 %v416
    %v418 = vperm.slane %v412, %v417
    %v420 = vunpack.c.l.s4 1934713408
    %v421 = vunpack.c.0.s8 %v420
    %v422 = vperm.slane %v414, %v421
    %v423 = vrot.slane %v406, 4
    %v424 = vsel %vm379, 0.0, %v423
    %v425 = vrot.slane %v410, 4
    %v426 = vsel %vm379, 0.0, %v425
    %v427 = vrot.slane %v418, 4
    %v428 = vsel %vm379, 0.0, %v427
    %v429 = vrot.slane %v422, 4
    %v430 = vsel %vm379, 0.0, %v429
    %v431 = vrot.slane %v350, 4
    %v432 = vsel %vm379, 0.0, %v431
    %v434 = vunpack.c.l.s4 1983009808
    %v435 = vunpack.c.0.s8 %v434
    %v436 = vperm.slane %v350, %v435
    %v438 = vunpack.c.l.s4 1983009808
    %v439 = vunpack.c.0.s8 %v438
    %v440 = vperm.slane %v432, %v439
    %v441 = vrot.slane %v353, 4
    %v442 = vsel %vm379, 0.0, %v441
    %v444 = vunpack.c.l.s4 1983009808
    %v445 = vunpack.c.0.s8 %v444
    %v446 = vperm.slane %v353, %v445
    %v448 = vunpack.c.l.s4 1983009808
    %v449 = vunpack.c.0.s8 %v448
    %v450 = vperm.slane %v442, %v449
    %v451 = vrot.slane %v446, 4
    %v452 = vsel %vm379, %v451, %v436
    %v453 = vrot.slane %v436, 4
    %v454 = vsel %vm379, %v446, %v453
    %v456 = vunpack.c.l.s4 1934713408
    %v457 = vunpack.c.0.s8 %v456
    %v458 = vperm.slane %v452, %v457
    %v460 = vunpack.c.l.s4 1934713408
    %v461 = vunpack.c.0.s8 %v460
    %v462 = vperm.slane %v454, %v461
    %v463 = vrot.slane %v450, 4
    %v464 = vsel %vm379, %v463, %v440
    %v465 = vrot.slane %v440, 4
    %v466 = vsel %vm379, %v450, %v465
    %v468 = vunpack.c.l.s4 1934713408
    %v469 = vunpack.c.0.s8 %v468
    %v470 = vperm.slane %v464, %v469
    %v472 = vunpack.c.l.s4 1934713408
    %v473 = vunpack.c.0.s8 %v472
    %v474 = vperm.slane %v466, %v473
    %v475 = vrot.slane %v458, 4
    %v476 = vsel %vm379, 0.0, %v475
    %v477 = vrot.slane %v462, 4
    %v478 = vsel %vm379, 0.0, %v477
    %v479 = vrot.slane %v470, 4
    %v480 = vsel %vm379, 0.0, %v479
    %v481 = vrot.slane %v474, 4
    %v482 = vsel %vm379, 0.0, %v481
    %v483 = vrot.slane %v373, 4
    %v484 = vsel %vm379, 0.0, %v483
    %v486 = vunpack.c.l.s4 1983009808
    %v487 = vunpack.c.0.s8 %v486
    %v488 = vperm.slane %v373, %v487
    %v490 = vunpack.c.l.s4 1983009808
    %v491 = vunpack.c.0.s8 %v490
    %v492 = vperm.slane %v484, %v491
    %v493 = vrot.slane %v376, 4
    %v494 = vsel %vm379, 0.0, %v493
    %v496 = vunpack.c.l.s4 1983009808
    %v497 = vunpack.c.0.s8 %v496
    %v498 = vperm.slane %v376, %v497
    %v500 = vunpack.c.l.s4 1983009808
    %v501 = vunpack.c.0.s8 %v500
    %v502 = vperm.slane %v494, %v501
    %v503 = vrot.slane %v498, 4
    %v504 = vsel %vm379, %v503, %v488
    %v505 = vrot.slane %v488, 4
    %v506 = vsel %vm379, %v498, %v505
    %v508 = vunpack.c.l.s4 1934713408
    %v509 = vunpack.c.0.s8 %v508
    %v510 = vperm.slane %v504, %v509
    %v512 = vunpack.c.l.s4 1934713408
    %v513 = vunpack.c.0.s8 %v512
    %v514 = vperm.slane %v506, %v513
    %v515 = vrot.slane %v502, 4
    %v516 = vsel %vm379, %v515, %v492
    %v517 = vrot.slane %v492, 4
    %v518 = vsel %vm379, %v502, %v517
    %v520 = vunpack.c.l.s4 1934713408
    %v521 = vunpack.c.0.s8 %v520
    %v522 = vperm.slane %v516, %v521
    %v524 = vunpack.c.l.s4 1934713408
    %v525 = vunpack.c.0.s8 %v524
    %v526 = vperm.slane %v518, %v525
    %v527 = vrot.slane %v510, 4
    %v528 = vsel %vm379, 0.0, %v527
    %v529 = vrot.slane %v514, 4
    %v530 = vsel %vm379, 0.0, %v529
    %v531 = vrot.slane %v522, 4
    %v532 = vsel %vm379, 0.0, %v531
    %v533 = vrot.slane %v526, 4
    %v534 = vsel %vm379, 0.0, %v533
    %535 = vmatpush.msra.mxu0 %v188
    %536 = vmatpush.msra.mxu0 %v185
    %537 = vmatpush.msra.mxu0 %v182
    %538 = vmatpush.msra.mxu0 %v179
    %539 = vmatpush.msra.mxu0 %v176
    %540 = vmatpush.msra.mxu0 %v173
    %541 = vmatpush.msra.mxu0 %v170
    %542 = vmatpush.msra.mxu0 %v167
    %543 = vmatpush.msra.mxu0 %v164
    %544 = vmatpush.msra.mxu0 %v161
    %545 = vmatpush.msra.mxu0 %v158
    %546 = vmatpush.msra.mxu0 %v155
    %547 = vmatpush.msra.mxu0 %v152
    %548 = vmatpush.msra.mxu0 %v149
    %549 = vmatpush.msra.mxu0 %v146
    %550 = vmatpush.msra.mxu0 %v143
    %551 = vmatmul.f32.gmra.mxu0 0.0
    %v552 = vpop.f32.mrf.mxu0
    %v553 = vadd.f32 0.0, %v552
    %554 = vdwg.mxu0
    %555 = vmatpush.msra.mxu0 %v189
    %556 = vmatpush.msra.mxu0 %v186
    %557 = vmatpush.msra.mxu0 %v183
    %558 = vmatpush.msra.mxu0 %v180
    %559 = vmatpush.msra.mxu0 %v177
    %560 = vmatpush.msra.mxu0 %v174
    %561 = vmatpush.msra.mxu0 %v171
    %562 = vmatpush.msra.mxu0 %v168
    %563 = vmatpush.msra.mxu0 %v165
    %564 = vmatpush.msra.mxu0 %v162
    %565 = vmatpush.msra.mxu0 %v159
    %566 = vmatpush.msra.mxu0 %v156
    %567 = vmatpush.msra.mxu0 %v153
    %568 = vmatpush.msra.mxu0 %v150
    %569 = vmatpush.msra.mxu0 %v147
    %570 = vmatpush.msra.mxu0 %v144
    %571 = vmatmul.f32.gmra.mxu0 0.0
    %v572 = vpop.f32.mrf.mxu0
    %v573 = vadd.f32 0.0, %v572
    %574 = vdwg.mxu0
    %575 = vmatpush.msra.mxu0 %v190
    %576 = vmatpush.msra.mxu0 %v187
    %577 = vmatpush.msra.mxu0 %v184
    %578 = vmatpush.msra.mxu0 %v181
    %579 = vmatpush.msra.mxu0 %v178
    %580 = vmatpush.msra.mxu0 %v175
    %581 = vmatpush.msra.mxu0 %v172
    %582 = vmatpush.msra.mxu0 %v169
    %583 = vmatpush.msra.mxu0 %v166
    %584 = vmatpush.msra.mxu0 %v163
    %585 = vmatpush.msra.mxu0 %v160
    %586 = vmatpush.msra.mxu0 %v157
    %587 = vmatpush.msra.mxu0 %v154
    %588 = vmatpush.msra.mxu0 %v151
    %589 = vmatpush.msra.mxu0 %v148
    %590 = vmatpush.msra.mxu0 %v145
    %591 = vmatmul.f32.gmra.mxu0 0.0
    %v592 = vpop.f32.mrf.mxu0
    %v593 = vadd.f32 0.0, %v592
    %594 = vdwg.mxu0
    %v595 = vadd.f32 %v406, %v553
    %v596 = vxor.u32 %v595, 2147483648
    %v597 = vmul.f32 %v596, 1.442695
    %v598 = vpow.pop %v597
    %v599 = vadd.f32 %v598, 1.0
    %v600 = vrcp.pop %v599
    %v601 = vmul.f32 %v599, %v600
    %v602 = vsub.f32 1.0, %v601
    %v603 = vmul.f32 %v600, %v602
    %v604 = vadd.f32 %v600, %v603
    %vm605 = vweird.f32 %v599
    %vm606 = vweird.f32 %v600
    %vm607 = vmor %vm605, %vm606
    %v608 = vsel %vm607, %v600, %v604
    %v609 = vand.u32 2147483647, %v599
    %vm610 = vcmp.eq.f32.partialorder %v609, 8.507059e+37
    %v611 = vand.u32 %v599, 2147483648
    %v612 = vor.u32 1.1754944e-38, %v611
    %v613 = vsel %vm610, %v612, %v608
    %v614 = vmul.f32 1.0, %v613
    %v615 = vadd.f32 %v458, %v573
    %v616 = vxor.u32 %v615, 2147483648
    %v617 = vmul.f32 %v616, 1.442695
    %v618 = vpow.pop %v617
    %v619 = vadd.f32 %v618, 1.0
    %v620 = vrcp.pop %v619
    %v621 = vmul.f32 %v619, %v620
    %v622 = vsub.f32 1.0, %v621
    %v623 = vmul.f32 %v620, %v622
    %v624 = vadd.f32 %v620, %v623
    %vm625 = vweird.f32 %v619
    %vm626 = vweird.f32 %v620
    %vm627 = vmor %vm625, %vm626
    %v628 = vsel %vm627, %v620, %v624
    %v629 = vand.u32 2147483647, %v619
    %vm630 = vcmp.eq.f32.partialorder %v629, 8.507059e+37
    %v631 = vand.u32 %v619, 2147483648
    %v632 = vor.u32 1.1754944e-38, %v631
    %v633 = vsel %vm630, %v632, %v628
    %v634 = vmul.f32 1.0, %v633
    %v636 = vperm.slane %v287, 0
    %v638 = vadd.f32 %v593, %v636
    %v639 = vmul.f32 %v614, %v638
    %v640 = vadd.f32 %v510, %v639
    %v641 = vtanh.pop %v640
    %v642 = vsub.f32 1.0, %v634
    %v643 = vmul.f32 %v642, %v641
    %v644 = vmul.f32 %v634, 0.0
    %v645 = vadd.f32 %v643, %v644
    %646 = vmatpush.msra.mxu0 %v188
    %647 = vmatpush.msra.mxu0 %v185
    %648 = vmatpush.msra.mxu0 %v182
    %649 = vmatpush.msra.mxu0 %v179
    %650 = vmatpush.msra.mxu0 %v176
    %651 = vmatpush.msra.mxu0 %v173
    %652 = vmatpush.msra.mxu0 %v170
    %653 = vmatpush.msra.mxu0 %v167
    %654 = vmatpush.msra.mxu0 %v164
    %655 = vmatpush.msra.mxu0 %v161
    %656 = vmatpush.msra.mxu0 %v158
    %657 = vmatpush.msra.mxu0 %v155
    %658 = vmatpush.msra.mxu0 %v152
    %659 = vmatpush.msra.mxu0 %v149
    %660 = vmatpush.msra.mxu0 %v146
    %661 = vmatpush.msra.mxu0 %v143
    %662 = vmatmul.f32.gmra.mxu0 %v645
    %v663 = vpop.f32.mrf.mxu0
    %v664 = vadd.f32 0.0, %v663
    %665 = vdwg.mxu0
    %666 = vmatpush.msra.mxu0 %v189
    %667 = vmatpush.msra.mxu0 %v186
    %668 = vmatpush.msra.mxu0 %v183
    %669 = vmatpush.msra.mxu0 %v180
    %670 = vmatpush.msra.mxu0 %v177
    %671 = vmatpush.msra.mxu0 %v174
    %672 = vmatpush.msra.mxu0 %v171
    %673 = vmatpush.msra.mxu0 %v168
    %674 = vmatpush.msra.mxu0 %v165
    %675 = vmatpush.msra.mxu0 %v162
    %676 = vmatpush.msra.mxu0 %v159
    %677 = vmatpush.msra.mxu0 %v156
    %678 = vmatpush.msra.mxu0 %v153
    %679 = vmatpush.msra.mxu0 %v150
    %680 = vmatpush.msra.mxu0 %v147
    %681 = vmatpush.msra.mxu0 %v144
    %682 = vmatmul.f32.gmra.mxu0 %v645
    %v683 = vpop.f32.mrf.mxu0
    %v684 = vadd.f32 0.0, %v683
    %685 = vdwg.mxu0
    %686 = vmatpush.msra.mxu0 %v190
    %687 = vmatpush.msra.mxu0 %v187
    %688 = vmatpush.msra.mxu0 %v184
    %689 = vmatpush.msra.mxu0 %v181
    %690 = vmatpush.msra.mxu0 %v178
    %691 = vmatpush.msra.mxu0 %v175
    %692 = vmatpush.msra.mxu0 %v172
    %693 = vmatpush.msra.mxu0 %v169
    %694 = vmatpush.msra.mxu0 %v166
    %695 = vmatpush.msra.mxu0 %v163
    %696 = vmatpush.msra.mxu0 %v160
    %697 = vmatpush.msra.mxu0 %v157
    %698 = vmatpush.msra.mxu0 %v154
    %699 = vmatpush.msra.mxu0 %v151
    %700 = vmatpush.msra.mxu0 %v148
    %701 = vmatpush.msra.mxu0 %v145
    %702 = vmatmul.f32.gmra.mxu0 %v645
    %v703 = vpop.f32.mrf.mxu0
    %v704 = vadd.f32 0.0, %v703
    %705 = vdwg.mxu0
    %v706 = vadd.f32 %v424, %v664
    %v707 = vxor.u32 %v706, 2147483648
    %v708 = vmul.f32 %v707, 1.442695
    %v709 = vpow.pop %v708
    %v710 = vadd.f32 %v709, 1.0
    %v711 = vrcp.pop %v710
    %v712 = vmul.f32 %v710, %v711
    %v713 = vsub.f32 1.0, %v712
    %v714 = vmul.f32 %v711, %v713
    %v715 = vadd.f32 %v711, %v714
    %vm716 = vweird.f32 %v710
    %vm717 = vweird.f32 %v711
    %vm718 = vmor %vm716, %vm717
    %v719 = vsel %vm718, %v711, %v715
    %v720 = vand.u32 2147483647, %v710
    %vm721 = vcmp.eq.f32.partialorder %v720, 8.507059e+37
    %v722 = vand.u32 %v710, 2147483648
    %v723 = vor.u32 1.1754944e-38, %v722
    %v724 = vsel %vm721, %v723, %v719
    %v725 = vmul.f32 1.0, %v724
    %v726 = vadd.f32 %v476, %v684
    %v727 = vxor.u32 %v726, 2147483648
    %v728 = vmul.f32 %v727, 1.442695
    %v729 = vpow.pop %v728
    %v730 = vadd.f32 %v729, 1.0
    %v731 = vrcp.pop %v730
    %v732 = vmul.f32 %v730, %v731
    %v733 = vsub.f32 1.0, %v732
    %v734 = vmul.f32 %v731, %v733
    %v735 = vadd.f32 %v731, %v734
    %vm736 = vweird.f32 %v730
    %vm737 = vweird.f32 %v731
    %vm738 = vmor %vm736, %vm737
    %v739 = vsel %vm738, %v731, %v735
    %v740 = vand.u32 2147483647, %v730
    %vm741 = vcmp.eq.f32.partialorder %v740, 8.507059e+37
    %v742 = vand.u32 %v730, 2147483648
    %v743 = vor.u32 1.1754944e-38, %v742
    %v744 = vsel %vm741, %v743, %v739
    %v745 = vmul.f32 1.0, %v744
    %v746 = vadd.f32 %v704, %v636
    %v747 = vmul.f32 %v725, %v746
    %v748 = vadd.f32 %v528, %v747
    %v749 = vtanh.pop %v748
    %v750 = vsub.f32 1.0, %v745
    %v751 = vmul.f32 %v750, %v749
    %v752 = vmul.f32 %v745, %v645
    %v753 = vadd.f32 %v751, %v752
    %754 = vmatpush.msra.mxu0 %v188
    %755 = vmatpush.msra.mxu0 %v185
    %756 = vmatpush.msra.mxu0 %v182
    %757 = vmatpush.msra.mxu0 %v179
    %758 = vmatpush.msra.mxu0 %v176
    %759 = vmatpush.msra.mxu0 %v173
    %760 = vmatpush.msra.mxu0 %v170
    %761 = vmatpush.msra.mxu0 %v167
    %762 = vmatpush.msra.mxu0 %v164
    %763 = vmatpush.msra.mxu0 %v161
    %764 = vmatpush.msra.mxu0 %v158
    %765 = vmatpush.msra.mxu0 %v155
    %766 = vmatpush.msra.mxu0 %v152
    %767 = vmatpush.msra.mxu0 %v149
    %768 = vmatpush.msra.mxu0 %v146
    %769 = vmatpush.msra.mxu0 %v143
    %770 = vmatmul.f32.gmra.mxu0 %v753
    %v771 = vpop.f32.mrf.mxu0
    %v772 = vadd.f32 0.0, %v771
    %773 = vdwg.mxu0
    %774 = vmatpush.msra.mxu0 %v189
    %775 = vmatpush.msra.mxu0 %v186
    %776 = vmatpush.msra.mxu0 %v183
    %777 = vmatpush.msra.mxu0 %v180
    %778 = vmatpush.msra.mxu0 %v177
    %779 = vmatpush.msra.mxu0 %v174
    %780 = vmatpush.msra.mxu0 %v171
    %781 = vmatpush.msra.mxu0 %v168
    %782 = vmatpush.msra.mxu0 %v165
    %783 = vmatpush.msra.mxu0 %v162
    %784 = vmatpush.msra.mxu0 %v159
    %785 = vmatpush.msra.mxu0 %v156
    %786 = vmatpush.msra.mxu0 %v153
    %787 = vmatpush.msra.mxu0 %v150
    %788 = vmatpush.msra.mxu0 %v147
    %789 = vmatpush.msra.mxu0 %v144
    %790 = vmatmul.f32.gmra.mxu0 %v753
    %v791 = vpop.f32.mrf.mxu0
    %v792 = vadd.f32 0.0, %v791
    %793 = vdwg.mxu0
    %794 = vmatpush.msra.mxu0 %v190
    %795 = vmatpush.msra.mxu0 %v187
    %796 = vmatpush.msra.mxu0 %v184
    %797 = vmatpush.msra.mxu0 %v181
    %798 = vmatpush.msra.mxu0 %v178
    %799 = vmatpush.msra.mxu0 %v175
    %800 = vmatpush.msra.mxu0 %v172
    %801 = vmatpush.msra.mxu0 %v169
    %802 = vmatpush.msra.mxu0 %v166
    %803 = vmatpush.msra.mxu0 %v163
    %804 = vmatpush.msra.mxu0 %v160
    %805 = vmatpush.msra.mxu0 %v157
    %806 = vmatpush.msra.mxu0 %v154
    %807 = vmatpush.msra.mxu0 %v151
    %808 = vmatpush.msra.mxu0 %v148
    %809 = vmatpush.msra.mxu0 %v145
    %810 = vmatmul.f32.gmra.mxu0 %v753
    %v811 = vpop.f32.mrf.mxu0
    %v812 = vadd.f32 0.0, %v811
    %813 = vdwg.mxu0
    %v814 = vadd.f32 %v410, %v772
    %v815 = vxor.u32 %v814, 2147483648
    %v816 = vmul.f32 %v815, 1.442695
    %v817 = vpow.pop %v816
    %v818 = vadd.f32 %v817, 1.0
    %v819 = vrcp.pop %v818
    %v820 = vmul.f32 %v818, %v819
    %v821 = vsub.f32 1.0, %v820
    %v822 = vmul.f32 %v819, %v821
    %v823 = vadd.f32 %v819, %v822
    %vm824 = vweird.f32 %v818
    %vm825 = vweird.f32 %v819
    %vm826 = vmor %vm824, %vm825
    %v827 = vsel %vm826, %v819, %v823
    %v828 = vand.u32 2147483647, %v818
    %vm829 = vcmp.eq.f32.partialorder %v828, 8.507059e+37
    %v830 = vand.u32 %v818, 2147483648
    %v831 = vor.u32 1.1754944e-38, %v830
    %v832 = vsel %vm829, %v831, %v827
    %v833 = vmul.f32 1.0, %v832
    %v834 = vadd.f32 %v462, %v792
    %v835 = vxor.u32 %v834, 2147483648
    %v836 = vmul.f32 %v835, 1.442695
    %v837 = vpow.pop %v836
    %v838 = vadd.f32 %v837, 1.0
    %v839 = vrcp.pop %v838
    %v840 = vmul.f32 %v838, %v839
    %v841 = vsub.f32 1.0, %v840
    %v842 = vmul.f32 %v839, %v841
    %v843 = vadd.f32 %v839, %v842
    %vm844 = vweird.f32 %v838
    %vm845 = vweird.f32 %v839
    %vm846 = vmor %vm844, %vm845
    %v847 = vsel %vm846, %v839, %v843
    %v848 = vand.u32 2147483647, %v838
    %vm849 = vcmp.eq.f32.partialorder %v848, 8.507059e+37
    %v850 = vand.u32 %v838, 2147483648
    %v851 = vor.u32 1.1754944e-38, %v850
    %v852 = vsel %vm849, %v851, %v847
    %v853 = vmul.f32 1.0, %v852
    %v854 = vadd.f32 %v812, %v636
    %v855 = vmul.f32 %v833, %v854
    %v856 = vadd.f32 %v514, %v855
    %v857 = vtanh.pop %v856
    %v858 = vsub.f32 1.0, %v853
    %v859 = vmul.f32 %v858, %v857
    %v860 = vmul.f32 %v853, %v753
    %v861 = vadd.f32 %v859, %v860
    %862 = vmatpush.msra.mxu0 %v188
    %863 = vmatpush.msra.mxu0 %v185
    %864 = vmatpush.msra.mxu0 %v182
    %865 = vmatpush.msra.mxu0 %v179
    %866 = vmatpush.msra.mxu0 %v176
    %867 = vmatpush.msra.mxu0 %v173
    %868 = vmatpush.msra.mxu0 %v170
    %869 = vmatpush.msra.mxu0 %v167
    %870 = vmatpush.msra.mxu0 %v164
    %871 = vmatpush.msra.mxu0 %v161
    %872 = vmatpush.msra.mxu0 %v158
    %873 = vmatpush.msra.mxu0 %v155
    %874 = vmatpush.msra.mxu0 %v152
    %875 = vmatpush.msra.mxu0 %v149
    %876 = vmatpush.msra.mxu0 %v146
    %877 = vmatpush.msra.mxu0 %v143
    %878 = vmatmul.f32.gmra.mxu0 %v861
    %v879 = vpop.f32.mrf.mxu0
    %v880 = vadd.f32 0.0, %v879
    %881 = vdwg.mxu0
    %882 = vmatpush.msra.mxu0 %v189
    %883 = vmatpush.msra.mxu0 %v186
    %884 = vmatpush.msra.mxu0 %v183
    %885 = vmatpush.msra.mxu0 %v180
    %886 = vmatpush.msra.mxu0 %v177
    %887 = vmatpush.msra.mxu0 %v174
    %888 = vmatpush.msra.mxu0 %v171
    %889 = vmatpush.msra.mxu0 %v168
    %890 = vmatpush.msra.mxu0 %v165
    %891 = vmatpush.msra.mxu0 %v162
    %892 = vmatpush.msra.mxu0 %v159
    %893 = vmatpush.msra.mxu0 %v156
    %894 = vmatpush.msra.mxu0 %v153
    %895 = vmatpush.msra.mxu0 %v150
    %896 = vmatpush.msra.mxu0 %v147
    %897 = vmatpush.msra.mxu0 %v144
    %898 = vmatmul.f32.gmra.mxu0 %v861
    %v899 = vpop.f32.mrf.mxu0
    %v900 = vadd.f32 0.0, %v899
    %901 = vdwg.mxu0
    %902 = vmatpush.msra.mxu0 %v190
    %903 = vmatpush.msra.mxu0 %v187
    %904 = vmatpush.msra.mxu0 %v184
    %905 = vmatpush.msra.mxu0 %v181
    %906 = vmatpush.msra.mxu0 %v178
    %907 = vmatpush.msra.mxu0 %v175
    %908 = vmatpush.msra.mxu0 %v172
    %909 = vmatpush.msra.mxu0 %v169
    %910 = vmatpush.msra.mxu0 %v166
    %911 = vmatpush.msra.mxu0 %v163
    %912 = vmatpush.msra.mxu0 %v160
    %913 = vmatpush.msra.mxu0 %v157
    %914 = vmatpush.msra.mxu0 %v154
    %915 = vmatpush.msra.mxu0 %v151
    %916 = vmatpush.msra.mxu0 %v148
    %917 = vmatpush.msra.mxu0 %v145
    %918 = vmatmul.f32.gmra.mxu0 %v861
    %v919 = vpop.f32.mrf.mxu0
    %v920 = vadd.f32 0.0, %v919
    %921 = vdwg.mxu0
    %v922 = vadd.f32 %v426, %v880
    %v923 = vxor.u32 %v922, 2147483648
    %v924 = vmul.f32 %v923, 1.442695
    %v925 = vpow.pop %v924
    %v926 = vadd.f32 %v925, 1.0
    %v927 = vrcp.pop %v926
    %v928 = vmul.f32 %v926, %v927
    %v929 = vsub.f32 1.0, %v928
    %v930 = vmul.f32 %v927, %v929
    %v931 = vadd.f32 %v927, %v930
    %vm932 = vweird.f32 %v926
    %vm933 = vweird.f32 %v927
    %vm934 = vmor %vm932, %vm933
    %v935 = vsel %vm934, %v927, %v931
    %v936 = vand.u32 2147483647, %v926
    %vm937 = vcmp.eq.f32.partialorder %v936, 8.507059e+37
    %v938 = vand.u32 %v926, 2147483648
    %v939 = vor.u32 1.1754944e-38, %v938
    %v940 = vsel %vm937, %v939, %v935
    %v941 = vmul.f32 1.0, %v940
    %v942 = vadd.f32 %v478, %v900
    %v943 = vxor.u32 %v942, 2147483648
    %v944 = vmul.f32 %v943, 1.442695
    %v945 = vpow.pop %v944
    %v946 = vadd.f32 %v945, 1.0
    %v947 = vrcp.pop %v946
    %v948 = vmul.f32 %v946, %v947
    %v949 = vsub.f32 1.0, %v948
    %v950 = vmul.f32 %v947, %v949
    %v951 = vadd.f32 %v947, %v950
    %vm952 = vweird.f32 %v946
    %vm953 = vweird.f32 %v947
    %vm954 = vmor %vm952, %vm953
    %v955 = vsel %vm954, %v947, %v951
    %v956 = vand.u32 2147483647, %v946
    %vm957 = vcmp.eq.f32.partialorder %v956, 8.507059e+37
    %v958 = vand.u32 %v946, 2147483648
    %v959 = vor.u32 1.1754944e-38, %v958
    %v960 = vsel %vm957, %v959, %v955
    %v961 = vmul.f32 1.0, %v960
    %v962 = vadd.f32 %v920, %v636
    %v963 = vmul.f32 %v941, %v962
    %v964 = vadd.f32 %v530, %v963
    %v965 = vtanh.pop %v964
    %v966 = vsub.f32 1.0, %v961
    %v967 = vmul.f32 %v966, %v965
    %v968 = vmul.f32 %v961, %v861
    %v969 = vadd.f32 %v967, %v968
    %970 = vmatpush.msra.mxu0 %v188
    %971 = vmatpush.msra.mxu0 %v185
    %972 = vmatpush.msra.mxu0 %v182
    %973 = vmatpush.msra.mxu0 %v179
    %974 = vmatpush.msra.mxu0 %v176
    %975 = vmatpush.msra.mxu0 %v173
    %976 = vmatpush.msra.mxu0 %v170
    %977 = vmatpush.msra.mxu0 %v167
    %978 = vmatpush.msra.mxu0 %v164
    %979 = vmatpush.msra.mxu0 %v161
    %980 = vmatpush.msra.mxu0 %v158
    %981 = vmatpush.msra.mxu0 %v155
    %982 = vmatpush.msra.mxu0 %v152
    %983 = vmatpush.msra.mxu0 %v149
    %984 = vmatpush.msra.mxu0 %v146
    %985 = vmatpush.msra.mxu0 %v143
    %986 = vmatmul.f32.gmra.mxu0 %v969
    %v987 = vpop.f32.mrf.mxu0
    %v988 = vadd.f32 0.0, %v987
    %989 = vdwg.mxu0
    %990 = vmatpush.msra.mxu0 %v189
    %991 = vmatpush.msra.mxu0 %v186
    %992 = vmatpush.msra.mxu0 %v183
    %993 = vmatpush.msra.mxu0 %v180
    %994 = vmatpush.msra.mxu0 %v177
    %995 = vmatpush.msra.mxu0 %v174
    %996 = vmatpush.msra.mxu0 %v171
    %997 = vmatpush.msra.mxu0 %v168
    %998 = vmatpush.msra.mxu0 %v165
    %999 = vmatpush.msra.mxu0 %v162
    %1000 = vmatpush.msra.mxu0 %v159
    %1001 = vmatpush.msra.mxu0 %v156
    %1002 = vmatpush.msra.mxu0 %v153
    %1003 = vmatpush.msra.mxu0 %v150
    %1004 = vmatpush.msra.mxu0 %v147
    %1005 = vmatpush.msra.mxu0 %v144
    %1006 = vmatmul.f32.gmra.mxu0 %v969
    %v1007 = vpop.f32.mrf.mxu0
    %v1008 = vadd.f32 0.0, %v1007
    %1009 = vdwg.mxu0
    %1010 = vmatpush.msra.mxu0 %v190
    %1011 = vmatpush.msra.mxu0 %v187
    %1012 = vmatpush.msra.mxu0 %v184
    %1013 = vmatpush.msra.mxu0 %v181
    %1014 = vmatpush.msra.mxu0 %v178
    %1015 = vmatpush.msra.mxu0 %v175
    %1016 = vmatpush.msra.mxu0 %v172
    %1017 = vmatpush.msra.mxu0 %v169
    %1018 = vmatpush.msra.mxu0 %v166
    %1019 = vmatpush.msra.mxu0 %v163
    %1020 = vmatpush.msra.mxu0 %v160
    %1021 = vmatpush.msra.mxu0 %v157
    %1022 = vmatpush.msra.mxu0 %v154
    %1023 = vmatpush.msra.mxu0 %v151
    %1024 = vmatpush.msra.mxu0 %v148
    %1025 = vmatpush.msra.mxu0 %v145
    %1026 = vmatmul.f32.gmra.mxu0 %v969
    %v1027 = vpop.f32.mrf.mxu0
    %v1028 = vadd.f32 0.0, %v1027
    %1029 = vdwg.mxu0
    %v1030 = vadd.f32 %v418, %v988
    %v1031 = vxor.u32 %v1030, 2147483648
    %v1032 = vmul.f32 %v1031, 1.442695
    %v1033 = vpow.pop %v1032
    %v1034 = vadd.f32 %v1033, 1.0
    %v1035 = vrcp.pop %v1034
    %v1036 = vmul.f32 %v1034, %v1035
    %v1037 = vsub.f32 1.0, %v1036
    %v1038 = vmul.f32 %v1035, %v1037
    %v1039 = vadd.f32 %v1035, %v1038
    %vm1040 = vweird.f32 %v1034
    %vm1041 = vweird.f32 %v1035
    %vm1042 = vmor %vm1040, %vm1041
    %v1043 = vsel %vm1042, %v1035, %v1039
    %v1044 = vand.u32 2147483647, %v1034
    %vm1045 = vcmp.eq.f32.partialorder %v1044, 8.507059e+37
    %v1046 = vand.u32 %v1034, 2147483648
    %v1047 = vor.u32 1.1754944e-38, %v1046
    %v1048 = vsel %vm1045, %v1047, %v1043
    %v1049 = vmul.f32 1.0, %v1048
    %v1050 = vadd.f32 %v470, %v1008
    %v1051 = vxor.u32 %v1050, 2147483648
    %v1052 = vmul.f32 %v1051, 1.442695
    %v1053 = vpow.pop %v1052
    %v1054 = vadd.f32 %v1053, 1.0
    %v1055 = vrcp.pop %v1054
    %v1056 = vmul.f32 %v1054, %v1055
    %v1057 = vsub.f32 1.0, %v1056
    %v1058 = vmul.f32 %v1055, %v1057
    %v1059 = vadd.f32 %v1055, %v1058
    %vm1060 = vweird.f32 %v1054
    %vm1061 = vweird.f32 %v1055
    %vm1062 = vmor %vm1060, %vm1061
    %v1063 = vsel %vm1062, %v1055, %v1059
    %v1064 = vand.u32 2147483647, %v1054
    %vm1065 = vcmp.eq.f32.partialorder %v1064, 8.507059e+37
    %v1066 = vand.u32 %v1054, 2147483648
    %v1067 = vor.u32 1.1754944e-38, %v1066
    %v1068 = vsel %vm1065, %v1067, %v1063
    %v1069 = vmul.f32 1.0, %v1068
    %v1070 = vadd.f32 %v1028, %v636
    %v1071 = vmul.f32 %v1049, %v1070
    %v1072 = vadd.f32 %v522, %v1071
    %v1073 = vtanh.pop %v1072
    %v1074 = vsub.f32 1.0, %v1069
    %v1075 = vmul.f32 %v1074, %v1073
    %v1076 = vmul.f32 %v1069, %v969
    %v1077 = vadd.f32 %v1075, %v1076
    %1078 = vmatpush.msra.mxu0 %v188
    %1079 = vmatpush.msra.mxu0 %v185
    %1080 = vmatpush.msra.mxu0 %v182
    %1081 = vmatpush.msra.mxu0 %v179
    %1082 = vmatpush.msra.mxu0 %v176
    %1083 = vmatpush.msra.mxu0 %v173
    %1084 = vmatpush.msra.mxu0 %v170
    %1085 = vmatpush.msra.mxu0 %v167
    %1086 = vmatpush.msra.mxu0 %v164
    %1087 = vmatpush.msra.mxu0 %v161
    %1088 = vmatpush.msra.mxu0 %v158
    %1089 = vmatpush.msra.mxu0 %v155
    %1090 = vmatpush.msra.mxu0 %v152
    %1091 = vmatpush.msra.mxu0 %v149
    %1092 = vmatpush.msra.mxu0 %v146
    %1093 = vmatpush.msra.mxu0 %v143
    %1094 = vmatmul.f32.gmra.mxu0 %v1077
    %v1095 = vpop.f32.mrf.mxu0
    %v1096 = vadd.f32 0.0, %v1095
    %1097 = vdwg.mxu0
    %1098 = vmatpush.msra.mxu0 %v189
    %1099 = vmatpush.msra.mxu0 %v186
    %1100 = vmatpush.msra.mxu0 %v183
    %1101 = vmatpush.msra.mxu0 %v180
    %1102 = vmatpush.msra.mxu0 %v177
    %1103 = vmatpush.msra.mxu0 %v174
    %1104 = vmatpush.msra.mxu0 %v171
    %1105 = vmatpush.msra.mxu0 %v168
    %1106 = vmatpush.msra.mxu0 %v165
    %1107 = vmatpush.msra.mxu0 %v162
    %1108 = vmatpush.msra.mxu0 %v159
    %1109 = vmatpush.msra.mxu0 %v156
    %1110 = vmatpush.msra.mxu0 %v153
    %1111 = vmatpush.msra.mxu0 %v150
    %1112 = vmatpush.msra.mxu0 %v147
    %1113 = vmatpush.msra.mxu0 %v144
    %1114 = vmatmul.f32.gmra.mxu0 %v1077
    %v1115 = vpop.f32.mrf.mxu0
    %v1116 = vadd.f32 0.0, %v1115
    %1117 = vdwg.mxu0
    %1118 = vmatpush.msra.mxu0 %v190
    %1119 = vmatpush.msra.mxu0 %v187
    %1120 = vmatpush.msra.mxu0 %v184
    %1121 = vmatpush.msra.mxu0 %v181
    %1122 = vmatpush.msra.mxu0 %v178
    %1123 = vmatpush.msra.mxu0 %v175
    %1124 = vmatpush.msra.mxu0 %v172
    %1125 = vmatpush.msra.mxu0 %v169
    %1126 = vmatpush.msra.mxu0 %v166
    %1127 = vmatpush.msra.mxu0 %v163
    %1128 = vmatpush.msra.mxu0 %v160
    %1129 = vmatpush.msra.mxu0 %v157
    %1130 = vmatpush.msra.mxu0 %v154
    %1131 = vmatpush.msra.mxu0 %v151
    %1132 = vmatpush.msra.mxu0 %v148
    %1133 = vmatpush.msra.mxu0 %v145
    %1134 = vmatmul.f32.gmra.mxu0 %v1077
    %v1135 = vpop.f32.mrf.mxu0
    %v1136 = vadd.f32 0.0, %v1135
    %1137 = vdwg.mxu0
    %v1138 = vadd.f32 %v428, %v1096
    %v1139 = vxor.u32 %v1138, 2147483648
    %v1140 = vmul.f32 %v1139, 1.442695
    %v1141 = vpow.pop %v1140
    %v1142 = vadd.f32 %v1141, 1.0
    %v1143 = vrcp.pop %v1142
    %v1144 = vmul.f32 %v1142, %v1143
    %v1145 = vsub.f32 1.0, %v1144
    %v1146 = vmul.f32 %v1143, %v1145
    %v1147 = vadd.f32 %v1143, %v1146
    %vm1148 = vweird.f32 %v1142
    %vm1149 = vweird.f32 %v1143
    %vm1150 = vmor %vm1148, %vm1149
    %v1151 = vsel %vm1150, %v1143, %v1147
    %v1152 = vand.u32 2147483647, %v1142
    %vm1153 = vcmp.eq.f32.partialorder %v1152, 8.507059e+37
    %v1154 = vand.u32 %v1142, 2147483648
    %v1155 = vor.u32 1.1754944e-38, %v1154
    %v1156 = vsel %vm1153, %v1155, %v1151
    %v1157 = vmul.f32 1.0, %v1156
    %v1158 = vadd.f32 %v480, %v1116
    %v1159 = vxor.u32 %v1158, 2147483648
    %v1160 = vmul.f32 %v1159, 1.442695
    %v1161 = vpow.pop %v1160
    %v1162 = vadd.f32 %v1161, 1.0
    %v1163 = vrcp.pop %v1162
    %v1164 = vmul.f32 %v1162, %v1163
    %v1165 = vsub.f32 1.0, %v1164
    %v1166 = vmul.f32 %v1163, %v1165
    %v1167 = vadd.f32 %v1163, %v1166
    %vm1168 = vweird.f32 %v1162
    %vm1169 = vweird.f32 %v1163
    %vm1170 = vmor %vm1168, %vm1169
    %v1171 = vsel %vm1170, %v1163, %v1167
    %v1172 = vand.u32 2147483647, %v1162
    %vm1173 = vcmp.eq.f32.partialorder %v1172, 8.507059e+37
    %v1174 = vand.u32 %v1162, 2147483648
    %v1175 = vor.u32 1.1754944e-38, %v1174
    %v1176 = vsel %vm1173, %v1175, %v1171
    %v1177 = vmul.f32 1.0, %v1176
    %v1178 = vadd.f32 %v1136, %v636
    %v1179 = vmul.f32 %v1157, %v1178
    %v1180 = vadd.f32 %v532, %v1179
    %v1181 = vtanh.pop %v1180
    %v1182 = vsub.f32 1.0, %v1177
    %v1183 = vmul.f32 %v1182, %v1181
    %v1184 = vmul.f32 %v1177, %v1077
    %v1185 = vadd.f32 %v1183, %v1184
    %1186 = vmatpush.msra.mxu0 %v188
    %1187 = vmatpush.msra.mxu0 %v185
    %1188 = vmatpush.msra.mxu0 %v182
    %1189 = vmatpush.msra.mxu0 %v179
    %1190 = vmatpush.msra.mxu0 %v176
    %1191 = vmatpush.msra.mxu0 %v173
    %1192 = vmatpush.msra.mxu0 %v170
    %1193 = vmatpush.msra.mxu0 %v167
    %1194 = vmatpush.msra.mxu0 %v164
    %1195 = vmatpush.msra.mxu0 %v161
    %1196 = vmatpush.msra.mxu0 %v158
    %1197 = vmatpush.msra.mxu0 %v155
    %1198 = vmatpush.msra.mxu0 %v152
    %1199 = vmatpush.msra.mxu0 %v149
    %1200 = vmatpush.msra.mxu0 %v146
    %1201 = vmatpush.msra.mxu0 %v143
    %1202 = vmatmul.f32.gmra.mxu0 %v1185
    %v1203 = vpop.f32.mrf.mxu0
    %v1204 = vadd.f32 0.0, %v1203
    %1205 = vdwg.mxu0
    %1206 = vmatpush.msra.mxu0 %v189
    %1207 = vmatpush.msra.mxu0 %v186
    %1208 = vmatpush.msra.mxu0 %v183
    %1209 = vmatpush.msra.mxu0 %v180
    %1210 = vmatpush.msra.mxu0 %v177
    %1211 = vmatpush.msra.mxu0 %v174
    %1212 = vmatpush.msra.mxu0 %v171
    %1213 = vmatpush.msra.mxu0 %v168
    %1214 = vmatpush.msra.mxu0 %v165
    %1215 = vmatpush.msra.mxu0 %v162
    %1216 = vmatpush.msra.mxu0 %v159
    %1217 = vmatpush.msra.mxu0 %v156
    %1218 = vmatpush.msra.mxu0 %v153
    %1219 = vmatpush.msra.mxu0 %v150
    %1220 = vmatpush.msra.mxu0 %v147
    %1221 = vmatpush.msra.mxu0 %v144
    %1222 = vmatmul.f32.gmra.mxu0 %v1185
    %v1223 = vpop.f32.mrf.mxu0
    %v1224 = vadd.f32 0.0, %v1223
    %1225 = vdwg.mxu0
    %1226 = vmatpush.msra.mxu0 %v190
    %1227 = vmatpush.msra.mxu0 %v187
    %1228 = vmatpush.msra.mxu0 %v184
    %1229 = vmatpush.msra.mxu0 %v181
    %1230 = vmatpush.msra.mxu0 %v178
    %1231 = vmatpush.msra.mxu0 %v175
    %1232 = vmatpush.msra.mxu0 %v172
    %1233 = vmatpush.msra.mxu0 %v169
    %1234 = vmatpush.msra.mxu0 %v166
    %1235 = vmatpush.msra.mxu0 %v163
    %1236 = vmatpush.msra.mxu0 %v160
    %1237 = vmatpush.msra.mxu0 %v157
    %1238 = vmatpush.msra.mxu0 %v154
    %1239 = vmatpush.msra.mxu0 %v151
    %1240 = vmatpush.msra.mxu0 %v148
    %1241 = vmatpush.msra.mxu0 %v145
    %1242 = vmatmul.f32.gmra.mxu0 %v1185
    %v1243 = vpop.f32.mrf.mxu0
    %v1244 = vadd.f32 0.0, %v1243
    %1245 = vdwg.mxu0
    %v1246 = vadd.f32 %v422, %v1204
    %v1247 = vxor.u32 %v1246, 2147483648
    %v1248 = vmul.f32 %v1247, 1.442695
    %v1249 = vpow.pop %v1248
    %v1250 = vadd.f32 %v1249, 1.0
    %v1251 = vrcp.pop %v1250
    %v1252 = vmul.f32 %v1250, %v1251
    %v1253 = vsub.f32 1.0, %v1252
    %v1254 = vmul.f32 %v1251, %v1253
    %v1255 = vadd.f32 %v1251, %v1254
    %vm1256 = vweird.f32 %v1250
    %vm1257 = vweird.f32 %v1251
    %vm1258 = vmor %vm1256, %vm1257
    %v1259 = vsel %vm1258, %v1251, %v1255
    %v1260 = vand.u32 2147483647, %v1250
    %vm1261 = vcmp.eq.f32.partialorder %v1260, 8.507059e+37
    %v1262 = vand.u32 %v1250, 2147483648
    %v1263 = vor.u32 1.1754944e-38, %v1262
    %v1264 = vsel %vm1261, %v1263, %v1259
    %v1265 = vmul.f32 1.0, %v1264
    %v1266 = vadd.f32 %v474, %v1224
    %v1267 = vxor.u32 %v1266, 2147483648
    %v1268 = vmul.f32 %v1267, 1.442695
    %v1269 = vpow.pop %v1268
    %v1270 = vadd.f32 %v1269, 1.0
    %v1271 = vrcp.pop %v1270
    %v1272 = vmul.f32 %v1270, %v1271
    %v1273 = vsub.f32 1.0, %v1272
    %v1274 = vmul.f32 %v1271, %v1273
    %v1275 = vadd.f32 %v1271, %v1274
    %vm1276 = vweird.f32 %v1270
    %vm1277 = vweird.f32 %v1271
    %vm1278 = vmor %vm1276, %vm1277
    %v1279 = vsel %vm1278, %v1271, %v1275
    %v1280 = vand.u32 2147483647, %v1270
    %vm1281 = vcmp.eq.f32.partialorder %v1280, 8.507059e+37
    %v1282 = vand.u32 %v1270, 2147483648
    %v1283 = vor.u32 1.1754944e-38, %v1282
    %v1284 = vsel %vm1281, %v1283, %v1279
    %v1285 = vmul.f32 1.0, %v1284
    %v1286 = vadd.f32 %v1244, %v636
    %v1287 = vmul.f32 %v1265, %v1286
    %v1288 = vadd.f32 %v526, %v1287
    %v1289 = vtanh.pop %v1288
    %v1290 = vsub.f32 1.0, %v1285
    %v1291 = vmul.f32 %v1290, %v1289
    %v1292 = vmul.f32 %v1285, %v1185
    %v1293 = vadd.f32 %v1291, %v1292
    %1294 = vmatpush.msra.mxu0 %v188
    %1295 = vmatpush.msra.mxu0 %v185
    %1296 = vmatpush.msra.mxu0 %v182
    %1297 = vmatpush.msra.mxu0 %v179
    %1298 = vmatpush.msra.mxu0 %v176
    %1299 = vmatpush.msra.mxu0 %v173
    %1300 = vmatpush.msra.mxu0 %v170
    %1301 = vmatpush.msra.mxu0 %v167
    %1302 = vmatpush.msra.mxu0 %v164
    %1303 = vmatpush.msra.mxu0 %v161
    %1304 = vmatpush.msra.mxu0 %v158
    %1305 = vmatpush.msra.mxu0 %v155
    %1306 = vmatpush.msra.mxu0 %v152
    %1307 = vmatpush.msra.mxu0 %v149
    %1308 = vmatpush.msra.mxu0 %v146
    %1309 = vmatpush.msra.mxu0 %v143
    %1310 = vmatmul.f32.gmra.mxu0 %v1293
    %v1311 = vpop.f32.mrf.mxu0
    %v1312 = vadd.f32 0.0, %v1311
    %1313 = vdwg.mxu0
    %1314 = vmatpush.msra.mxu0 %v189
    %1315 = vmatpush.msra.mxu0 %v186
    %1316 = vmatpush.msra.mxu0 %v183
    %1317 = vmatpush.msra.mxu0 %v180
    %1318 = vmatpush.msra.mxu0 %v177
    %1319 = vmatpush.msra.mxu0 %v174
    %1320 = vmatpush.msra.mxu0 %v171
    %1321 = vmatpush.msra.mxu0 %v168
    %1322 = vmatpush.msra.mxu0 %v165
    %1323 = vmatpush.msra.mxu0 %v162
    %1324 = vmatpush.msra.mxu0 %v159
    %1325 = vmatpush.msra.mxu0 %v156
    %1326 = vmatpush.msra.mxu0 %v153
    %1327 = vmatpush.msra.mxu0 %v150
    %1328 = vmatpush.msra.mxu0 %v147
    %1329 = vmatpush.msra.mxu0 %v144
    %1330 = vmatmul.f32.gmra.mxu0 %v1293
    %v1331 = vpop.f32.mrf.mxu0
    %v1332 = vadd.f32 0.0, %v1331
    %1333 = vdwg.mxu0
    %1334 = vmatpush.msra.mxu0 %v190
    %1335 = vmatpush.msra.mxu0 %v187
    %1336 = vmatpush.msra.mxu0 %v184
    %1337 = vmatpush.msra.mxu0 %v181
    %1338 = vmatpush.msra.mxu0 %v178
    %1339 = vmatpush.msra.mxu0 %v175
    %1340 = vmatpush.msra.mxu0 %v172
    %1341 = vmatpush.msra.mxu0 %v169
    %1342 = vmatpush.msra.mxu0 %v166
    %1343 = vmatpush.msra.mxu0 %v163
    %1344 = vmatpush.msra.mxu0 %v160
    %1345 = vmatpush.msra.mxu0 %v157
    %1346 = vmatpush.msra.mxu0 %v154
    %1347 = vmatpush.msra.mxu0 %v151
    %1348 = vmatpush.msra.mxu0 %v148
    %1349 = vmatpush.msra.mxu0 %v145
    %1350 = vmatmul.f32.gmra.mxu0 %v1293
    %v1351 = vpop.f32.mrf.mxu0
    %v1352 = vadd.f32 0.0, %v1351
    %1353 = vdwg.mxu0
    %v1354 = vadd.f32 %v430, %v1312
    %v1355 = vxor.u32 %v1354, 2147483648
    %v1356 = vmul.f32 %v1355, 1.442695
    %v1357 = vpow.pop %v1356
    %v1358 = vadd.f32 %v1357, 1.0
    %v1359 = vrcp.pop %v1358
    %v1360 = vmul.f32 %v1358, %v1359
    %v1361 = vsub.f32 1.0, %v1360
    %v1362 = vmul.f32 %v1359, %v1361
    %v1363 = vadd.f32 %v1359, %v1362
    %vm1364 = vweird.f32 %v1358
    %vm1365 = vweird.f32 %v1359
    %vm1366 = vmor %vm1364, %vm1365
    %v1367 = vsel %vm1366, %v1359, %v1363
    %v1368 = vand.u32 2147483647, %v1358
    %vm1369 = vcmp.eq.f32.partialorder %v1368, 8.507059e+37
    %v1370 = vand.u32 %v1358, 2147483648
    %v1371 = vor.u32 1.1754944e-38, %v1370
    %v1372 = vsel %vm1369, %v1371, %v1367
    %v1373 = vmul.f32 1.0, %v1372
    %v1374 = vadd.f32 %v482, %v1332
    %v1375 = vxor.u32 %v1374, 2147483648
    %v1376 = vmul.f32 %v1375, 1.442695
    %v1377 = vpow.pop %v1376
    %v1378 = vadd.f32 %v1377, 1.0
    %v1379 = vrcp.pop %v1378
    %v1380 = vmul.f32 %v1378, %v1379
    %v1381 = vsub.f32 1.0, %v1380
    %v1382 = vmul.f32 %v1379, %v1381
    %v1383 = vadd.f32 %v1379, %v1382
    %vm1384 = vweird.f32 %v1378
    %vm1385 = vweird.f32 %v1379
    %vm1386 = vmor %vm1384, %vm1385
    %v1387 = vsel %vm1386, %v1379, %v1383
    %v1388 = vand.u32 2147483647, %v1378
    %vm1389 = vcmp.eq.f32.partialorder %v1388, 8.507059e+37
    %v1390 = vand.u32 %v1378, 2147483648
    %v1391 = vor.u32 1.1754944e-38, %v1390
    %v1392 = vsel %vm1389, %v1391, %v1387
    %v1393 = vmul.f32 1.0, %v1392
    %v1394 = vadd.f32 %v1352, %v636
    %v1395 = vmul.f32 %v1373, %v1394
    %v1396 = vadd.f32 %v534, %v1395
    %v1397 = vtanh.pop %v1396
    %v1398 = vsub.f32 1.0, %v1393
    %v1399 = vmul.f32 %v1398, %v1397
    %v1400 = vmul.f32 %v1393, %v1293
    %v1401 = vadd.f32 %v1399, %v1400
    %v1402 = vld [vmem:[#allocation11] sm:$0x7]
    %v1404 = vperm.slane %v1402, 0
    %v1405 = vperm.slane %v1402, 1
    %v1406 = vperm.slane %v1402, 2
    %1418 = vst [vmem:[#allocation1] ss:$4 sm:$0xff] %v645
    %s1419 = scalar_lea.vmem [#allocation1], 1
    %1420 = vst [vmem:[%s1419] ss:$4 sm:$0xff] %v753
    %s1421 = scalar_lea.vmem [#allocation1], 2
    %1422 = vst [vmem:[%s1421] ss:$4 sm:$0xff] %v861
    %s1423 = scalar_lea.vmem [#allocation1], 3
    %1424 = vst [vmem:[%s1423] ss:$4 sm:$0xff] %v969
    %s1425 = scalar_lea.vmem [#allocation1], 32
    %1426 = vst [vmem:[%s1425] ss:$4 sm:$0xff] %v1077
    %s1427 = scalar_lea.vmem [#allocation1], 33
    %1428 = vst [vmem:[%s1427] ss:$4 sm:$0xff] %v1185
    %s1429 = scalar_lea.vmem [#allocation1], 34
    %1430 = vst [vmem:[%s1429] ss:$4 sm:$0xff] %v1293
    %s1431 = scalar_lea.vmem [#allocation1], 35
    %1432 = vst [vmem:[%s1431] ss:$4 sm:$0xff] %v1401
    %v1433 = vld.sshfl [vmem:[#allocation1] sm:$0xff pattern:$0x73625140]
    %v1434 = vld.sshfl [vmem:[#allocation1 + $0x20] sm:$0xff pattern:$0x73625140]
    %1437 = vmatpush.msra.mxu0 %v236
    %1438 = vmatpush.msra.mxu0 %v233
    %1439 = vmatpush.msra.mxu0 %v230
    %1440 = vmatpush.msra.mxu0 %v227
    %1441 = vmatpush.msra.mxu0 %v224
    %1442 = vmatpush.msra.mxu0 %v221
    %1443 = vmatpush.msra.mxu0 %v218
    %1444 = vmatpush.msra.mxu0 %v215
    %1445 = vmatpush.msra.mxu0 %v212
    %1446 = vmatpush.msra.mxu0 %v209
    %1447 = vmatpush.msra.mxu0 %v206
    %1448 = vmatpush.msra.mxu0 %v203
    %1449 = vmatpush.msra.mxu0 %v200
    %1450 = vmatpush.msra.mxu0 %v197
    %1451 = vmatpush.msra.mxu0 %v194
    %1452 = vmatpush.msra.mxu0 %v191
    %1453 = vmatmul.f32.gmra.mxu0 %v1433
    %v1454 = vpop.f32.mrf.mxu0
    %v1455 = vadd.f32 %v1404, %v1454
    %1456 = vmatmul.f32.gmra.mxu0 %v1434
    %v1457 = vpop.f32.mrf.mxu0
    %v1458 = vadd.f32 %v1404, %v1457
    %1459 = vdwg.mxu0
    %1460 = vmatpush.msra.mxu0 %v237
    %1461 = vmatpush.msra.mxu0 %v234
    %1462 = vmatpush.msra.mxu0 %v231
    %1463 = vmatpush.msra.mxu0 %v228
    %1464 = vmatpush.msra.mxu0 %v225
    %1465 = vmatpush.msra.mxu0 %v222
    %1466 = vmatpush.msra.mxu0 %v219
    %1467 = vmatpush.msra.mxu0 %v216
    %1468 = vmatpush.msra.mxu0 %v213
    %1469 = vmatpush.msra.mxu0 %v210
    %1470 = vmatpush.msra.mxu0 %v207
    %1471 = vmatpush.msra.mxu0 %v204
    %1472 = vmatpush.msra.mxu0 %v201
    %1473 = vmatpush.msra.mxu0 %v198
    %1474 = vmatpush.msra.mxu0 %v195
    %1475 = vmatpush.msra.mxu0 %v192
    %1476 = vmatmul.f32.gmra.mxu0 %v1433
    %v1477 = vpop.f32.mrf.mxu0
    %v1478 = vadd.f32 %v1405, %v1477
    %1479 = vmatmul.f32.gmra.mxu0 %v1434
    %v1480 = vpop.f32.mrf.mxu0
    %v1481 = vadd.f32 %v1405, %v1480
    %1482 = vdwg.mxu0
    %1483 = vmatpush.msra.mxu0 %v238
    %1484 = vmatpush.msra.mxu0 %v235
    %1485 = vmatpush.msra.mxu0 %v232
    %1486 = vmatpush.msra.mxu0 %v229
    %1487 = vmatpush.msra.mxu0 %v226
    %1488 = vmatpush.msra.mxu0 %v223
    %1489 = vmatpush.msra.mxu0 %v220
    %1490 = vmatpush.msra.mxu0 %v217
    %1491 = vmatpush.msra.mxu0 %v214
    %1492 = vmatpush.msra.mxu0 %v211
    %1493 = vmatpush.msra.mxu0 %v208
    %1494 = vmatpush.msra.mxu0 %v205
    %1495 = vmatpush.msra.mxu0 %v202
    %1496 = vmatpush.msra.mxu0 %v199
    %1497 = vmatpush.msra.mxu0 %v196
    %1498 = vmatpush.msra.mxu0 %v193
    %1499 = vmatmul.f32.gmra.mxu0 %v1433
    %v1500 = vpop.f32.mrf.mxu0
    %v1501 = vadd.f32 %v1406, %v1500
    %1502 = vmatmul.f32.gmra.mxu0 %v1434
    %v1503 = vpop.f32.mrf.mxu0
    %v1504 = vadd.f32 %v1406, %v1503
    %1505 = vdwg.mxu0
    %v1512 = vrot.slane %v1478, 6
    %v1513 = vrot.slane %v1501, 4
    %v1514 = vrot.slane %v1481, 6
    %v1515 = vrot.slane %v1504, 4
    %vm1516 = vcmask 1041408
    %v1517 = vsel %vm1516, %v1455, %v1512
    %vm1518 = vcmask 1043456
    %v1519 = vsel %vm1518, %v1517, %v1513
    %vm1520 = vcmask 1043458
    %v1521 = vsel %vm1520, %v1455, %v1512
    %vm1522 = vcmask 1045506
    %v1523 = vsel %vm1522, %v1521, %v1513
    %v1524 = vrot.slane %v1523, 2
    %vm1525 = vcmask 1045508
    %v1526 = vsel %vm1525, %v1455, %v1512
    %v1527 = vsel %vm1518, %v1513, %v1526
    %v1528 = vrot.slane %v1527, 4
    %vm1529 = vcmask 1045504
    %v1530 = vsel %vm1529, %v1512, %v1455
    %v1531 = vsel %vm1522, %v1513, %v1530
    %v1532 = vrot.slane %v1531, 6
    %v1533 = vsel %vm1516, %v1458, %v1514
    %v1534 = vsel %vm1518, %v1533, %v1515
    %v1535 = vsel %vm1520, %v1458, %v1514
    %v1536 = vsel %vm1522, %v1535, %v1515
    %v1537 = vrot.slane %v1536, 2
    %v1538 = vsel %vm1525, %v1458, %v1514
    %v1539 = vsel %vm1518, %v1515, %v1538
    %v1540 = vrot.slane %v1539, 4
    %v1541 = vsel %vm1529, %v1514, %v1458
    %v1542 = vsel %vm1522, %v1515, %v1541
    %v1543 = vrot.slane %v1542, 6
    %1552 = vmatpush.msra.mxu0 %v284
    %1553 = vmatpush.msra.mxu0 %v281
    %1554 = vmatpush.msra.mxu0 %v278
    %1555 = vmatpush.msra.mxu0 %v275
    %1556 = vmatpush.msra.mxu0 %v272
    %1557 = vmatpush.msra.mxu0 %v269
    %1558 = vmatpush.msra.mxu0 %v266
    %1559 = vmatpush.msra.mxu0 %v263
    %1560 = vmatpush.msra.mxu0 %v260
    %1561 = vmatpush.msra.mxu0 %v257
    %1562 = vmatpush.msra.mxu0 %v254
    %1563 = vmatpush.msra.mxu0 %v251
    %1564 = vmatpush.msra.mxu0 %v248
    %1565 = vmatpush.msra.mxu0 %v245
    %1566 = vmatpush.msra.mxu0 %v242
    %1567 = vmatpush.msra.mxu0 %v239
    %1568 = vmatmul.f32.gmra.mxu0 0.0
    %v1569 = vpop.f32.mrf.mxu0
    %v1570 = vadd.f32 0.0, %v1569
    %1571 = vdwg.mxu0
    %1572 = vmatpush.msra.mxu0 %v285
    %1573 = vmatpush.msra.mxu0 %v282
    %1574 = vmatpush.msra.mxu0 %v279
    %1575 = vmatpush.msra.mxu0 %v276
    %1576 = vmatpush.msra.mxu0 %v273
    %1577 = vmatpush.msra.mxu0 %v270
    %1578 = vmatpush.msra.mxu0 %v267
    %1579 = vmatpush.msra.mxu0 %v264
    %1580 = vmatpush.msra.mxu0 %v261
    %1581 = vmatpush.msra.mxu0 %v258
    %1582 = vmatpush.msra.mxu0 %v255
    %1583 = vmatpush.msra.mxu0 %v252
    %1584 = vmatpush.msra.mxu0 %v249
    %1585 = vmatpush.msra.mxu0 %v246
    %1586 = vmatpush.msra.mxu0 %v243
    %1587 = vmatpush.msra.mxu0 %v240
    %1588 = vmatmul.f32.gmra.mxu0 0.0
    %v1589 = vpop.f32.mrf.mxu0
    %v1590 = vadd.f32 0.0, %v1589
    %1591 = vdwg.mxu0
    %1592 = vmatpush.msra.mxu0 %v286
    %1593 = vmatpush.msra.mxu0 %v283
    %1594 = vmatpush.msra.mxu0 %v280
    %1595 = vmatpush.msra.mxu0 %v277
    %1596 = vmatpush.msra.mxu0 %v274
    %1597 = vmatpush.msra.mxu0 %v271
    %1598 = vmatpush.msra.mxu0 %v268
    %1599 = vmatpush.msra.mxu0 %v265
    %1600 = vmatpush.msra.mxu0 %v262
    %1601 = vmatpush.msra.mxu0 %v259
    %1602 = vmatpush.msra.mxu0 %v256
    %1603 = vmatpush.msra.mxu0 %v253
    %1604 = vmatpush.msra.mxu0 %v250
    %1605 = vmatpush.msra.mxu0 %v247
    %1606 = vmatpush.msra.mxu0 %v244
    %1607 = vmatpush.msra.mxu0 %v241
    %1608 = vmatmul.f32.gmra.mxu0 0.0
    %v1609 = vpop.f32.mrf.mxu0
    %v1610 = vadd.f32 0.0, %v1609
    %1611 = vdwg.mxu0
    %v1612 = vadd.f32 %v1519, %v1570
    %v1613 = vxor.u32 %v1612, 2147483648
    %v1614 = vmul.f32 %v1613, 1.442695
    %v1615 = vpow.pop %v1614
    %v1616 = vadd.f32 %v1615, 1.0
    %v1617 = vrcp.pop %v1616
    %v1618 = vmul.f32 %v1616, %v1617
    %v1619 = vsub.f32 1.0, %v1618
    %v1620 = vmul.f32 %v1617, %v1619
    %v1621 = vadd.f32 %v1617, %v1620
    %vm1622 = vweird.f32 %v1616
    %vm1623 = vweird.f32 %v1617
    %vm1624 = vmor %vm1622, %vm1623
    %v1625 = vsel %vm1624, %v1617, %v1621
    %v1626 = vand.u32 2147483647, %v1616
    %vm1627 = vcmp.eq.f32.partialorder %v1626, 8.507059e+37
    %v1628 = vand.u32 %v1616, 2147483648
    %v1629 = vor.u32 1.1754944e-38, %v1628
    %v1630 = vsel %vm1627, %v1629, %v1625
    %v1631 = vmul.f32 1.0, %v1630
    %v1632 = vrot.slane %v1519, 2
    %v1634 = vadd.f32 %v1632, %v1590
    %v1635 = vxor.u32 %v1634, 2147483648
    %v1636 = vmul.f32 %v1635, 1.442695
    %v1637 = vpow.pop %v1636
    %v1638 = vadd.f32 %v1637, 1.0
    %v1639 = vrcp.pop %v1638
    %v1640 = vmul.f32 %v1638, %v1639
    %v1641 = vsub.f32 1.0, %v1640
    %v1642 = vmul.f32 %v1639, %v1641
    %v1643 = vadd.f32 %v1639, %v1642
    %vm1644 = vweird.f32 %v1638
    %vm1645 = vweird.f32 %v1639
    %vm1646 = vmor %vm1644, %vm1645
    %v1647 = vsel %vm1646, %v1639, %v1643
    %v1648 = vand.u32 2147483647, %v1638
    %vm1649 = vcmp.eq.f32.partialorder %v1648, 8.507059e+37
    %v1650 = vand.u32 %v1638, 2147483648
    %v1651 = vor.u32 1.1754944e-38, %v1650
    %v1652 = vsel %vm1649, %v1651, %v1647
    %v1653 = vmul.f32 1.0, %v1652
    %v1655 = vperm.slane %v288, 0
    %v1657 = vadd.f32 %v1610, %v1655
    %v1658 = vmul.f32 %v1631, %v1657
    %v1659 = vrot.slane %v1519, 4
    %v1661 = vadd.f32 %v1659, %v1658
    %v1662 = vtanh.pop %v1661
    %v1663 = vsub.f32 1.0, %v1653
    %v1664 = vmul.f32 %v1663, %v1662
    %v1665 = vmul.f32 %v1653, 0.0
    %v1666 = vadd.f32 %v1664, %v1665
    %1667 = vmatpush.msra.mxu0 %v284
    %1668 = vmatpush.msra.mxu0 %v281
    %1669 = vmatpush.msra.mxu0 %v278
    %1670 = vmatpush.msra.mxu0 %v275
    %1671 = vmatpush.msra.mxu0 %v272
    %1672 = vmatpush.msra.mxu0 %v269
    %1673 = vmatpush.msra.mxu0 %v266
    %1674 = vmatpush.msra.mxu0 %v263
    %1675 = vmatpush.msra.mxu0 %v260
    %1676 = vmatpush.msra.mxu0 %v257
    %1677 = vmatpush.msra.mxu0 %v254
    %1678 = vmatpush.msra.mxu0 %v251
    %1679 = vmatpush.msra.mxu0 %v248
    %1680 = vmatpush.msra.mxu0 %v245
    %1681 = vmatpush.msra.mxu0 %v242
    %1682 = vmatpush.msra.mxu0 %v239
    %1683 = vmatmul.f32.gmra.mxu0 %v1666
    %v1684 = vpop.f32.mrf.mxu0
    %v1685 = vadd.f32 0.0, %v1684
    %1686 = vdwg.mxu0
    %1687 = vmatpush.msra.mxu0 %v285
    %1688 = vmatpush.msra.mxu0 %v282
    %1689 = vmatpush.msra.mxu0 %v279
    %1690 = vmatpush.msra.mxu0 %v276
    %1691 = vmatpush.msra.mxu0 %v273
    %1692 = vmatpush.msra.mxu0 %v270
    %1693 = vmatpush.msra.mxu0 %v267
    %1694 = vmatpush.msra.mxu0 %v264
    %1695 = vmatpush.msra.mxu0 %v261
    %1696 = vmatpush.msra.mxu0 %v258
    %1697 = vmatpush.msra.mxu0 %v255
    %1698 = vmatpush.msra.mxu0 %v252
    %1699 = vmatpush.msra.mxu0 %v249
    %1700 = vmatpush.msra.mxu0 %v246
    %1701 = vmatpush.msra.mxu0 %v243
    %1702 = vmatpush.msra.mxu0 %v240
    %1703 = vmatmul.f32.gmra.mxu0 %v1666
    %v1704 = vpop.f32.mrf.mxu0
    %v1705 = vadd.f32 0.0, %v1704
    %1706 = vdwg.mxu0
    %1707 = vmatpush.msra.mxu0 %v286
    %1708 = vmatpush.msra.mxu0 %v283
    %1709 = vmatpush.msra.mxu0 %v280
    %1710 = vmatpush.msra.mxu0 %v277
    %1711 = vmatpush.msra.mxu0 %v274
    %1712 = vmatpush.msra.mxu0 %v271
    %1713 = vmatpush.msra.mxu0 %v268
    %1714 = vmatpush.msra.mxu0 %v265
    %1715 = vmatpush.msra.mxu0 %v262
    %1716 = vmatpush.msra.mxu0 %v259
    %1717 = vmatpush.msra.mxu0 %v256
    %1718 = vmatpush.msra.mxu0 %v253
    %1719 = vmatpush.msra.mxu0 %v250
    %1720 = vmatpush.msra.mxu0 %v247
    %1721 = vmatpush.msra.mxu0 %v244
    %1722 = vmatpush.msra.mxu0 %v241
    %1723 = vmatmul.f32.gmra.mxu0 %v1666
    %v1724 = vpop.f32.mrf.mxu0
    %v1725 = vadd.f32 0.0, %v1724
    %1726 = vdwg.mxu0
    %v1727 = vadd.f32 %v1524, %v1685
    %v1728 = vxor.u32 %v1727, 2147483648
    %v1729 = vmul.f32 %v1728, 1.442695
    %v1730 = vpow.pop %v1729
    %v1731 = vadd.f32 %v1730, 1.0
    %v1732 = vrcp.pop %v1731
    %v1733 = vmul.f32 %v1731, %v1732
    %v1734 = vsub.f32 1.0, %v1733
    %v1735 = vmul.f32 %v1732, %v1734
    %v1736 = vadd.f32 %v1732, %v1735
    %vm1737 = vweird.f32 %v1731
    %vm1738 = vweird.f32 %v1732
    %vm1739 = vmor %vm1737, %vm1738
    %v1740 = vsel %vm1739, %v1732, %v1736
    %v1741 = vand.u32 2147483647, %v1731
    %vm1742 = vcmp.eq.f32.partialorder %v1741, 8.507059e+37
    %v1743 = vand.u32 %v1731, 2147483648
    %v1744 = vor.u32 1.1754944e-38, %v1743
    %v1745 = vsel %vm1742, %v1744, %v1740
    %v1746 = vmul.f32 1.0, %v1745
    %v1747 = vrot.slane %v1524, 2
    %v1749 = vadd.f32 %v1747, %v1705
    %v1750 = vxor.u32 %v1749, 2147483648
    %v1751 = vmul.f32 %v1750, 1.442695
    %v1752 = vpow.pop %v1751
    %v1753 = vadd.f32 %v1752, 1.0
    %v1754 = vrcp.pop %v1753
    %v1755 = vmul.f32 %v1753, %v1754
    %v1756 = vsub.f32 1.0, %v1755
    %v1757 = vmul.f32 %v1754, %v1756
    %v1758 = vadd.f32 %v1754, %v1757
    %vm1759 = vweird.f32 %v1753
    %vm1760 = vweird.f32 %v1754
    %vm1761 = vmor %vm1759, %vm1760
    %v1762 = vsel %vm1761, %v1754, %v1758
    %v1763 = vand.u32 2147483647, %v1753
    %vm1764 = vcmp.eq.f32.partialorder %v1763, 8.507059e+37
    %v1765 = vand.u32 %v1753, 2147483648
    %v1766 = vor.u32 1.1754944e-38, %v1765
    %v1767 = vsel %vm1764, %v1766, %v1762
    %v1768 = vmul.f32 1.0, %v1767
    %v1769 = vadd.f32 %v1725, %v1655
    %v1770 = vmul.f32 %v1746, %v1769
    %v1771 = vrot.slane %v1524, 4
    %v1773 = vadd.f32 %v1771, %v1770
    %v1774 = vtanh.pop %v1773
    %v1775 = vsub.f32 1.0, %v1768
    %v1776 = vmul.f32 %v1775, %v1774
    %v1777 = vmul.f32 %v1768, %v1666
    %v1778 = vadd.f32 %v1776, %v1777
    %1779 = vmatpush.msra.mxu0 %v284
    %1780 = vmatpush.msra.mxu0 %v281
    %1781 = vmatpush.msra.mxu0 %v278
    %1782 = vmatpush.msra.mxu0 %v275
    %1783 = vmatpush.msra.mxu0 %v272
    %1784 = vmatpush.msra.mxu0 %v269
    %1785 = vmatpush.msra.mxu0 %v266
    %1786 = vmatpush.msra.mxu0 %v263
    %1787 = vmatpush.msra.mxu0 %v260
    %1788 = vmatpush.msra.mxu0 %v257
    %1789 = vmatpush.msra.mxu0 %v254
    %1790 = vmatpush.msra.mxu0 %v251
    %1791 = vmatpush.msra.mxu0 %v248
    %1792 = vmatpush.msra.mxu0 %v245
    %1793 = vmatpush.msra.mxu0 %v242
    %1794 = vmatpush.msra.mxu0 %v239
    %1795 = vmatmul.f32.gmra.mxu0 %v1778
    %v1796 = vpop.f32.mrf.mxu0
    %v1797 = vadd.f32 0.0, %v1796
    %1798 = vdwg.mxu0
    %1799 = vmatpush.msra.mxu0 %v285
    %1800 = vmatpush.msra.mxu0 %v282
    %1801 = vmatpush.msra.mxu0 %v279
    %1802 = vmatpush.msra.mxu0 %v276
    %1803 = vmatpush.msra.mxu0 %v273
    %1804 = vmatpush.msra.mxu0 %v270
    %1805 = vmatpush.msra.mxu0 %v267
    %1806 = vmatpush.msra.mxu0 %v264
    %1807 = vmatpush.msra.mxu0 %v261
    %1808 = vmatpush.msra.mxu0 %v258
    %1809 = vmatpush.msra.mxu0 %v255
    %1810 = vmatpush.msra.mxu0 %v252
    %1811 = vmatpush.msra.mxu0 %v249
    %1812 = vmatpush.msra.mxu0 %v246
    %1813 = vmatpush.msra.mxu0 %v243
    %1814 = vmatpush.msra.mxu0 %v240
    %1815 = vmatmul.f32.gmra.mxu0 %v1778
    %v1816 = vpop.f32.mrf.mxu0
    %v1817 = vadd.f32 0.0, %v1816
    %1818 = vdwg.mxu0
    %1819 = vmatpush.msra.mxu0 %v286
    %1820 = vmatpush.msra.mxu0 %v283
    %1821 = vmatpush.msra.mxu0 %v280
    %1822 = vmatpush.msra.mxu0 %v277
    %1823 = vmatpush.msra.mxu0 %v274
    %1824 = vmatpush.msra.mxu0 %v271
    %1825 = vmatpush.msra.mxu0 %v268
    %1826 = vmatpush.msra.mxu0 %v265
    %1827 = vmatpush.msra.mxu0 %v262
    %1828 = vmatpush.msra.mxu0 %v259
    %1829 = vmatpush.msra.mxu0 %v256
    %1830 = vmatpush.msra.mxu0 %v253
    %1831 = vmatpush.msra.mxu0 %v250
    %1832 = vmatpush.msra.mxu0 %v247
    %1833 = vmatpush.msra.mxu0 %v244
    %1834 = vmatpush.msra.mxu0 %v241
    %1835 = vmatmul.f32.gmra.mxu0 %v1778
    %v1836 = vpop.f32.mrf.mxu0
    %v1837 = vadd.f32 0.0, %v1836
    %1838 = vdwg.mxu0
    %v1839 = vadd.f32 %v1528, %v1797
    %v1840 = vxor.u32 %v1839, 2147483648
    %v1841 = vmul.f32 %v1840, 1.442695
    %v1842 = vpow.pop %v1841
    %v1843 = vadd.f32 %v1842, 1.0
    %v1844 = vrcp.pop %v1843
    %v1845 = vmul.f32 %v1843, %v1844
    %v1846 = vsub.f32 1.0, %v1845
    %v1847 = vmul.f32 %v1844, %v1846
    %v1848 = vadd.f32 %v1844, %v1847
    %vm1849 = vweird.f32 %v1843
    %vm1850 = vweird.f32 %v1844
    %vm1851 = vmor %vm1849, %vm1850
    %v1852 = vsel %vm1851, %v1844, %v1848
    %v1853 = vand.u32 2147483647, %v1843
    %vm1854 = vcmp.eq.f32.partialorder %v1853, 8.507059e+37
    %v1855 = vand.u32 %v1843, 2147483648
    %v1856 = vor.u32 1.1754944e-38, %v1855
    %v1857 = vsel %vm1854, %v1856, %v1852
    %v1858 = vmul.f32 1.0, %v1857
    %v1859 = vrot.slane %v1528, 2
    %v1861 = vadd.f32 %v1859, %v1817
    %v1862 = vxor.u32 %v1861, 2147483648
    %v1863 = vmul.f32 %v1862, 1.442695
    %v1864 = vpow.pop %v1863
    %v1865 = vadd.f32 %v1864, 1.0
    %v1866 = vrcp.pop %v1865
    %v1867 = vmul.f32 %v1865, %v1866
    %v1868 = vsub.f32 1.0, %v1867
    %v1869 = vmul.f32 %v1866, %v1868
    %v1870 = vadd.f32 %v1866, %v1869
    %vm1871 = vweird.f32 %v1865
    %vm1872 = vweird.f32 %v1866
    %vm1873 = vmor %vm1871, %vm1872
    %v1874 = vsel %vm1873, %v1866, %v1870
    %v1875 = vand.u32 2147483647, %v1865
    %vm1876 = vcmp.eq.f32.partialorder %v1875, 8.507059e+37
    %v1877 = vand.u32 %v1865, 2147483648
    %v1878 = vor.u32 1.1754944e-38, %v1877
    %v1879 = vsel %vm1876, %v1878, %v1874
    %v1880 = vmul.f32 1.0, %v1879
    %v1881 = vadd.f32 %v1837, %v1655
    %v1882 = vmul.f32 %v1858, %v1881
    %v1883 = vrot.slane %v1528, 4
    %v1885 = vadd.f32 %v1883, %v1882
    %v1886 = vtanh.pop %v1885
    %v1887 = vsub.f32 1.0, %v1880
    %v1888 = vmul.f32 %v1887, %v1886
    %v1889 = vmul.f32 %v1880, %v1778
    %v1890 = vadd.f32 %v1888, %v1889
    %1891 = vmatpush.msra.mxu0 %v284
    %1892 = vmatpush.msra.mxu0 %v281
    %1893 = vmatpush.msra.mxu0 %v278
    %1894 = vmatpush.msra.mxu0 %v275
    %1895 = vmatpush.msra.mxu0 %v272
    %1896 = vmatpush.msra.mxu0 %v269
    %1897 = vmatpush.msra.mxu0 %v266
    %1898 = vmatpush.msra.mxu0 %v263
    %1899 = vmatpush.msra.mxu0 %v260
    %1900 = vmatpush.msra.mxu0 %v257
    %1901 = vmatpush.msra.mxu0 %v254
    %1902 = vmatpush.msra.mxu0 %v251
    %1903 = vmatpush.msra.mxu0 %v248
    %1904 = vmatpush.msra.mxu0 %v245
    %1905 = vmatpush.msra.mxu0 %v242
    %1906 = vmatpush.msra.mxu0 %v239
    %1907 = vmatmul.f32.gmra.mxu0 %v1890
    %v1908 = vpop.f32.mrf.mxu0
    %v1909 = vadd.f32 0.0, %v1908
    %1910 = vdwg.mxu0
    %1911 = vmatpush.msra.mxu0 %v285
    %1912 = vmatpush.msra.mxu0 %v282
    %1913 = vmatpush.msra.mxu0 %v279
    %1914 = vmatpush.msra.mxu0 %v276
    %1915 = vmatpush.msra.mxu0 %v273
    %1916 = vmatpush.msra.mxu0 %v270
    %1917 = vmatpush.msra.mxu0 %v267
    %1918 = vmatpush.msra.mxu0 %v264
    %1919 = vmatpush.msra.mxu0 %v261
    %1920 = vmatpush.msra.mxu0 %v258
    %1921 = vmatpush.msra.mxu0 %v255
    %1922 = vmatpush.msra.mxu0 %v252
    %1923 = vmatpush.msra.mxu0 %v249
    %1924 = vmatpush.msra.mxu0 %v246
    %1925 = vmatpush.msra.mxu0 %v243
    %1926 = vmatpush.msra.mxu0 %v240
    %1927 = vmatmul.f32.gmra.mxu0 %v1890
    %v1928 = vpop.f32.mrf.mxu0
    %v1929 = vadd.f32 0.0, %v1928
    %1930 = vdwg.mxu0
    %1931 = vmatpush.msra.mxu0 %v286
    %1932 = vmatpush.msra.mxu0 %v283
    %1933 = vmatpush.msra.mxu0 %v280
    %1934 = vmatpush.msra.mxu0 %v277
    %1935 = vmatpush.msra.mxu0 %v274
    %1936 = vmatpush.msra.mxu0 %v271
    %1937 = vmatpush.msra.mxu0 %v268
    %1938 = vmatpush.msra.mxu0 %v265
    %1939 = vmatpush.msra.mxu0 %v262
    %1940 = vmatpush.msra.mxu0 %v259
    %1941 = vmatpush.msra.mxu0 %v256
    %1942 = vmatpush.msra.mxu0 %v253
    %1943 = vmatpush.msra.mxu0 %v250
    %1944 = vmatpush.msra.mxu0 %v247
    %1945 = vmatpush.msra.mxu0 %v244
    %1946 = vmatpush.msra.mxu0 %v241
    %1947 = vmatmul.f32.gmra.mxu0 %v1890
    %v1948 = vpop.f32.mrf.mxu0
    %v1949 = vadd.f32 0.0, %v1948
    %1950 = vdwg.mxu0
    %v1951 = vadd.f32 %v1532, %v1909
    %v1952 = vxor.u32 %v1951, 2147483648
    %v1953 = vmul.f32 %v1952, 1.442695
    %v1954 = vpow.pop %v1953
    %v1955 = vadd.f32 %v1954, 1.0
    %v1956 = vrcp.pop %v1955
    %v1957 = vmul.f32 %v1955, %v1956
    %v1958 = vsub.f32 1.0, %v1957
    %v1959 = vmul.f32 %v1956, %v1958
    %v1960 = vadd.f32 %v1956, %v1959
    %vm1961 = vweird.f32 %v1955
    %vm1962 = vweird.f32 %v1956
    %vm1963 = vmor %vm1961, %vm1962
    %v1964 = vsel %vm1963, %v1956, %v1960
    %v1965 = vand.u32 2147483647, %v1955
    %vm1966 = vcmp.eq.f32.partialorder %v1965, 8.507059e+37
    %v1967 = vand.u32 %v1955, 2147483648
    %v1968 = vor.u32 1.1754944e-38, %v1967
    %v1969 = vsel %vm1966, %v1968, %v1964
    %v1970 = vmul.f32 1.0, %v1969
    %v1971 = vrot.slane %v1532, 2
    %v1973 = vadd.f32 %v1971, %v1929
    %v1974 = vxor.u32 %v1973, 2147483648
    %v1975 = vmul.f32 %v1974, 1.442695
    %v1976 = vpow.pop %v1975
    %v1977 = vadd.f32 %v1976, 1.0
    %v1978 = vrcp.pop %v1977
    %v1979 = vmul.f32 %v1977, %v1978
    %v1980 = vsub.f32 1.0, %v1979
    %v1981 = vmul.f32 %v1978, %v1980
    %v1982 = vadd.f32 %v1978, %v1981
    %vm1983 = vweird.f32 %v1977
    %vm1984 = vweird.f32 %v1978
    %vm1985 = vmor %vm1983, %vm1984
    %v1986 = vsel %vm1985, %v1978, %v1982
    %v1987 = vand.u32 2147483647, %v1977
    %vm1988 = vcmp.eq.f32.partialorder %v1987, 8.507059e+37
    %v1989 = vand.u32 %v1977, 2147483648
    %v1990 = vor.u32 1.1754944e-38, %v1989
    %v1991 = vsel %vm1988, %v1990, %v1986
    %v1992 = vmul.f32 1.0, %v1991
    %v1993 = vadd.f32 %v1949, %v1655
    %v1994 = vmul.f32 %v1970, %v1993
    %v1995 = vrot.slane %v1532, 4
    %v1997 = vadd.f32 %v1995, %v1994
    %v1998 = vtanh.pop %v1997
    %v1999 = vsub.f32 1.0, %v1992
    %v2000 = vmul.f32 %v1999, %v1998
    %v2001 = vmul.f32 %v1992, %v1890
    %v2002 = vadd.f32 %v2000, %v2001
    %2003 = vmatpush.msra.mxu0 %v284
    %2004 = vmatpush.msra.mxu0 %v281
    %2005 = vmatpush.msra.mxu0 %v278
    %2006 = vmatpush.msra.mxu0 %v275
    %2007 = vmatpush.msra.mxu0 %v272
    %2008 = vmatpush.msra.mxu0 %v269
    %2009 = vmatpush.msra.mxu0 %v266
    %2010 = vmatpush.msra.mxu0 %v263
    %2011 = vmatpush.msra.mxu0 %v260
    %2012 = vmatpush.msra.mxu0 %v257
    %2013 = vmatpush.msra.mxu0 %v254
    %2014 = vmatpush.msra.mxu0 %v251
    %2015 = vmatpush.msra.mxu0 %v248
    %2016 = vmatpush.msra.mxu0 %v245
    %2017 = vmatpush.msra.mxu0 %v242
    %2018 = vmatpush.msra.mxu0 %v239
    %2019 = vmatmul.f32.gmra.mxu0 %v2002
    %v2020 = vpop.f32.mrf.mxu0
    %v2021 = vadd.f32 0.0, %v2020
    %2022 = vdwg.mxu0
    %2023 = vmatpush.msra.mxu0 %v285
    %2024 = vmatpush.msra.mxu0 %v282
    %2025 = vmatpush.msra.mxu0 %v279
    %2026 = vmatpush.msra.mxu0 %v276
    %2027 = vmatpush.msra.mxu0 %v273
    %2028 = vmatpush.msra.mxu0 %v270
    %2029 = vmatpush.msra.mxu0 %v267
    %2030 = vmatpush.msra.mxu0 %v264
    %2031 = vmatpush.msra.mxu0 %v261
    %2032 = vmatpush.msra.mxu0 %v258
    %2033 = vmatpush.msra.mxu0 %v255
    %2034 = vmatpush.msra.mxu0 %v252
    %2035 = vmatpush.msra.mxu0 %v249
    %2036 = vmatpush.msra.mxu0 %v246
    %2037 = vmatpush.msra.mxu0 %v243
    %2038 = vmatpush.msra.mxu0 %v240
    %2039 = vmatmul.f32.gmra.mxu0 %v2002
    %v2040 = vpop.f32.mrf.mxu0
    %v2041 = vadd.f32 0.0, %v2040
    %2042 = vdwg.mxu0
    %2043 = vmatpush.msra.mxu0 %v286
    %2044 = vmatpush.msra.mxu0 %v283
    %2045 = vmatpush.msra.mxu0 %v280
    %2046 = vmatpush.msra.mxu0 %v277
    %2047 = vmatpush.msra.mxu0 %v274
    %2048 = vmatpush.msra.mxu0 %v271
    %2049 = vmatpush.msra.mxu0 %v268
    %2050 = vmatpush.msra.mxu0 %v265
    %2051 = vmatpush.msra.mxu0 %v262
    %2052 = vmatpush.msra.mxu0 %v259
    %2053 = vmatpush.msra.mxu0 %v256
    %2054 = vmatpush.msra.mxu0 %v253
    %2055 = vmatpush.msra.mxu0 %v250
    %2056 = vmatpush.msra.mxu0 %v247
    %2057 = vmatpush.msra.mxu0 %v244
    %2058 = vmatpush.msra.mxu0 %v241
    %2059 = vmatmul.f32.gmra.mxu0 %v2002
    %v2060 = vpop.f32.mrf.mxu0
    %v2061 = vadd.f32 0.0, %v2060
    %2062 = vdwg.mxu0
    %v2063 = vadd.f32 %v1534, %v2021
    %v2064 = vxor.u32 %v2063, 2147483648
    %v2065 = vmul.f32 %v2064, 1.442695
    %v2066 = vpow.pop %v2065
    %v2067 = vadd.f32 %v2066, 1.0
    %v2068 = vrcp.pop %v2067
    %v2069 = vmul.f32 %v2067, %v2068
    %v2070 = vsub.f32 1.0, %v2069
    %v2071 = vmul.f32 %v2068, %v2070
    %v2072 = vadd.f32 %v2068, %v2071
    %vm2073 = vweird.f32 %v2067
    %vm2074 = vweird.f32 %v2068
    %vm2075 = vmor %vm2073, %vm2074
    %v2076 = vsel %vm2075, %v2068, %v2072
    %v2077 = vand.u32 2147483647, %v2067
    %vm2078 = vcmp.eq.f32.partialorder %v2077, 8.507059e+37
    %v2079 = vand.u32 %v2067, 2147483648
    %v2080 = vor.u32 1.1754944e-38, %v2079
    %v2081 = vsel %vm2078, %v2080, %v2076
    %v2082 = vmul.f32 1.0, %v2081
    %v2083 = vrot.slane %v1534, 2
    %v2085 = vadd.f32 %v2083, %v2041
    %v2086 = vxor.u32 %v2085, 2147483648
    %v2087 = vmul.f32 %v2086, 1.442695
    %v2088 = vpow.pop %v2087
    %v2089 = vadd.f32 %v2088, 1.0
    %v2090 = vrcp.pop %v2089
    %v2091 = vmul.f32 %v2089, %v2090
    %v2092 = vsub.f32 1.0, %v2091
    %v2093 = vmul.f32 %v2090, %v2092
    %v2094 = vadd.f32 %v2090, %v2093
    %vm2095 = vweird.f32 %v2089
    %vm2096 = vweird.f32 %v2090
    %vm2097 = vmor %vm2095, %vm2096
    %v2098 = vsel %vm2097, %v2090, %v2094
    %v2099 = vand.u32 2147483647, %v2089
    %vm2100 = vcmp.eq.f32.partialorder %v2099, 8.507059e+37
    %v2101 = vand.u32 %v2089, 2147483648
    %v2102 = vor.u32 1.1754944e-38, %v2101
    %v2103 = vsel %vm2100, %v2102, %v2098
    %v2104 = vmul.f32 1.0, %v2103
    %v2105 = vadd.f32 %v2061, %v1655
    %v2106 = vmul.f32 %v2082, %v2105
    %v2107 = vrot.slane %v1534, 4
    %v2109 = vadd.f32 %v2107, %v2106
    %v2110 = vtanh.pop %v2109
    %v2111 = vsub.f32 1.0, %v2104
    %v2112 = vmul.f32 %v2111, %v2110
    %v2113 = vmul.f32 %v2104, %v2002
    %v2114 = vadd.f32 %v2112, %v2113
    %2115 = vmatpush.msra.mxu0 %v284
    %2116 = vmatpush.msra.mxu0 %v281
    %2117 = vmatpush.msra.mxu0 %v278
    %2118 = vmatpush.msra.mxu0 %v275
    %2119 = vmatpush.msra.mxu0 %v272
    %2120 = vmatpush.msra.mxu0 %v269
    %2121 = vmatpush.msra.mxu0 %v266
    %2122 = vmatpush.msra.mxu0 %v263
    %2123 = vmatpush.msra.mxu0 %v260
    %2124 = vmatpush.msra.mxu0 %v257
    %2125 = vmatpush.msra.mxu0 %v254
    %2126 = vmatpush.msra.mxu0 %v251
    %2127 = vmatpush.msra.mxu0 %v248
    %2128 = vmatpush.msra.mxu0 %v245
    %2129 = vmatpush.msra.mxu0 %v242
    %2130 = vmatpush.msra.mxu0 %v239
    %2131 = vmatmul.f32.gmra.mxu0 %v2114
    %v2132 = vpop.f32.mrf.mxu0
    %v2133 = vadd.f32 0.0, %v2132
    %2134 = vdwg.mxu0
    %2135 = vmatpush.msra.mxu0 %v285
    %2136 = vmatpush.msra.mxu0 %v282
    %2137 = vmatpush.msra.mxu0 %v279
    %2138 = vmatpush.msra.mxu0 %v276
    %2139 = vmatpush.msra.mxu0 %v273
    %2140 = vmatpush.msra.mxu0 %v270
    %2141 = vmatpush.msra.mxu0 %v267
    %2142 = vmatpush.msra.mxu0 %v264
    %2143 = vmatpush.msra.mxu0 %v261
    %2144 = vmatpush.msra.mxu0 %v258
    %2145 = vmatpush.msra.mxu0 %v255
    %2146 = vmatpush.msra.mxu0 %v252
    %2147 = vmatpush.msra.mxu0 %v249
    %2148 = vmatpush.msra.mxu0 %v246
    %2149 = vmatpush.msra.mxu0 %v243
    %2150 = vmatpush.msra.mxu0 %v240
    %2151 = vmatmul.f32.gmra.mxu0 %v2114
    %v2152 = vpop.f32.mrf.mxu0
    %v2153 = vadd.f32 0.0, %v2152
    %2154 = vdwg.mxu0
    %2155 = vmatpush.msra.mxu0 %v286
    %2156 = vmatpush.msra.mxu0 %v283
    %2157 = vmatpush.msra.mxu0 %v280
    %2158 = vmatpush.msra.mxu0 %v277
    %2159 = vmatpush.msra.mxu0 %v274
    %2160 = vmatpush.msra.mxu0 %v271
    %2161 = vmatpush.msra.mxu0 %v268
    %2162 = vmatpush.msra.mxu0 %v265
    %2163 = vmatpush.msra.mxu0 %v262
    %2164 = vmatpush.msra.mxu0 %v259
    %2165 = vmatpush.msra.mxu0 %v256
    %2166 = vmatpush.msra.mxu0 %v253
    %2167 = vmatpush.msra.mxu0 %v250
    %2168 = vmatpush.msra.mxu0 %v247
    %2169 = vmatpush.msra.mxu0 %v244
    %2170 = vmatpush.msra.mxu0 %v241
    %2171 = vmatmul.f32.gmra.mxu0 %v2114
    %v2172 = vpop.f32.mrf.mxu0
    %v2173 = vadd.f32 0.0, %v2172
    %2174 = vdwg.mxu0
    %v2175 = vadd.f32 %v1537, %v2133
    %v2176 = vxor.u32 %v2175, 2147483648
    %v2177 = vmul.f32 %v2176, 1.442695
    %v2178 = vpow.pop %v2177
    %v2179 = vadd.f32 %v2178, 1.0
    %v2180 = vrcp.pop %v2179
    %v2181 = vmul.f32 %v2179, %v2180
    %v2182 = vsub.f32 1.0, %v2181
    %v2183 = vmul.f32 %v2180, %v2182
    %v2184 = vadd.f32 %v2180, %v2183
    %vm2185 = vweird.f32 %v2179
    %vm2186 = vweird.f32 %v2180
    %vm2187 = vmor %vm2185, %vm2186
    %v2188 = vsel %vm2187, %v2180, %v2184
    %v2189 = vand.u32 2147483647, %v2179
    %vm2190 = vcmp.eq.f32.partialorder %v2189, 8.507059e+37
    %v2191 = vand.u32 %v2179, 2147483648
    %v2192 = vor.u32 1.1754944e-38, %v2191
    %v2193 = vsel %vm2190, %v2192, %v2188
    %v2194 = vmul.f32 1.0, %v2193
    %v2195 = vrot.slane %v1537, 2
    %v2197 = vadd.f32 %v2195, %v2153
    %v2198 = vxor.u32 %v2197, 2147483648
    %v2199 = vmul.f32 %v2198, 1.442695
    %v2200 = vpow.pop %v2199
    %v2201 = vadd.f32 %v2200, 1.0
    %v2202 = vrcp.pop %v2201
    %v2203 = vmul.f32 %v2201, %v2202
    %v2204 = vsub.f32 1.0, %v2203
    %v2205 = vmul.f32 %v2202, %v2204
    %v2206 = vadd.f32 %v2202, %v2205
    %vm2207 = vweird.f32 %v2201
    %vm2208 = vweird.f32 %v2202
    %vm2209 = vmor %vm2207, %vm2208
    %v2210 = vsel %vm2209, %v2202, %v2206
    %v2211 = vand.u32 2147483647, %v2201
    %vm2212 = vcmp.eq.f32.partialorder %v2211, 8.507059e+37
    %v2213 = vand.u32 %v2201, 2147483648
    %v2214 = vor.u32 1.1754944e-38, %v2213
    %v2215 = vsel %vm2212, %v2214, %v2210
    %v2216 = vmul.f32 1.0, %v2215
    %v2217 = vadd.f32 %v2173, %v1655
    %v2218 = vmul.f32 %v2194, %v2217
    %v2219 = vrot.slane %v1537, 4
    %v2221 = vadd.f32 %v2219, %v2218
    %v2222 = vtanh.pop %v2221
    %v2223 = vsub.f32 1.0, %v2216
    %v2224 = vmul.f32 %v2223, %v2222
    %v2225 = vmul.f32 %v2216, %v2114
    %v2226 = vadd.f32 %v2224, %v2225
    %2227 = vmatpush.msra.mxu0 %v284
    %2228 = vmatpush.msra.mxu0 %v281
    %2229 = vmatpush.msra.mxu0 %v278
    %2230 = vmatpush.msra.mxu0 %v275
    %2231 = vmatpush.msra.mxu0 %v272
    %2232 = vmatpush.msra.mxu0 %v269
    %2233 = vmatpush.msra.mxu0 %v266
    %2234 = vmatpush.msra.mxu0 %v263
    %2235 = vmatpush.msra.mxu0 %v260
    %2236 = vmatpush.msra.mxu0 %v257
    %2237 = vmatpush.msra.mxu0 %v254
    %2238 = vmatpush.msra.mxu0 %v251
    %2239 = vmatpush.msra.mxu0 %v248
    %2240 = vmatpush.msra.mxu0 %v245
    %2241 = vmatpush.msra.mxu0 %v242
    %2242 = vmatpush.msra.mxu0 %v239
    %2243 = vmatmul.f32.gmra.mxu0 %v2226
    %v2244 = vpop.f32.mrf.mxu0
    %v2245 = vadd.f32 0.0, %v2244
    %2246 = vdwg.mxu0
    %2247 = vmatpush.msra.mxu0 %v285
    %2248 = vmatpush.msra.mxu0 %v282
    %2249 = vmatpush.msra.mxu0 %v279
    %2250 = vmatpush.msra.mxu0 %v276
    %2251 = vmatpush.msra.mxu0 %v273
    %2252 = vmatpush.msra.mxu0 %v270
    %2253 = vmatpush.msra.mxu0 %v267
    %2254 = vmatpush.msra.mxu0 %v264
    %2255 = vmatpush.msra.mxu0 %v261
    %2256 = vmatpush.msra.mxu0 %v258
    %2257 = vmatpush.msra.mxu0 %v255
    %2258 = vmatpush.msra.mxu0 %v252
    %2259 = vmatpush.msra.mxu0 %v249
    %2260 = vmatpush.msra.mxu0 %v246
    %2261 = vmatpush.msra.mxu0 %v243
    %2262 = vmatpush.msra.mxu0 %v240
    %2263 = vmatmul.f32.gmra.mxu0 %v2226
    %v2264 = vpop.f32.mrf.mxu0
    %v2265 = vadd.f32 0.0, %v2264
    %2266 = vdwg.mxu0
    %2267 = vmatpush.msra.mxu0 %v286
    %2268 = vmatpush.msra.mxu0 %v283
    %2269 = vmatpush.msra.mxu0 %v280
    %2270 = vmatpush.msra.mxu0 %v277
    %2271 = vmatpush.msra.mxu0 %v274
    %2272 = vmatpush.msra.mxu0 %v271
    %2273 = vmatpush.msra.mxu0 %v268
    %2274 = vmatpush.msra.mxu0 %v265
    %2275 = vmatpush.msra.mxu0 %v262
    %2276 = vmatpush.msra.mxu0 %v259
    %2277 = vmatpush.msra.mxu0 %v256
    %2278 = vmatpush.msra.mxu0 %v253
    %2279 = vmatpush.msra.mxu0 %v250
    %2280 = vmatpush.msra.mxu0 %v247
    %2281 = vmatpush.msra.mxu0 %v244
    %2282 = vmatpush.msra.mxu0 %v241
    %2283 = vmatmul.f32.gmra.mxu0 %v2226
    %v2284 = vpop.f32.mrf.mxu0
    %v2285 = vadd.f32 0.0, %v2284
    %2286 = vdwg.mxu0
    %v2287 = vadd.f32 %v1540, %v2245
    %v2288 = vxor.u32 %v2287, 2147483648
    %v2289 = vmul.f32 %v2288, 1.442695
    %v2290 = vpow.pop %v2289
    %v2291 = vadd.f32 %v2290, 1.0
    %v2292 = vrcp.pop %v2291
    %v2293 = vmul.f32 %v2291, %v2292
    %v2294 = vsub.f32 1.0, %v2293
    %v2295 = vmul.f32 %v2292, %v2294
    %v2296 = vadd.f32 %v2292, %v2295
    %vm2297 = vweird.f32 %v2291
    %vm2298 = vweird.f32 %v2292
    %vm2299 = vmor %vm2297, %vm2298
    %v2300 = vsel %vm2299, %v2292, %v2296
    %v2301 = vand.u32 2147483647, %v2291
    %vm2302 = vcmp.eq.f32.partialorder %v2301, 8.507059e+37
    %v2303 = vand.u32 %v2291, 2147483648
    %v2304 = vor.u32 1.1754944e-38, %v2303
    %v2305 = vsel %vm2302, %v2304, %v2300
    %v2306 = vmul.f32 1.0, %v2305
    %v2307 = vrot.slane %v1540, 2
    %v2309 = vadd.f32 %v2307, %v2265
    %v2310 = vxor.u32 %v2309, 2147483648
    %v2311 = vmul.f32 %v2310, 1.442695
    %v2312 = vpow.pop %v2311
    %v2313 = vadd.f32 %v2312, 1.0
    %v2314 = vrcp.pop %v2313
    %v2315 = vmul.f32 %v2313, %v2314
    %v2316 = vsub.f32 1.0, %v2315
    %v2317 = vmul.f32 %v2314, %v2316
    %v2318 = vadd.f32 %v2314, %v2317
    %vm2319 = vweird.f32 %v2313
    %vm2320 = vweird.f32 %v2314
    %vm2321 = vmor %vm2319, %vm2320
    %v2322 = vsel %vm2321, %v2314, %v2318
    %v2323 = vand.u32 2147483647, %v2313
    %vm2324 = vcmp.eq.f32.partialorder %v2323, 8.507059e+37
    %v2325 = vand.u32 %v2313, 2147483648
    %v2326 = vor.u32 1.1754944e-38, %v2325
    %v2327 = vsel %vm2324, %v2326, %v2322
    %v2328 = vmul.f32 1.0, %v2327
    %v2329 = vadd.f32 %v2285, %v1655
    %v2330 = vmul.f32 %v2306, %v2329
    %v2331 = vrot.slane %v1540, 4
    %v2333 = vadd.f32 %v2331, %v2330
    %v2334 = vtanh.pop %v2333
    %v2335 = vsub.f32 1.0, %v2328
    %v2336 = vmul.f32 %v2335, %v2334
    %v2337 = vmul.f32 %v2328, %v2226
    %v2338 = vadd.f32 %v2336, %v2337
    %2339 = vmatpush.msra.mxu0 %v284
    %2340 = vmatpush.msra.mxu0 %v281
    %2341 = vmatpush.msra.mxu0 %v278
    %2342 = vmatpush.msra.mxu0 %v275
    %2343 = vmatpush.msra.mxu0 %v272
    %2344 = vmatpush.msra.mxu0 %v269
    %2345 = vmatpush.msra.mxu0 %v266
    %2346 = vmatpush.msra.mxu0 %v263
    %2347 = vmatpush.msra.mxu0 %v260
    %2348 = vmatpush.msra.mxu0 %v257
    %2349 = vmatpush.msra.mxu0 %v254
    %2350 = vmatpush.msra.mxu0 %v251
    %2351 = vmatpush.msra.mxu0 %v248
    %2352 = vmatpush.msra.mxu0 %v245
    %2353 = vmatpush.msra.mxu0 %v242
    %2354 = vmatpush.msra.mxu0 %v239
    %2355 = vmatmul.f32.gmra.mxu0 %v2338
    %v2356 = vpop.f32.mrf.mxu0
    %v2357 = vadd.f32 0.0, %v2356
    %2358 = vdwg.mxu0
    %2359 = vmatpush.msra.mxu0 %v285
    %2360 = vmatpush.msra.mxu0 %v282
    %2361 = vmatpush.msra.mxu0 %v279
    %2362 = vmatpush.msra.mxu0 %v276
    %2363 = vmatpush.msra.mxu0 %v273
    %2364 = vmatpush.msra.mxu0 %v270
    %2365 = vmatpush.msra.mxu0 %v267
    %2366 = vmatpush.msra.mxu0 %v264
    %2367 = vmatpush.msra.mxu0 %v261
    %2368 = vmatpush.msra.mxu0 %v258
    %2369 = vmatpush.msra.mxu0 %v255
    %2370 = vmatpush.msra.mxu0 %v252
    %2371 = vmatpush.msra.mxu0 %v249
    %2372 = vmatpush.msra.mxu0 %v246
    %2373 = vmatpush.msra.mxu0 %v243
    %2374 = vmatpush.msra.mxu0 %v240
    %2375 = vmatmul.f32.gmra.mxu0 %v2338
    %v2376 = vpop.f32.mrf.mxu0
    %v2377 = vadd.f32 0.0, %v2376
    %2378 = vdwg.mxu0
    %2379 = vmatpush.msra.mxu0 %v286
    %2380 = vmatpush.msra.mxu0 %v283
    %2381 = vmatpush.msra.mxu0 %v280
    %2382 = vmatpush.msra.mxu0 %v277
    %2383 = vmatpush.msra.mxu0 %v274
    %2384 = vmatpush.msra.mxu0 %v271
    %2385 = vmatpush.msra.mxu0 %v268
    %2386 = vmatpush.msra.mxu0 %v265
    %2387 = vmatpush.msra.mxu0 %v262
    %2388 = vmatpush.msra.mxu0 %v259
    %2389 = vmatpush.msra.mxu0 %v256
    %2390 = vmatpush.msra.mxu0 %v253
    %2391 = vmatpush.msra.mxu0 %v250
    %2392 = vmatpush.msra.mxu0 %v247
    %2393 = vmatpush.msra.mxu0 %v244
    %2394 = vmatpush.msra.mxu0 %v241
    %2395 = vmatmul.f32.gmra.mxu0 %v2338
    %v2396 = vpop.f32.mrf.mxu0
    %v2397 = vadd.f32 0.0, %v2396
    %2398 = vdwg.mxu0
    %v2399 = vadd.f32 %v1543, %v2357
    %v2400 = vxor.u32 %v2399, 2147483648
    %v2401 = vmul.f32 %v2400, 1.442695
    %v2402 = vpow.pop %v2401
    %v2403 = vadd.f32 %v2402, 1.0
    %v2404 = vrcp.pop %v2403
    %v2405 = vmul.f32 %v2403, %v2404
    %v2406 = vsub.f32 1.0, %v2405
    %v2407 = vmul.f32 %v2404, %v2406
    %v2408 = vadd.f32 %v2404, %v2407
    %vm2409 = vweird.f32 %v2403
    %vm2410 = vweird.f32 %v2404
    %vm2411 = vmor %vm2409, %vm2410
    %v2412 = vsel %vm2411, %v2404, %v2408
    %v2413 = vand.u32 2147483647, %v2403
    %vm2414 = vcmp.eq.f32.partialorder %v2413, 8.507059e+37
    %v2415 = vand.u32 %v2403, 2147483648
    %v2416 = vor.u32 1.1754944e-38, %v2415
    %v2417 = vsel %vm2414, %v2416, %v2412
    %v2418 = vmul.f32 1.0, %v2417
    %v2419 = vrot.slane %v1543, 2
    %v2421 = vadd.f32 %v2419, %v2377
    %v2422 = vxor.u32 %v2421, 2147483648
    %v2423 = vmul.f32 %v2422, 1.442695
    %v2424 = vpow.pop %v2423
    %v2425 = vadd.f32 %v2424, 1.0
    %v2426 = vrcp.pop %v2425
    %v2427 = vmul.f32 %v2425, %v2426
    %v2428 = vsub.f32 1.0, %v2427
    %v2429 = vmul.f32 %v2426, %v2428
    %v2430 = vadd.f32 %v2426, %v2429
    %vm2431 = vweird.f32 %v2425
    %vm2432 = vweird.f32 %v2426
    %vm2433 = vmor %vm2431, %vm2432
    %v2434 = vsel %vm2433, %v2426, %v2430
    %v2435 = vand.u32 2147483647, %v2425
    %vm2436 = vcmp.eq.f32.partialorder %v2435, 8.507059e+37
    %v2437 = vand.u32 %v2425, 2147483648
    %v2438 = vor.u32 1.1754944e-38, %v2437
    %v2439 = vsel %vm2436, %v2438, %v2434
    %v2440 = vmul.f32 1.0, %v2439
    %v2441 = vadd.f32 %v2397, %v1655
    %v2442 = vmul.f32 %v2418, %v2441
    %v2443 = vrot.slane %v1543, 4
    %v2445 = vadd.f32 %v2443, %v2442
    %v2446 = vtanh.pop %v2445
    %v2447 = vsub.f32 1.0, %v2440
    %v2448 = vmul.f32 %v2447, %v2446
    %v2449 = vmul.f32 %v2440, %v2338
    %v2450 = vadd.f32 %v2448, %v2449
    %v2451 = vld [vmem:[%s9] sm:$0x1]
    %v2453 = vperm.slane %v2451, 0
    %v2455 = vmul.f32 %v2450, %v2453
    %v2456 = vsel %vm1516, %v2455, 0.0
    %2457 = vadd.xlane.f32.xlu0 %v2456
    %v2458 = vpop.xlane.xlu0 %2457
    %v2459 = vld [vmem:[#allocation2] sm:$0x1]
    %v2461 = vperm.slane %v2459, 0
    %v2463 = vadd.f32 %v2458, %v2461
    %vm2464 = vcmask 1024
    %2465 = vst.msk [vmem:[%s11] sm:$0x3] %vm2464, %v2463
    // Predicated region
    $region74: #{gru_model_forward.1} parent=1 // pred_check
      _
    $region75: #{gru_model_forward.1} parent=1 // pred_check_branch
      %2467 = sbr.rel (0) target = $region77
    $region76: #{gru_model_forward.1} parent=1 // pred_region
      _
    $region77: #{gru_model_forward.1} parent=1 // pred_fallthru
      _
    // Predicated region
    $region78: #{gru_model_forward.1} parent=1 // pred_check
      _
    $region79: #{gru_model_forward.1} parent=1 // pred_check_branch
      %2469 = sbr.rel (0) target = $region81
    $region80: #{gru_model_forward.1} parent=1 // pred_region
      _
    $region81: #{gru_model_forward.1} parent=1 // pred_fallthru
      _
    %2470 = vsyncpa [#allocation4], 1
    %2471 = vsyncpa [#allocation6], 1
    %2472 = vsyncpa [#allocation9], 1
    %2473 = vsyncpa [#allocation12], 1

</llo_original>
